<compile_context>
chip_gen: v7x
topology: tpu7x:2x2x1
jax: 0.10.0
libtpu: 0.0.40
codegen_flags: <defaults>
</compile_context>

<pallas_src>
import functools
import math

import numpy as np
import jax
import jax.numpy as jnp
from jax.experimental import pallas as pl
from jax.experimental.pallas import tpu as pltpu

N_FEAT = 768                 # n_node_features == time-encoding dim == embedding dim
QUERY_DIM = 2 * N_FEAT       # [node_feat || time_enc]
KEY_DIM = 2 * N_FEAT         # [neighbor_feat || time_enc]  (no edge features in this variant)
KV_DIM = 2 * QUERY_DIM       # stacked K||V projection output width (3072)
K_PAD = 16                   # neighbor axis padded from 10 to a sublane multiple

_VMEM_LIMIT = 48 * 1024 * 1024   # > v5e 16MB default scoped limit, < v7x 64MB physical


def _cparams(n_axes):
    return pltpu.CompilerParams(
        dimension_semantics=("parallel",) * n_axes,
        vmem_limit_bytes=_VMEM_LIMIT)


def _round_up(x, m):
    return -(-x // m) * m


def _row_tile(m, cap=256):
    tm = min(_round_up(max(m, 1), 8), cap)
    return tm, _round_up(max(m, 1), tm)


def _pad_rows(x, m_pad):
    m = x.shape[0]
    if m == m_pad:
        return x
    return jnp.concatenate(
        [x, jnp.zeros((m_pad - m,) + x.shape[1:], x.dtype)], axis=0)


# ---------------------------------------------------------------------------
# Pallas kernels
# ---------------------------------------------------------------------------
def _mm_t(x_f32, w_ref):
    """x @ w.T with bf16 operands on the MXU and f32 accumulation."""
    return jax.lax.dot_general(
        x_f32.astype(jnp.bfloat16), w_ref[...],
        dimension_numbers=(((1,), (1,)), ((), ())),
        preferred_element_type=jnp.float32)


def _linear_kernel(x_ref, w_ref, b_ref, o_ref, *, apply_relu):
    """o = x @ w.T + b (full-K contraction per grid step, bf16 weights)."""
    y = _mm_t(x_ref[...], w_ref) + b_ref[...]
    if apply_relu:
        y = jnp.maximum(y, 0.0)
    o_ref[...] = y


def linear(x, w_bf16, b, *, relu=False):
    """x:[M,K] f32, w:[N,K] bf16 (PyTorch nn.Linear layout), b:[N] f32 -> [M,N] f32."""
    x = jnp.asarray(x, jnp.float32)
    M, K = x.shape
    N = w_bf16.shape[0]
    assert K % 128 == 0 and N % 128 == 0, (M, K, N)
    tm, m_pad = _row_tile(M)
    tn = N if N <= 768 else 768          # keep >=2 parallel N blocks for N>=1536
    x_p = _pad_rows(x, m_pad)
    out = pl.pallas_call(
        functools.partial(_linear_kernel, apply_relu=relu),
        out_shape=jax.ShapeDtypeStruct((m_pad, N), jnp.float32),
        grid=(m_pad // tm, N // tn),
        in_specs=[
            pl.BlockSpec((tm, K), lambda i, j: (i, 0)),
            pl.BlockSpec((tn, K), lambda i, j: (j, 0)),
            pl.BlockSpec((1, tn), lambda i, j: (0, j)),
        ],
        out_specs=pl.BlockSpec((tm, tn), lambda i, j: (i, j)),
        compiler_params=_cparams(2),
    )(x_p, w_bf16, jnp.asarray(b, jnp.float32).reshape(1, N))
    return out[:M]


def _kv_time_kernel(nbr_ref, dt_ref, tw_ref, tb_ref, wa_ref, wb_ref, b_ref, o_ref):
    """Fused TimeEncode + stacked K/V projection.

    te = cos(dt * w + b)                                 (EUP, overlaps MXU)
    out = nbr @ Wkv[:, :768].T + te @ Wkv[:, 768:].T + b  -> [tm, 3072] (= [K || V])
    """
    te = jnp.cos(dt_ref[...] * tw_ref[...] + tb_ref[...])           # [tm, 768]
    acc = _mm_t(nbr_ref[...], wa_ref)
    acc = acc + _mm_t(te, wb_ref)
    o_ref[...] = acc + b_ref[...]


def kv_time_project(nbr, delta, time_w, time_b, wa_bf16, wb_bf16, bias):
    """nbr:[M,768] f32, delta:[M] f32 -> stacked [M, 3072] (k||v) projections."""
    nbr = jnp.asarray(nbr, jnp.float32)
    M, D = nbr.shape
    N = wa_bf16.shape[0]                   # 3072
    tn = QUERY_DIM                         # 1536 -> 2 parallel N blocks
    tm, m_pad = _row_tile(M)
    nbr_p = _pad_rows(nbr, m_pad)
    dt_p = _pad_rows(jnp.asarray(delta, jnp.float32).reshape(-1, 1), m_pad)
    out = pl.pallas_call(
        _kv_time_kernel,
        out_shape=jax.ShapeDtypeStruct((m_pad, N), jnp.float32),
        grid=(m_pad // tm, N // tn),
        in_specs=[
            pl.BlockSpec((tm, D), lambda i, j: (i, 0)),
            pl.BlockSpec((tm, 1), lambda i, j: (i, 0)),
            pl.BlockSpec((1, D), lambda i, j: (0, 0)),
            pl.BlockSpec((1, D), lambda i, j: (0, 0)),
            pl.BlockSpec((tn, D), lambda i, j: (j, 0)),
            pl.BlockSpec((tn, D), lambda i, j: (j, 0)),
            pl.BlockSpec((1, tn), lambda i, j: (0, j)),
        ],
        out_specs=pl.BlockSpec((tm, tn), lambda i, j: (i, j)),
        compiler_params=_cparams(2),
    )(nbr_p, dt_p, time_w.reshape(1, D), time_b.reshape(1, D),
      wa_bf16, wb_bf16, jnp.asarray(bias, jnp.float32).reshape(1, N))
    return out[:M]


def _attention_kernel(q_ref, kv_ref, mask_ref, o_ref, *, n_heads, k_real):
    """Single-query multi-head attention over padded temporal neighbors.

    q:[tb, Dq]  kv:[tb, K_PAD, 2*Dq] (k||v stacked on lanes)  mask:[tb, K_PAD]
    (1.0 == padded neighbor).  Matches torch.nn.MultiheadAttention (query len 1,
    key_padding_mask) plus TGN's trick of un-masking the last real neighbor for
    fully-padded rows (their output is zeroed downstream anyway).
    """
    tb, kk, d2 = kv_ref.shape
    dq = d2 // 2
    dh = dq // n_heads
    scale = 1.0 / math.sqrt(dh)

    mask = mask_ref[...]                                        # [tb, K_PAD]
    all_pad = jnp.min(mask, axis=1, keepdims=True)              # 1.0 if every key padded
    col = jax.lax.broadcasted_iota(jnp.int32, (tb, kk), 1)
    eff_mask = jnp.where((all_pad > 0.5) & (col == k_real - 1), 0.0, mask)
    neg = jnp.float32(-1e30)

    q = q_ref[...]
    head_outs = []
    for h in range(n_heads):                                    # static unroll (n_heads == 2)
        lo = h * dh
        qh = (q[:, lo:lo + dh] * scale)[:, None, :]             # [tb, 1, Dh]
        kh = kv_ref[:, :, lo:lo + dh]                           # [tb, K_PAD, Dh]
        vh = kv_ref[:, :, dq + lo:dq + lo + dh]                 # [tb, K_PAD, Dh]
        s = jnp.einsum('bqd,bkd->bqk', qh, kh,
                       preferred_element_type=jnp.float32)[:, 0, :]      # MXU
        s = jnp.where(eff_mask > 0.5, neg, s)
        m = jnp.max(s, axis=-1, keepdims=True)
        p = jnp.exp(s - m)
        p = p / jnp.sum(p, axis=-1, keepdims=True)
        oh = jnp.einsum('bqk,bkd->bqd', p[:, None, :], vh,
                        preferred_element_type=jnp.float32)[:, 0, :]     # MXU
        head_outs.append(oh)
    o_ref[...] = jnp.concatenate(head_outs, axis=-1)            # one lane-dense store


def temporal_attention(q, kv, pad_mask, *, n_heads):
    """q:[B,Dq], kv:[B,K,2*Dq], pad_mask:[B,K] bool -> [B,Dq]."""
    B, K, D2 = kv.shape
    Dq = D2 // 2
    tb = min(_round_up(max(B, 1), 8), 32)
    b_pad = _round_up(max(B, 1), tb)
    q_p = _pad_rows(jnp.asarray(q, jnp.float32), b_pad)
    kv_p = jnp.zeros((b_pad, K_PAD, D2), jnp.float32).at[:B, :K, :].set(
        jnp.asarray(kv, jnp.float32))
    mask_p = jnp.ones((b_pad, K_PAD), jnp.float32).at[:B, :K].set(
        jnp.asarray(pad_mask, jnp.float32))
    out = pl.pallas_call(
        functools.partial(_attention_kernel, n_heads=n_heads, k_real=K),
        out_shape=jax.ShapeDtypeStruct((b_pad, Dq), jnp.float32),
        grid=(b_pad // tb,),
        in_specs=[
            pl.BlockSpec((tb, Dq), lambda i: (i, 0)),
            pl.BlockSpec((tb, K_PAD, D2), lambda i: (i, 0, 0)),
            pl.BlockSpec((tb, K_PAD), lambda i: (i, 0)),
        ],
        out_specs=pl.BlockSpec((tb, Dq), lambda i: (i, 0)),
        compiler_params=_cparams(1),
    )(q_p, kv_p, mask_p)
    return out[:B]


def _post_attn_kernel(attn_ref, inv_ref, src_ref, wo_ref, bo_ref,
                      f1a_ref, f1b_ref, b1_ref, f2_ref, b2_ref, o_ref):
    """Fused: out_proj(Wo) -> invalid-row masked_fill -> fc1([y||src])+ReLU -> fc2."""
    y = _mm_t(attn_ref[...], wo_ref) + bo_ref[...]               # [tm, 1536]
    y = jnp.where(inv_ref[...] > 0.5, 0.0, y)                    # masked_fill(invalid, 0)
    h = _mm_t(y, f1a_ref) + _mm_t(src_ref[...], f1b_ref) + b1_ref[...]
    h = jnp.maximum(h, 0.0)                                      # ReLU
    o_ref[...] = _mm_t(h, f2_ref) + b2_ref[...]                  # [tm, 768]


def post_attention(attn, invalid, src_conv, p):
    attn = jnp.asarray(attn, jnp.float32)
    M = attn.shape[0]
    tm, m_pad = _row_tile(M)
    attn_p = _pad_rows(attn, m_pad)
    inv_p = _pad_rows(jnp.asarray(invalid, jnp.float32).reshape(-1, 1), m_pad)
    src_p = _pad_rows(jnp.asarray(src_conv, jnp.float32), m_pad)
    out = pl.pallas_call(
        _post_attn_kernel,
        out_shape=jax.ShapeDtypeStruct((m_pad, N_FEAT), jnp.float32),
        grid=(m_pad // tm,),
        in_specs=[
            pl.BlockSpec((tm, QUERY_DIM), lambda i: (i, 0)),
            pl.BlockSpec((tm, 1), lambda i: (i, 0)),
            pl.BlockSpec((tm, N_FEAT), lambda i: (i, 0)),
            pl.BlockSpec((QUERY_DIM, QUERY_DIM), lambda i: (0, 0)),   # Wo   (bf16, VMEM-resident)
            pl.BlockSpec((1, QUERY_DIM), lambda i: (0, 0)),
            pl.BlockSpec((N_FEAT, QUERY_DIM), lambda i: (0, 0)),      # fc1[:, :1536]
            pl.BlockSpec((N_FEAT, N_FEAT), lambda i: (0, 0)),         # fc1[:, 1536:]
            pl.BlockSpec((1, N_FEAT), lambda i: (0, 0)),
            pl.BlockSpec((N_FEAT, N_FEAT), lambda i: (0, 0)),         # fc2
            pl.BlockSpec((1, N_FEAT), lambda i: (0, 0)),
        ],
        out_specs=pl.BlockSpec((tm, N_FEAT), lambda i: (i, 0)),
        compiler_params=_cparams(1),
    )(attn_p, inv_p, src_p,
      p["Wo"], p["bo"].reshape(1, QUERY_DIM),
      p["fc1a"], p["fc1b"], p["fc1bias"].reshape(1, N_FEAT),
      p["fc2"], p["fc2bias"].reshape(1, N_FEAT))
    return out[:M]


def _masked_mean_kernel(emb_ref, mask_ref, o_ref):
    m = mask_ref[...]                                            # [N, 1]
    s = jnp.sum(emb_ref[...] * m, axis=0, keepdims=True)         # [1, D]
    cnt = jnp.sum(m, axis=0, keepdims=True)                      # [1, 1]
    o_ref[...] = s / cnt


def masked_mean(emb, idxs):
    """torch.mean(updated_embedding[idxs], dim=0) as a masked reduction kernel."""
    n, d = emb.shape
    mask = jnp.zeros((n, 1), jnp.float32).at[
        jnp.asarray(np.asarray(idxs, np.int64)), 0].set(1.0)
    out = pl.pallas_call(
        _masked_mean_kernel,
        out_shape=jax.ShapeDtypeStruct((1, d), jnp.float32),
        grid=(1,),
        in_specs=[pl.BlockSpec((n, d), lambda i: (0, 0)),
                  pl.BlockSpec((n, 1), lambda i: (0, 0))],
        out_specs=pl.BlockSpec((1, d), lambda i: (0, 0)),
        compiler_params=pltpu.CompilerParams(
            dimension_semantics=("arbitrary",), vmem_limit_bytes=_VMEM_LIMIT),
    )(jnp.asarray(emb, jnp.float32), mask)
    return out[0]


# ---------------------------------------------------------------------------
# Parameters (deterministic, synthetic) — stored in fused / bf16 layout
# ---------------------------------------------------------------------------
def _init_attention_layer_params(key):
    ks = jax.random.split(key, 6)

    def w(k, shape):
        return jax.random.normal(k, shape, jnp.float32) / math.sqrt(shape[1])

    Wq = w(ks[0], (QUERY_DIM, QUERY_DIM)); bq = jnp.zeros((QUERY_DIM,), jnp.float32)
    Wk = w(ks[1], (QUERY_DIM, KEY_DIM));   bk = jnp.zeros((QUERY_DIM,), jnp.float32)
    Wv = w(ks[2], (QUERY_DIM, KEY_DIM));   bv = jnp.zeros((QUERY_DIM,), jnp.float32)
    Wo = w(ks[3], (QUERY_DIM, QUERY_DIM)); bo = jnp.zeros((QUERY_DIM,), jnp.float32)
    fc1W = w(ks[4], (N_FEAT, QUERY_DIM + N_FEAT)); fc1b = jnp.zeros((N_FEAT,), jnp.float32)
    fc2W = w(ks[5], (N_FEAT, N_FEAT));     fc2b = jnp.zeros((N_FEAT,), jnp.float32)

    Wkv = jnp.concatenate([Wk, Wv], axis=0)                     # [3072, 1536]
    return dict(
        # Query: time_encode(0) == cos(0) == 1 exactly, so the time half of Wq
        # folds into an effective bias (computed in f32 — more accurate than
        # multiplying a ones-row on the MXU).
        Wq_a=Wq[:, :N_FEAT].astype(jnp.bfloat16),
        bq_eff=bq + jnp.sum(Wq[:, N_FEAT:], axis=1),
        # K/V stacked along out-features, split along in-features so the
        # [neighbor_feat || time_enc] concat never materializes.
        Wkv_a=Wkv[:, :N_FEAT].astype(jnp.bfloat16),
        Wkv_b=Wkv[:, N_FEAT:].astype(jnp.bfloat16),
        bkv=jnp.concatenate([bk, bv], axis=0),
        Wo=Wo.astype(jnp.bfloat16), bo=bo,
        # MergeLayer fc1 split for [attn || src_conv] (concat eliminated).
        fc1a=fc1W[:, :QUERY_DIM].astype(jnp.bfloat16),
        fc1b=fc1W[:, QUERY_DIM:].astype(jnp.bfloat16),
        fc1bias=fc1b,
        fc2=fc2W.astype(jnp.bfloat16), fc2bias=fc2b,
    )


# ---------------------------------------------------------------------------
# Glue: neighbor finder, embedding module, TGN forward
# ---------------------------------------------------------------------------
class SimpleNeighborFinder:
    """Most-recent temporal neighbor sampler (TGN NeighborFinder semantics:
    right-aligned, zero-padded, node 0 == null).  Host-side numpy glue."""

    def __init__(self, sources, destinations, timestamps, edge_idxs, n_nodes):
        adj = [[] for _ in range(n_nodes)]
        for s, d, t, e in zip(sources, destinations, timestamps, edge_idxs):
            adj[int(s)].append((int(d), int(e), float(t)))
            adj[int(d)].append((int(s), int(e), float(t)))
        self.adj = [sorted(a, key=lambda x: x[2]) for a in adj]

    def get_temporal_neighbor(self, nodes, timestamps, n_neighbors):
        K = n_neighbors
        nbrs = np.zeros((len(nodes), K), dtype=np.int64)
        eidx = np.zeros((len(nodes), K), dtype=np.int64)
        etimes = np.zeros((len(nodes), K), dtype=np.float64)
        for i, (n, t) in enumerate(zip(nodes, timestamps)):
            cand = [x for x in self.adj[int(n)] if x[2] < float(t)][-K:]
            if cand:
                nbrs[i, -len(cand):] = [c[0] for c in cand]
                eidx[i, -len(cand):] = [c[1] for c in cand]
                etimes[i, -len(cand):] = [c[2] for c in cand]
        return nbrs, eidx, etimes


class GraphAttentionEmbedding:
    """Recursive TGAT graph-attention embedding (hot path runs in fused Pallas kernels)."""

    def __init__(self, layer_params, time_w, time_b, n_heads, n_neighbors):
        self.layer_params = layer_params        # layer l uses params[l-1]
        self.time_w = time_w
        self.time_b = time_b
        self.n_heads = n_heads
        self.n_neighbors = n_neighbors
        self.node_features = None
        self.neighbor_finder = None

    def compute_embedding(self, source_nodes, timestamps, n_layers):
        source_nodes = np.asarray(source_nodes, np.int64)
        timestamps = np.asarray(timestamps, np.float64)
        if n_layers == 0:
            return self.node_features[jnp.asarray(source_nodes)]

        B, K = len(source_nodes), self.n_neighbors
        neighbors, _eidx, edge_times = self.neighbor_finder.get_temporal_neighbor(
            source_nodes, timestamps, K)
        edge_deltas = (timestamps[:, None] - edge_times).astype(np.float32)   # [B, K]

        # One batched lower-level pass for sources AND their neighbors (halves the
        # number of recursive kernel-call chains per layer).
        lower_nodes = np.concatenate([source_nodes, neighbors.reshape(-1)])
        lower_ts = np.concatenate([timestamps, np.repeat(timestamps, K)])
        lower = self.compute_embedding(lower_nodes, lower_ts, n_layers - 1)
        src_conv = lower[:B]                          # [B, 768]
        nbr_emb = lower[B:]                           # [B*K, 768]

        pad_mask = (neighbors == 0)                   # node 0 is the null/padding node
        invalid = pad_mask.all(axis=1)
        p = self.layer_params[n_layers - 1]
        # TODO(synk): edge features are omitted (this TGN variant constructs its
        # embedding module without an edge-feature matrix).

        q = linear(src_conv, p["Wq_a"], p["bq_eff"])                         # [B, 1536]
        kv = kv_time_project(nbr_emb, edge_deltas.reshape(-1),
                             self.time_w, self.time_b,
                             p["Wkv_a"], p["Wkv_b"], p["bkv"])               # [B*K, 3072]
        kv = kv.reshape(B, K, 2 * QUERY_DIM)
        attn = temporal_attention(q, kv, pad_mask, n_heads=self.n_heads)     # [B, 1536]
        # Fused Wo + invalid masking + MergeLayer fc2(ReLU(fc1([attn || src_conv]))).
        return post_attention(attn, invalid, src_conv, p)                    # [B, 768]


class TGNPallas:
    """Pallas/JAX re-implementation of TGN.forward (use_memory=False path)."""

    def __init__(self, key, n_layers=2, n_heads=2, n_neighbors=10):
        self.n_layers = n_layers
        self.n_neighbors = n_neighbors
        # TimeEncode parameters come straight from the module __init__ (deterministic).
        self.time_w = jnp.asarray(1.0 / 10 ** np.linspace(0, 9, N_FEAT), jnp.float32)
        self.time_b = jnp.zeros((N_FEAT,), jnp.float32)
        layer_params = [_init_attention_layer_params(k)
                        for k in jax.random.split(key, n_layers)]
        self.embedding_module = GraphAttentionEmbedding(
            layer_params, self.time_w, self.time_b, n_heads, n_neighbors)
        # NOTE: class_classifier (Linear 768->2 + Softmax) and CosineSimilarity are
        # declared in __init__ but never used by forward(); omitted.

    def get_bucket_idxs(self, times):
        b_idx = 0
        bucket = [5.0, 10.0, 30.0, 60.0, 120.0, 180.0, 240.0, 480.0, 720.0, 99999999.0]
        bucket_dict = {}
        for i in range(len(bucket)):
            bucket_dict[i] = []
        for i in range(len(times)):
            if times[i] <= bucket[b_idx]:
                bucket_dict[b_idx].append(i)
            else:
                while times[i] > bucket[b_idx] and b_idx < len(bucket):
                    b_idx += 1
                bucket_dict[b_idx].append(i)
        return bucket_dict

    def forward(self, train_ngh_finder, batchsize, source_nodes, destination_nodes,
                edge_times, node_raw_features, edge_idxs):
        edge_times = np.asarray(edge_times, np.float64) / 60.0
        source_nodes = np.asarray(source_nodes, np.int64)
        destination_nodes = np.asarray(destination_nodes, np.int64)
        node_raw_features = jnp.asarray(node_raw_features, jnp.float32)
        self.embedding_module.node_features = node_raw_features
        self.embedding_module.neighbor_finder = train_ngh_finder
        n_nodes = node_raw_features.shape[0]

        updated_embedding = jnp.zeros((n_nodes, N_FEAT), jnp.float32)
        updated_embedding = updated_embedding.at[1].set(node_raw_features[1])
        bucket_dict = self.get_bucket_idxs(edge_times)
        intensity_idxs = np.zeros(len(edge_times))

        # Batch ALL non-empty buckets into one embedding computation: each
        # (node, timestamp) embedding is independent of the sequential
        # updated_embedding state (use_memory=False), so only the cheap
        # scatter + running-mean replay needs to stay per bucket.
        buckets = []
        nodes_parts, ts_parts = [], []
        offset = 0
        for b in range(10):
            idxs = np.asarray(bucket_dict[b], dtype=np.int64)
            if len(idxs) == 0:
                buckets.append(None)
                continue
            src_b = source_nodes[idxs]
            dst_b = destination_nodes[idxs]
            ts_b = edge_times[idxs]
            all_temp_nodes = np.concatenate([src_b, dst_b])       # same layout as torch
            nodes_parts.append(all_temp_nodes)
            ts_parts.append(np.concatenate([ts_b, ts_b]))
            buckets.append((idxs, all_temp_nodes, offset))
            offset += len(all_temp_nodes)

        all_emb = None
        if nodes_parts:
            all_emb = self.embedding_module.compute_embedding(
                np.concatenate(nodes_parts), np.concatenate(ts_parts), self.n_layers)

        sub_graph_seq = []
        updated_idxs = np.array([1])
        for b in range(10):
            if buckets[b] is None:
                sub_graph_seq.append(masked_mean(updated_embedding, updated_idxs))
                continue
            idxs, all_temp_nodes, off = buckets[b]
            intensity_idxs[idxs] = b
            unique_nodes = np.unique(all_temp_nodes)
            updated_idxs = np.unique(np.concatenate((unique_nodes, updated_idxs)))
            node_embedding = all_emb[off:off + len(all_temp_nodes)]

            # updated_embedding[i] = node_embedding[rindex(all_temp_nodes, i)]
            last_occ = {}
            for pos, nid in enumerate(all_temp_nodes):
                last_occ[int(nid)] = pos                    # keeps LAST occurrence
            rows = jnp.asarray(np.array([last_occ[int(n)] for n in unique_nodes]))
            updated_embedding = updated_embedding.at[jnp.asarray(unique_nodes)].set(
                node_embedding[rows])

            sub_graph_seq.append(masked_mean(updated_embedding, updated_idxs))

        return jnp.stack(sub_graph_seq), intensity_idxs


# ---------------------------------------------------------------------------
if __name__ == "__main__":
    key = jax.random.PRNGKey(0)
    k_feat, k_src, k_dst, k_model = jax.random.split(key, 4)

    n_nodes = 24                 # node 0 reserved as the null/padding node
    n_edges = 20                 # 2 interaction events per time bucket
    node_raw_features = np.asarray(
        jax.random.normal(k_feat, (n_nodes, N_FEAT), jnp.float32), np.float64)
    source_nodes = np.asarray(jax.random.randint(k_src, (n_edges,), 1, n_nodes))
    destination_nodes = np.asarray(jax.random.randint(k_dst, (n_edges,), 1, n_nodes))
    # Interaction times in seconds; forward() divides by 60 and buckets the minutes
    # against [5, 10, 30, 60, 120, 180, 240, 480, 720, inf].
    minutes = np.array([1, 3, 7, 9, 15, 25, 40, 55, 90, 110,
                        150, 170, 200, 230, 300, 400, 600, 700, 1000, 5000],
                       dtype=np.float64)
    edge_times = minutes * 60.0
    edge_idxs = np.arange(n_edges)

    finder = SimpleNeighborFinder(source_nodes, destination_nodes,
                                  edge_times / 60.0, edge_idxs, n_nodes)
    model = TGNPallas(k_model, n_layers=2, n_heads=2, n_neighbors=10)

    sub_graph_seq, intensity_idxs = model.forward(
        finder, batchsize=n_edges, source_nodes=source_nodes,
        destination_nodes=destination_nodes, edge_times=edge_times,
        node_raw_features=node_raw_features, edge_idxs=edge_idxs)
    sub_graph_seq = jax.block_until_ready(sub_graph_seq)

    assert sub_graph_seq.shape == (10, N_FEAT)
    assert intensity_idxs.shape == (n_edges,)
    assert bool(jnp.all(jnp.isfinite(sub_graph_seq)))
    print("KERNEL_OK")
</pallas_src>

<mosaic_0001>
module attributes {stable_mosaic.version = 11 : i64} {
  func.func @_linear_kernel(%arg0: i32, %arg1: i32, %arg2: memref<256x768xf32, #tpu.memory_space<vmem>>, %arg3: memref<768x768xbf16, #tpu.memory_space<vmem>>, %arg4: memref<1x768xf32, #tpu.memory_space<vmem>>, %arg5: memref<256x768xf32, #tpu.memory_space<vmem>>) attributes {dimension_semantics = [#tpu.dimension_semantics<parallel>, #tpu.dimension_semantics<parallel>], iteration_bounds = array<i64: 2, 2>, scalar_prefetch = 0 : i64, scratch_operands = 0 : i64, tpu.core_type = #tpu.core_type<tc>, window_params = [{transform_indices = @transform_0, window_bounds = array<i64: 256, 768>}, {transform_indices = @transform_1, window_bounds = array<i64: 768, 768>}, {transform_indices = @transform_2, window_bounds = array<i64: 1, 768>}, {transform_indices = @transform_3, window_bounds = array<i64: 256, 768>}]} {
    %c0 = arith.constant 0 : index
    %c0_0 = arith.constant 0 : index
    %0 = vector.load %arg2[%c0, %c0_0] : memref<256x768xf32, #tpu.memory_space<vmem>>, vector<256x768xf32>
    %1 = arith.truncf %0 : vector<256x768xf32> to vector<256x768xbf16>
    %c0_1 = arith.constant 0 : index
    %c0_2 = arith.constant 0 : index
    %2 = vector.load %arg3[%c0_1, %c0_2] : memref<768x768xbf16, #tpu.memory_space<vmem>>, vector<768x768xbf16>
    %cst = arith.constant dense<0.000000e+00> : vector<256x768xf32>
    %3 = tpu.matmul %1, %2, %cst {dimension_numbers = #tpu.dot_dimension_numbers<[1], [1], [0], [0], [0, 0, 1, 0], [], []>} : vector<256x768xbf16>, vector<768x768xbf16>, vector<256x768xf32> -> vector<256x768xf32>
    %c0_3 = arith.constant 0 : index
    %c0_4 = arith.constant 0 : index
    %4 = vector.load %arg4[%c0_3, %c0_4] : memref<1x768xf32, #tpu.memory_space<vmem>>, vector<1x768xf32>
    %5 = vector.broadcast %4 : vector<1x768xf32> to vector<256x768xf32>
    %6 = arith.addf %3, %5 : vector<256x768xf32>
    %c0_5 = arith.constant 0 : index
    %c0_6 = arith.constant 0 : index
    %7 = vector.load %arg5[%c0_5, %c0_6] : memref<256x768xf32, #tpu.memory_space<vmem>>, vector<256x768xf32>
    tpu.vector_store %arg5[%c0_5, %c0_6], %6 {strides = array<i32>} : memref<256x768xf32, #tpu.memory_space<vmem>>, vector<256x768xf32>,
    return
  }
  func.func @transform_0(%arg0: i32, %arg1: i32) -> (i32, i32) {
    %c0_i32 = arith.constant 0 : i32
    %c0_i32_0 = arith.constant 0 : i32
    return %arg0, %c0_i32 : i32, i32
  }
  func.func @transform_1(%arg0: i32, %arg1: i32) -> (i32, i32) {
    %c0_i32 = arith.constant 0 : i32
    %c0_i32_0 = arith.constant 0 : i32
    return %arg1, %c0_i32 : i32, i32
  }
  func.func @transform_2(%arg0: i32, %arg1: i32) -> (i32, i32) {
    %c0_i32 = arith.constant 0 : i32
    %c0_i32_0 = arith.constant 0 : i32
    return %c0_i32, %arg1 : i32, i32
  }
  func.func @transform_3(%arg0: i32, %arg1: i32) -> (i32, i32) {
    %c0_i32 = arith.constant 0 : i32
    return %arg0, %arg1 : i32, i32
  }
}

</mosaic_0001>

<llo_original>
// kernel: tpu_custom_call.1
$region0: #{tpu_custom_call.1}
  #allocation0 [shape = 'u32[]', space=smem, size = 0x4, offset = 0x4, fixed_abs, tag = 'smem constant byte address 0x4 - core index']
  #allocation1 [shape = 'u32[144,128]{1,0:T(1,128)}', space=vmem, size = 0x12000, scoped, tag = 'internal scratch']
  %s0 = inlined_call_operand.hbm [shape: f32[512,768], index: 0, kind: input, shape index: {}]
  %s1 = inlined_call_operand.hbm [shape: bf16[1536,768], index: 1, kind: input, shape index: {}]
  %s2 = inlined_call_operand.hbm [shape: f32[1,1536], index: 2, kind: input, shape index: {}]
  %s3 = inlined_call_operand.hbm [shape: f32[512,1536], index: 3, kind: output, shape index: {}]
  %s4 = sld [smem:[#allocation0]]
  $region57: #{tpu_custom_call.1} parent=0
    _
  %s6 = ssub.s32 1, %s4
  %s7 = scalar_select 0, %s6, %s4
  $region1: #{tpu_custom_call.1} parent=0
    #allocation2 [shape = 'u8[1572864]{0}', space=vmem, size = 0x180000, scoped, tag = 'input window, operand 0']
    #allocation3 [shape = 's32[2]{0}', space=sflag, size = 0x8, scoped, tag = 'scoped memory for tpu_custom_call.1']
    #allocation4 [shape = 's32[2]{0}', space=sflag, size = 0x8, scoped, tag = 'scoped memory for tpu_custom_call.1']
    #allocation5 [shape = 'u8[2359296]{0}', space=vmem, size = 0x240000, scoped, tag = 'input window, operand 1']
    #allocation6 [shape = 's32[2]{0}', space=sflag, size = 0x8, scoped, tag = 'scoped memory for tpu_custom_call.1']
    #allocation7 [shape = 'u8[6144]{0}', space=vmem, size = 0x1800, scoped, tag = 'input window, operand 2']
    #allocation8 [shape = 'u8[1572864]{0}', space=vmem, size = 0x180000, scoped, tag = 'output window, operand 0']
    %8 = vsyncpa [#allocation3], 0
    %s9 = scalar_lea.sflag [#allocation3], 1
    %10 = vsyncpa %s9, 0
    %11 = vsyncpa [#allocation6], 0
    %s12 = scalar_lea.sflag [#allocation6], 1
    %13 = vsyncpa %s12, 0
    %14 = vsyncpa [#allocation4], 0
    %s15 = scalar_lea.sflag [#allocation4], 1
    %16 = vsyncpa %s15, 0
    loop: start=0, step=1, limit=6
    $region2: #{tpu_custom_call.1} parent=1 // loop_pre_header
      _
    $region3: #{tpu_custom_call.1} parent=1 // loop_header
      %s18 = sphi 0, %s22
      %p19 = scmp.ge.s32.totalorder %s18, 6
      %s25 = sphi 0, %s37
      %s26 = sphi 0, %s33
      %s27 = sphi 0, %s25
      %s28 = sphi 0, %s26
      %s29 = sphi 0, %s27
      %s30 = sphi 0, %s28
      %s40 = sphi 0, %s42
      %s43 = sphi 0, %s40
      %s44 = sphi 0, %s43
      %s60 = sphi 0, %s44
      %s66 = sphi 0, %s68
      %s69 = sphi 0, %s66
      %s70 = sphi 0, %s69
      %s86 = sphi 0, %s70
      %s92 = sphi 0, %s94
      %s95 = sphi 0, %s92
      %s96 = sphi 0, %s95
      %s112 = sphi 0, %s96
      %s120 = sphi 0, %s122
      %s123 = sphi 0, %s120
      %s124 = sphi 0, %s123
      %s140 = sphi 0, %s124
    $region4: #{tpu_custom_call.1} parent=1 // loop_header_branch
      %21 = sbr.rel (%p19) target = $region8
    $region5: #{tpu_custom_call.1} parent=1 // loop_body
      %s23 = ssub.s32 %s18, 1
      %s24 = ssub.s32 %s18, 2
      %s31 = sadd.s32 1, %s26
      %p32 = scmp.ge.s32.totalorder %s31, 2
      %s33 = scalar_select %p32, 0, %s31
      %s34 = sadd.s32 1, %s25
      %s35 = scalar_select %p32, %s34, %s25
      %p36 = scmp.ge.s32.totalorder %s35, 2
      %s37 = scalar_select %p36, 0, %s35
      %s38 = ssub.s32 %s25, %s37
      %p39 = scmp.eq.s32.totalorder %s38, 0
      %s41 = sadd.s32 %s40, 1
      %s42 = scalar_select %p39, %s40, %s41
      %p45 = pneg %p39
      %p46 = scmp.eq.s32.totalorder %s18, 3
      %p47 = por %p45, %p46
      %p48 = scmp.ne.s32.totalorder %s40, %s43
      %p49 = scmp.eq.s32.totalorder %s18, 0
      %p50 = por %p48, %p49
      %p51 = scmp.ne.s32.totalorder %s40, %s43
      %p52 = scmp.eq.s32.totalorder %s23, 3
      %p53 = por %p51, %p52
      %p54 = scmp.ne.s32.totalorder %s43, %s44
      %p55 = scmp.eq.s32.totalorder %s23, 0
      %p56 = por %p54, %p55
      %p57 = scmp.ne.s32.totalorder %s43, %s44
      %p58 = scmp.eq.s32.totalorder %s24, 3
      %p59 = por %p57, %p58
      %p61 = scmp.ne.s32.totalorder %s44, %s60
      %p62 = scmp.eq.s32.totalorder %s24, 0
      %p63 = por %p61, %p62
      %s64 = ssub.s32 %s26, %s33
      %p65 = scmp.eq.s32.totalorder %s64, 0
      %s67 = sadd.s32 %s66, 1
      %s68 = scalar_select %p65, %s66, %s67
      %p71 = pneg %p65
      %p72 = scmp.eq.s32.totalorder %s18, 3
      %p73 = por %p71, %p72
      %p74 = scmp.ne.s32.totalorder %s66, %s69
      %p75 = scmp.eq.s32.totalorder %s18, 0
      %p76 = por %p74, %p75
      %p77 = scmp.ne.s32.totalorder %s66, %s69
      %p78 = scmp.eq.s32.totalorder %s23, 3
      %p79 = por %p77, %p78
      %p80 = scmp.ne.s32.totalorder %s69, %s70
      %p81 = scmp.eq.s32.totalorder %s23, 0
      %p82 = por %p80, %p81
      %p83 = scmp.ne.s32.totalorder %s69, %s70
      %p84 = scmp.eq.s32.totalorder %s24, 3
      %p85 = por %p83, %p84
      %p87 = scmp.ne.s32.totalorder %s70, %s86
      %p88 = scmp.eq.s32.totalorder %s24, 0
      %p89 = por %p87, %p88
      %s90 = ssub.s32 %s26, %s33
      %p91 = scmp.eq.s32.totalorder %s90, 0
      %s93 = sadd.s32 %s92, 1
      %s94 = scalar_select %p91, %s92, %s93
      %p97 = pneg %p91
      %p98 = scmp.eq.s32.totalorder %s18, 3
      %p99 = por %p97, %p98
      %p100 = scmp.ne.s32.totalorder %s92, %s95
      %p101 = scmp.eq.s32.totalorder %s18, 0
      %p102 = por %p100, %p101
      %p103 = scmp.ne.s32.totalorder %s92, %s95
      %p104 = scmp.eq.s32.totalorder %s23, 3
      %p105 = por %p103, %p104
      %p106 = scmp.ne.s32.totalorder %s95, %s96
      %p107 = scmp.eq.s32.totalorder %s23, 0
      %p108 = por %p106, %p107
      %p109 = scmp.ne.s32.totalorder %s95, %s96
      %p110 = scmp.eq.s32.totalorder %s24, 3
      %p111 = por %p109, %p110
      %p113 = scmp.ne.s32.totalorder %s96, %s112
      %p114 = scmp.eq.s32.totalorder %s24, 0
      %p115 = por %p113, %p114
      %s116 = ssub.s32 %s25, %s37
      %s117 = ssub.s32 %s26, %s33
      %s118 = sor.u32 %s116, %s117
      %p119 = scmp.eq.s32.totalorder %s118, 0
      %s121 = sadd.s32 %s120, 1
      %s122 = scalar_select %p119, %s120, %s121
      %p125 = pneg %p119
      %p126 = scmp.eq.s32.totalorder %s18, 3
      %p127 = por %p125, %p126
      %p128 = scmp.ne.s32.totalorder %s120, %s123
      %p129 = scmp.eq.s32.totalorder %s18, 0
      %p130 = por %p128, %p129
      %p131 = scmp.ne.s32.totalorder %s120, %s123
      %p132 = scmp.eq.s32.totalorder %s23, 3
      %p133 = por %p131, %p132
      %p134 = scmp.ne.s32.totalorder %s123, %s124
      %p135 = scmp.eq.s32.totalorder %s23, 0
      %p136 = por %p134, %p135
      %p137 = scmp.ne.s32.totalorder %s123, %s124
      %p138 = scmp.eq.s32.totalorder %s24, 3
      %p139 = por %p137, %p138
      %p141 = scmp.ne.s32.totalorder %s124, %s140
      %p142 = scmp.eq.s32.totalorder %s24, 0
      %p143 = por %p141, %p142
      %p144 = scmp.le.s32.totalorder 1, %s18
      %p145 = scmp.lt.s32.totalorder %s18, 5
      %p146 = pnand %p144, %p145
      %p147 = pneg %p146
      // Predicated region
      $region9: #{tpu_custom_call.1} parent=5 // pred_check
        _
      $region10: #{tpu_custom_call.1} parent=5 // pred_check_branch
        %149 = sbr.rel (%p146) target = $region12
      $region11: #{tpu_custom_call.1} parent=5 // pred_region
        %s150 = ssub.s32 %s18, 1
      $region12: #{tpu_custom_call.1} parent=5 // pred_fallthru
        _
      %p151 = scmp.lt.s32.totalorder %s18, 4
      // Predicated region
      $region13: #{tpu_custom_call.1} parent=5 // pred_check
        %p152 = pneg %p151
      $region14: #{tpu_custom_call.1} parent=5 // pred_check_branch
        %154 = sbr.rel (%p152) target = $region16
      $region15: #{tpu_custom_call.1} parent=5 // pred_region
        // Predicated region
        $region17: #{tpu_custom_call.1} parent=15 // pred_check
          %p155 = pneg %p50
        $region18: #{tpu_custom_call.1} parent=15 // pred_check_branch
          %157 = sbr.rel (%p155) target = $region20
        $region19: #{tpu_custom_call.1} parent=15 // pred_region
          %s158 = sand.u32 %s40, 1
          %s159 = scalar_lea.sflag [#allocation3], %s158
          %s160 = sand.u32 %s40, 1
          %s161 = smul.addr %s160, 1536
          %s162 = scalar_lea.vmem [#allocation2], %s161
          %s163 = smul.u32 32, %s25
          %s165 = ssub.s32 24576, 24576
          %166 = vsyncadd %s159, %s165
          %s167 = smul.addr %s163, 6
          %s168 = smul.addr %s167, 128
          %s169 = scalar_lea.hbm %s0, %s168
          %s170 = sshll.u32 %s162, 4
          %s171 = int_to_ptr.vmem [resolvable:$true] %s170
          %176 = dma.hbm_to_vmem [thread:$0]  %s169, 24576, %s171, %s159, 768, 768, 48
        $region20: #{tpu_custom_call.1} parent=15 // pred_fallthru
          _
        // Predicated region
        $region21: #{tpu_custom_call.1} parent=15 // pred_check
          %p177 = pneg %p76
        $region22: #{tpu_custom_call.1} parent=15 // pred_check_branch
          %179 = sbr.rel (%p177) target = $region24
        $region23: #{tpu_custom_call.1} parent=15 // pred_region
          %s180 = sand.u32 %s18, 1
          %s181 = scalar_lea.sflag [#allocation6], %s180
          %s182 = sand.u32 %s66, 1
          %s183 = smul.addr %s182, 2304
          %s184 = scalar_lea.vmem [#allocation5], %s183
          %s185 = smul.u32 96, %s26
          %s187 = ssub.s32 36864, 36864
          %188 = vsyncadd %s181, %s187
          %s189 = smul.addr %s185, 6
          %s190 = smul.addr %s189, 64
          %s191 = scalar_lea.hbm %s1, %s190
          %s192 = sshll.u32 %s184, 4
          %s193 = int_to_ptr.vmem [resolvable:$true] %s192
          %198 = dma.hbm_to_vmem [thread:$0]  %s191, 36864, %s193, %s181, 384, 384, 24
        $region24: #{tpu_custom_call.1} parent=15 // pred_fallthru
          _
        // Predicated region
        $region25: #{tpu_custom_call.1} parent=15 // pred_check
          %p199 = pneg %p102
        $region26: #{tpu_custom_call.1} parent=15 // pred_check_branch
          %201 = sbr.rel (%p199) target = $region28
        $region27: #{tpu_custom_call.1} parent=15 // pred_region
          %s202 = sand.u32 %s18, 1
          %s203 = scalar_lea.sflag [#allocation6], %s202
          %s204 = sand.u32 %s92, 1
          %s205 = smul.addr %s204, 6
          %s206 = scalar_lea.vmem [#allocation7], %s205
          %s207 = smul.u32 6, %s26
          %s209 = ssub.s32 96, 96
          %210 = vsyncadd %s203, %s209
          %s211 = smul.addr %s207, 16
          %s212 = scalar_lea.hbm %s2, %s211
          %s214 = sshll.u32 %s206, 4
          %s215 = int_to_ptr.vmem [resolvable:$true] %s214
          %217 = dma.hbm_to_vmem [thread:$0]  %s212, 96, %s215, %s203
        $region28: #{tpu_custom_call.1} parent=15 // pred_fallthru
          _
      $region16: #{tpu_custom_call.1} parent=5 // pred_fallthru
        _
      %p218 = scmp.le.s32.totalorder 1, %s18
      %p219 = scmp.lt.s32.totalorder %s18, 5
      %p220 = pnand %p218, %p219
      %p221 = pneg %p220
      // Predicated region
      $region29: #{tpu_custom_call.1} parent=5 // pred_check
        _
      $region30: #{tpu_custom_call.1} parent=5 // pred_check_branch
        %223 = sbr.rel (%p220) target = $region32
      $region31: #{tpu_custom_call.1} parent=5 // pred_region
        %s224 = ssub.s32 %s18, 1
        %s225 = sand.u32 %s43, 1
        %s226 = scalar_lea.sflag [#allocation3], %s225
        %s227 = sand.u32 %s43, 1
        %s228 = smul.addr %s227, 1536
        %s229 = scalar_lea.vmem [#allocation2], %s228
        // Predicated region
        $region33: #{tpu_custom_call.1} parent=31 // pred_check
          %p230 = pneg %p56
        $region34: #{tpu_custom_call.1} parent=31 // pred_check_branch
          %232 = sbr.rel (%p230) target = $region36
        $region35: #{tpu_custom_call.1} parent=31 // pred_region
          %233 = dma.done %s226, 24576
        $region36: #{tpu_custom_call.1} parent=31 // pred_fallthru
          _
        %s234 = sand.u32 %s23, 1
        %s235 = scalar_lea.sflag [#allocation6], %s234
        %s236 = sand.u32 %s69, 1
        %s237 = smul.addr %s236, 2304
        %s238 = scalar_lea.vmem [#allocation5], %s237
        // Predicated region
        $region37: #{tpu_custom_call.1} parent=31 // pred_check
          %p239 = pneg %p82
        $region38: #{tpu_custom_call.1} parent=31 // pred_check_branch
          %241 = sbr.rel (%p239) target = $region40
        $region39: #{tpu_custom_call.1} parent=31 // pred_region
          %242 = dma.done %s235, 36864
        $region40: #{tpu_custom_call.1} parent=31 // pred_fallthru
          _
        %s243 = sand.u32 %s23, 1
        %s244 = scalar_lea.sflag [#allocation6], %s243
        %s245 = sand.u32 %s95, 1
        %s246 = smul.addr %s245, 6
        %s247 = scalar_lea.vmem [#allocation7], %s246
        // Predicated region
        $region41: #{tpu_custom_call.1} parent=31 // pred_check
          %p248 = pneg %p108
        $region42: #{tpu_custom_call.1} parent=31 // pred_check_branch
          %250 = sbr.rel (%p248) target = $region44
        $region43: #{tpu_custom_call.1} parent=31 // pred_region
          %251 = dma.done %s244, 96
        $region44: #{tpu_custom_call.1} parent=31 // pred_fallthru
          _
        %s252 = sand.u32 %s43, 1
        %s253 = scalar_lea.sflag [#allocation3], %s252
        %s254 = sand.u32 %s43, 1
        %s255 = smul.addr %s254, 1536
        %s256 = scalar_lea.vmem [#allocation2], %s255
        %p257 = pneg %p56
        %p258 = pneg %p53
        %s259 = sand.u32 %s23, 1
        %s260 = scalar_lea.sflag [#allocation6], %s259
        %s261 = sand.u32 %s69, 1
        %s262 = smul.addr %s261, 2304
        %s263 = scalar_lea.vmem [#allocation5], %s262
        %p264 = pneg %p82
        %p265 = pneg %p79
        %s266 = sand.u32 %s23, 1
        %s267 = scalar_lea.sflag [#allocation6], %s266
        %s268 = sand.u32 %s95, 1
        %s269 = smul.addr %s268, 6
        %s270 = scalar_lea.vmem [#allocation7], %s269
        %p271 = pneg %p108
        %p272 = pneg %p105
        %p273 = pneg %p136
        %p274 = pneg %p133
        %s275 = sand.u32 %s123, 1
        %s276 = scalar_lea.sflag [#allocation4], %s275
        %s277 = sand.u32 %s123, 1
        %s278 = smul.addr %s277, 1536
        %s279 = scalar_lea.vmem [#allocation8], %s278
        %s280 = smul.u32 32, %s27
        %s281 = smul.u32 96, %s28
        %s282 = smul.u32 6, %s28
        %s283 = smul.u32 32, %s27
        %s284 = smul.u32 6, %s28
        %v285 = vld [vmem:[%s229] sm:$0xff]
        %v286 = vld [vmem:[%s229 + $0x8] sm:$0xff]
        %v287 = vld [vmem:[%s229 + $0x10] sm:$0xff]
        %v288 = vld [vmem:[%s229 + $0x18] sm:$0xff]
        %v289 = vld [vmem:[%s229 + $0x20] sm:$0xff]
        %v290 = vld [vmem:[%s229 + $0x28] sm:$0xff]
        %v291 = vld [vmem:[%s229 + $0x30] sm:$0xff]
        %v292 = vld [vmem:[%s229 + $0x38] sm:$0xff]
        %v293 = vld [vmem:[%s229 + $0x40] sm:$0xff]
        %v294 = vld [vmem:[%s229 + $0x48] sm:$0xff]
        %v295 = vld [vmem:[%s229 + $0x50] sm:$0xff]
        %v296 = vld [vmem:[%s229 + $0x58] sm:$0xff]
        %v297 = vld [vmem:[%s229 + $0x60] sm:$0xff]
        %v298 = vld [vmem:[%s229 + $0x68] sm:$0xff]
        %v299 = vld [vmem:[%s229 + $0x70] sm:$0xff]
        %v300 = vld [vmem:[%s229 + $0x78] sm:$0xff]
        %v301 = vld [vmem:[%s229 + $0x80] sm:$0xff]
        %v302 = vld [vmem:[%s229 + $0x88] sm:$0xff]
        %v303 = vld [vmem:[%s229 + $0x90] sm:$0xff]
        %v304 = vld [vmem:[%s229 + $0x98] sm:$0xff]
        %v305 = vld [vmem:[%s229 + $0xa0] sm:$0xff]
        %v306 = vld [vmem:[%s229 + $0xa8] sm:$0xff]
        %v307 = vld [vmem:[%s229 + $0xb0] sm:$0xff]
        %v308 = vld [vmem:[%s229 + $0xb8] sm:$0xff]
        %v309 = vld [vmem:[%s229 + $0xc0] sm:$0xff]
        %v310 = vld [vmem:[%s229 + $0xc8] sm:$0xff]
        %v311 = vld [vmem:[%s229 + $0xd0] sm:$0xff]
        %v312 = vld [vmem:[%s229 + $0xd8] sm:$0xff]
        %v313 = vld [vmem:[%s229 + $0xe0] sm:$0xff]
        %v314 = vld [vmem:[%s229 + $0xe8] sm:$0xff]
        %v315 = vld [vmem:[%s229 + $0xf0] sm:$0xff]
        %v316 = vld [vmem:[%s229 + $0xf8] sm:$0xff]
        %v317 = vld [vmem:[%s229 + $0x100] sm:$0xff]
        %v318 = vld [vmem:[%s229 + $0x108] sm:$0xff]
        %v319 = vld [vmem:[%s229 + $0x110] sm:$0xff]
        %v320 = vld [vmem:[%s229 + $0x118] sm:$0xff]
        %v321 = vld [vmem:[%s229 + $0x120] sm:$0xff]
        %v322 = vld [vmem:[%s229 + $0x128] sm:$0xff]
        %v323 = vld [vmem:[%s229 + $0x130] sm:$0xff]
        %v324 = vld [vmem:[%s229 + $0x138] sm:$0xff]
        %v325 = vld [vmem:[%s229 + $0x140] sm:$0xff]
        %v326 = vld [vmem:[%s229 + $0x148] sm:$0xff]
        %v327 = vld [vmem:[%s229 + $0x150] sm:$0xff]
        %v328 = vld [vmem:[%s229 + $0x158] sm:$0xff]
        %v329 = vld [vmem:[%s229 + $0x160] sm:$0xff]
        %v330 = vld [vmem:[%s229 + $0x168] sm:$0xff]
        %v331 = vld [vmem:[%s229 + $0x170] sm:$0xff]
        %v332 = vld [vmem:[%s229 + $0x178] sm:$0xff]
        %v333 = vld [vmem:[%s229 + $0x180] sm:$0xff]
        %v334 = vld [vmem:[%s229 + $0x188] sm:$0xff]
        %v335 = vld [vmem:[%s229 + $0x190] sm:$0xff]
        %v336 = vld [vmem:[%s229 + $0x198] sm:$0xff]
        %v337 = vld [vmem:[%s229 + $0x1a0] sm:$0xff]
        %v338 = vld [vmem:[%s229 + $0x1a8] sm:$0xff]
        %v339 = vld [vmem:[%s229 + $0x1b0] sm:$0xff]
        %v340 = vld [vmem:[%s229 + $0x1b8] sm:$0xff]
        %v341 = vld [vmem:[%s229 + $0x1c0] sm:$0xff]
        %v342 = vld [vmem:[%s229 + $0x1c8] sm:$0xff]
        %v343 = vld [vmem:[%s229 + $0x1d0] sm:$0xff]
        %v344 = vld [vmem:[%s229 + $0x1d8] sm:$0xff]
        %v345 = vld [vmem:[%s229 + $0x1e0] sm:$0xff]
        %v346 = vld [vmem:[%s229 + $0x1e8] sm:$0xff]
        %v347 = vld [vmem:[%s229 + $0x1f0] sm:$0xff]
        %v348 = vld [vmem:[%s229 + $0x1f8] sm:$0xff]
        %v349 = vld [vmem:[%s229 + $0x200] sm:$0xff]
        %v350 = vld [vmem:[%s229 + $0x208] sm:$0xff]
        %v351 = vld [vmem:[%s229 + $0x210] sm:$0xff]
        %v352 = vld [vmem:[%s229 + $0x218] sm:$0xff]
        %v353 = vld [vmem:[%s229 + $0x220] sm:$0xff]
        %v354 = vld [vmem:[%s229 + $0x228] sm:$0xff]
        %v355 = vld [vmem:[%s229 + $0x230] sm:$0xff]
        %v356 = vld [vmem:[%s229 + $0x238] sm:$0xff]
        %v357 = vld [vmem:[%s229 + $0x240] sm:$0xff]
        %v358 = vld [vmem:[%s229 + $0x248] sm:$0xff]
        %v359 = vld [vmem:[%s229 + $0x250] sm:$0xff]
        %v360 = vld [vmem:[%s229 + $0x258] sm:$0xff]
        %v361 = vld [vmem:[%s229 + $0x260] sm:$0xff]
        %v362 = vld [vmem:[%s229 + $0x268] sm:$0xff]
        %v363 = vld [vmem:[%s229 + $0x270] sm:$0xff]
        %v364 = vld [vmem:[%s229 + $0x278] sm:$0xff]
        %v365 = vld [vmem:[%s229 + $0x280] sm:$0xff]
        %v366 = vld [vmem:[%s229 + $0x288] sm:$0xff]
        %v367 = vld [vmem:[%s229 + $0x290] sm:$0xff]
        %v368 = vld [vmem:[%s229 + $0x298] sm:$0xff]
        %v369 = vld [vmem:[%s229 + $0x2a0] sm:$0xff]
        %v370 = vld [vmem:[%s229 + $0x2a8] sm:$0xff]
        %v371 = vld [vmem:[%s229 + $0x2b0] sm:$0xff]
        %v372 = vld [vmem:[%s229 + $0x2b8] sm:$0xff]
        %v373 = vld [vmem:[%s229 + $0x2c0] sm:$0xff]
        %v374 = vld [vmem:[%s229 + $0x2c8] sm:$0xff]
        %v375 = vld [vmem:[%s229 + $0x2d0] sm:$0xff]
        %v376 = vld [vmem:[%s229 + $0x2d8] sm:$0xff]
        %v377 = vld [vmem:[%s229 + $0x2e0] sm:$0xff]
        %v378 = vld [vmem:[%s229 + $0x2e8] sm:$0xff]
        %v379 = vld [vmem:[%s229 + $0x2f0] sm:$0xff]
        %v380 = vld [vmem:[%s229 + $0x2f8] sm:$0xff]
        %v381 = vld [vmem:[%s229 + $0x300] sm:$0xff]
        %v382 = vld [vmem:[%s229 + $0x308] sm:$0xff]
        %v383 = vld [vmem:[%s229 + $0x310] sm:$0xff]
        %v384 = vld [vmem:[%s229 + $0x318] sm:$0xff]
        %v385 = vld [vmem:[%s229 + $0x320] sm:$0xff]
        %v386 = vld [vmem:[%s229 + $0x328] sm:$0xff]
        %v387 = vld [vmem:[%s229 + $0x330] sm:$0xff]
        %v388 = vld [vmem:[%s229 + $0x338] sm:$0xff]
        %v389 = vld [vmem:[%s229 + $0x340] sm:$0xff]
        %v390 = vld [vmem:[%s229 + $0x348] sm:$0xff]
        %v391 = vld [vmem:[%s229 + $0x350] sm:$0xff]
        %v392 = vld [vmem:[%s229 + $0x358] sm:$0xff]
        %v393 = vld [vmem:[%s229 + $0x360] sm:$0xff]
        %v394 = vld [vmem:[%s229 + $0x368] sm:$0xff]
        %v395 = vld [vmem:[%s229 + $0x370] sm:$0xff]
        %v396 = vld [vmem:[%s229 + $0x378] sm:$0xff]
        %v397 = vld [vmem:[%s229 + $0x380] sm:$0xff]
        %v398 = vld [vmem:[%s229 + $0x388] sm:$0xff]
        %v399 = vld [vmem:[%s229 + $0x390] sm:$0xff]
        %v400 = vld [vmem:[%s229 + $0x398] sm:$0xff]
        %v401 = vld [vmem:[%s229 + $0x3a0] sm:$0xff]
        %v402 = vld [vmem:[%s229 + $0x3a8] sm:$0xff]
        %v403 = vld [vmem:[%s229 + $0x3b0] sm:$0xff]
        %v404 = vld [vmem:[%s229 + $0x3b8] sm:$0xff]
        %v405 = vld [vmem:[%s229 + $0x3c0] sm:$0xff]
        %v406 = vld [vmem:[%s229 + $0x3c8] sm:$0xff]
        %v407 = vld [vmem:[%s229 + $0x3d0] sm:$0xff]
        %v408 = vld [vmem:[%s229 + $0x3d8] sm:$0xff]
        %v409 = vld [vmem:[%s229 + $0x3e0] sm:$0xff]
        %v410 = vld [vmem:[%s229 + $0x3e8] sm:$0xff]
        %v411 = vld [vmem:[%s229 + $0x3f0] sm:$0xff]
        %v412 = vld [vmem:[%s229 + $0x3f8] sm:$0xff]
        %v413 = vld [vmem:[%s229 + $0x400] sm:$0xff]
        %v414 = vld [vmem:[%s229 + $0x408] sm:$0xff]
        %v415 = vld [vmem:[%s229 + $0x410] sm:$0xff]
        %v416 = vld [vmem:[%s229 + $0x418] sm:$0xff]
        %v417 = vld [vmem:[%s229 + $0x420] sm:$0xff]
        %v418 = vld [vmem:[%s229 + $0x428] sm:$0xff]
        %v419 = vld [vmem:[%s229 + $0x430] sm:$0xff]
        %v420 = vld [vmem:[%s229 + $0x438] sm:$0xff]
        %v421 = vld [vmem:[%s229 + $0x440] sm:$0xff]
        %v422 = vld [vmem:[%s229 + $0x448] sm:$0xff]
        %v423 = vld [vmem:[%s229 + $0x450] sm:$0xff]
        %v424 = vld [vmem:[%s229 + $0x458] sm:$0xff]
        %v425 = vld [vmem:[%s229 + $0x460] sm:$0xff]
        %v426 = vld [vmem:[%s229 + $0x468] sm:$0xff]
        %v427 = vld [vmem:[%s229 + $0x470] sm:$0xff]
        %v428 = vld [vmem:[%s229 + $0x478] sm:$0xff]
        %v429 = vld [vmem:[%s229 + $0x480] sm:$0xff]
        %v430 = vld [vmem:[%s229 + $0x488] sm:$0xff]
        %v431 = vld [vmem:[%s229 + $0x490] sm:$0xff]
        %v432 = vld [vmem:[%s229 + $0x498] sm:$0xff]
        %v433 = vld [vmem:[%s229 + $0x4a0] sm:$0xff]
        %v434 = vld [vmem:[%s229 + $0x4a8] sm:$0xff]
        %v435 = vld [vmem:[%s229 + $0x4b0] sm:$0xff]
        %v436 = vld [vmem:[%s229 + $0x4b8] sm:$0xff]
        %v437 = vld [vmem:[%s229 + $0x4c0] sm:$0xff]
        %v438 = vld [vmem:[%s229 + $0x4c8] sm:$0xff]
        %v439 = vld [vmem:[%s229 + $0x4d0] sm:$0xff]
        %v440 = vld [vmem:[%s229 + $0x4d8] sm:$0xff]
        %v441 = vld [vmem:[%s229 + $0x4e0] sm:$0xff]
        %v442 = vld [vmem:[%s229 + $0x4e8] sm:$0xff]
        %v443 = vld [vmem:[%s229 + $0x4f0] sm:$0xff]
        %v444 = vld [vmem:[%s229 + $0x4f8] sm:$0xff]
        %v445 = vld [vmem:[%s229 + $0x500] sm:$0xff]
        %v446 = vld [vmem:[%s229 + $0x508] sm:$0xff]
        %v447 = vld [vmem:[%s229 + $0x510] sm:$0xff]
        %v448 = vld [vmem:[%s229 + $0x518] sm:$0xff]
        %v449 = vld [vmem:[%s229 + $0x520] sm:$0xff]
        %v450 = vld [vmem:[%s229 + $0x528] sm:$0xff]
        %v451 = vld [vmem:[%s229 + $0x530] sm:$0xff]
        %v452 = vld [vmem:[%s229 + $0x538] sm:$0xff]
        %v453 = vld [vmem:[%s229 + $0x540] sm:$0xff]
        %v454 = vld [vmem:[%s229 + $0x548] sm:$0xff]
        %v455 = vld [vmem:[%s229 + $0x550] sm:$0xff]
        %v456 = vld [vmem:[%s229 + $0x558] sm:$0xff]
        %v457 = vld [vmem:[%s229 + $0x560] sm:$0xff]
        %v458 = vld [vmem:[%s229 + $0x568] sm:$0xff]
        %v459 = vld [vmem:[%s229 + $0x570] sm:$0xff]
        %v460 = vld [vmem:[%s229 + $0x578] sm:$0xff]
        %v461 = vld [vmem:[%s229 + $0x580] sm:$0xff]
        %v462 = vld [vmem:[%s229 + $0x588] sm:$0xff]
        %v463 = vld [vmem:[%s229 + $0x590] sm:$0xff]
        %v464 = vld [vmem:[%s229 + $0x598] sm:$0xff]
        %v465 = vld [vmem:[%s229 + $0x5a0] sm:$0xff]
        %v466 = vld [vmem:[%s229 + $0x5a8] sm:$0xff]
        %v467 = vld [vmem:[%s229 + $0x5b0] sm:$0xff]
        %v468 = vld [vmem:[%s229 + $0x5b8] sm:$0xff]
        %v469 = vld [vmem:[%s229 + $0x5c0] sm:$0xff]
        %v470 = vld [vmem:[%s229 + $0x5c8] sm:$0xff]
        %v471 = vld [vmem:[%s229 + $0x5d0] sm:$0xff]
        %v472 = vld [vmem:[%s229 + $0x5d8] sm:$0xff]
        %v473 = vld [vmem:[%s229 + $0x5e0] sm:$0xff]
        %v474 = vld [vmem:[%s229 + $0x5e8] sm:$0xff]
        %v475 = vld [vmem:[%s229 + $0x5f0] sm:$0xff]
        %v476 = vld [vmem:[%s229 + $0x5f8] sm:$0xff]
        %v477 = vpack.c.bf16 %v291, %v285
        %v478 = vpack.c.bf16 %v292, %v286
        %v479 = vpack.c.bf16 %v293, %v287
        %v480 = vpack.c.bf16 %v294, %v288
        %v481 = vpack.c.bf16 %v295, %v289
        %v482 = vpack.c.bf16 %v296, %v290
        %v483 = vpack.c.bf16 %v303, %v297
        %v484 = vpack.c.bf16 %v304, %v298
        %v485 = vpack.c.bf16 %v305, %v299
        %v486 = vpack.c.bf16 %v306, %v300
        %v487 = vpack.c.bf16 %v307, %v301
        %v488 = vpack.c.bf16 %v308, %v302
        %v489 = vpack.c.bf16 %v315, %v309
        %v490 = vpack.c.bf16 %v316, %v310
        %v491 = vpack.c.bf16 %v317, %v311
        %v492 = vpack.c.bf16 %v318, %v312
        %v493 = vpack.c.bf16 %v319, %v313
        %v494 = vpack.c.bf16 %v320, %v314
        %v495 = vpack.c.bf16 %v327, %v321
        %v496 = vpack.c.bf16 %v328, %v322
        %v497 = vpack.c.bf16 %v329, %v323
        %v498 = vpack.c.bf16 %v330, %v324
        %v499 = vpack.c.bf16 %v331, %v325
        %v500 = vpack.c.bf16 %v332, %v326
        %v501 = vpack.c.bf16 %v339, %v333
        %v502 = vpack.c.bf16 %v340, %v334
        %v503 = vpack.c.bf16 %v341, %v335
        %v504 = vpack.c.bf16 %v342, %v336
        %v505 = vpack.c.bf16 %v343, %v337
        %v506 = vpack.c.bf16 %v344, %v338
        %v507 = vpack.c.bf16 %v351, %v345
        %v508 = vpack.c.bf16 %v352, %v346
        %v509 = vpack.c.bf16 %v353, %v347
        %v510 = vpack.c.bf16 %v354, %v348
        %v511 = vpack.c.bf16 %v355, %v349
        %v512 = vpack.c.bf16 %v356, %v350
        %v513 = vpack.c.bf16 %v363, %v357
        %v514 = vpack.c.bf16 %v364, %v358
        %v515 = vpack.c.bf16 %v365, %v359
        %v516 = vpack.c.bf16 %v366, %v360
        %v517 = vpack.c.bf16 %v367, %v361
        %v518 = vpack.c.bf16 %v368, %v362
        %v519 = vpack.c.bf16 %v375, %v369
        %v520 = vpack.c.bf16 %v376, %v370
        %v521 = vpack.c.bf16 %v377, %v371
        %v522 = vpack.c.bf16 %v378, %v372
        %v523 = vpack.c.bf16 %v379, %v373
        %v524 = vpack.c.bf16 %v380, %v374
        %v525 = vpack.c.bf16 %v387, %v381
        %v526 = vpack.c.bf16 %v388, %v382
        %v527 = vpack.c.bf16 %v389, %v383
        %v528 = vpack.c.bf16 %v390, %v384
        %v529 = vpack.c.bf16 %v391, %v385
        %v530 = vpack.c.bf16 %v392, %v386
        %v531 = vpack.c.bf16 %v399, %v393
        %v532 = vpack.c.bf16 %v400, %v394
        %v533 = vpack.c.bf16 %v401, %v395
        %v534 = vpack.c.bf16 %v402, %v396
        %v535 = vpack.c.bf16 %v403, %v397
        %v536 = vpack.c.bf16 %v404, %v398
        %v537 = vpack.c.bf16 %v411, %v405
        %v538 = vpack.c.bf16 %v412, %v406
        %v539 = vpack.c.bf16 %v413, %v407
        %v540 = vpack.c.bf16 %v414, %v408
        %v541 = vpack.c.bf16 %v415, %v409
        %v542 = vpack.c.bf16 %v416, %v410
        %v543 = vpack.c.bf16 %v423, %v417
        %v544 = vpack.c.bf16 %v424, %v418
        %v545 = vpack.c.bf16 %v425, %v419
        %v546 = vpack.c.bf16 %v426, %v420
        %v547 = vpack.c.bf16 %v427, %v421
        %v548 = vpack.c.bf16 %v428, %v422
        %v549 = vpack.c.bf16 %v435, %v429
        %v550 = vpack.c.bf16 %v436, %v430
        %v551 = vpack.c.bf16 %v437, %v431
        %v552 = vpack.c.bf16 %v438, %v432
        %v553 = vpack.c.bf16 %v439, %v433
        %v554 = vpack.c.bf16 %v440, %v434
        %v555 = vpack.c.bf16 %v447, %v441
        %v556 = vpack.c.bf16 %v448, %v442
        %v557 = vpack.c.bf16 %v449, %v443
        %v558 = vpack.c.bf16 %v450, %v444
        %v559 = vpack.c.bf16 %v451, %v445
        %v560 = vpack.c.bf16 %v452, %v446
        %v561 = vpack.c.bf16 %v459, %v453
        %v562 = vpack.c.bf16 %v460, %v454
        %v563 = vpack.c.bf16 %v461, %v455
        %v564 = vpack.c.bf16 %v462, %v456
        %v565 = vpack.c.bf16 %v463, %v457
        %v566 = vpack.c.bf16 %v464, %v458
        %v567 = vpack.c.bf16 %v471, %v465
        %v568 = vpack.c.bf16 %v472, %v466
        %v569 = vpack.c.bf16 %v473, %v467
        %v570 = vpack.c.bf16 %v474, %v468
        %v571 = vpack.c.bf16 %v475, %v469
        %v572 = vpack.c.bf16 %v476, %v470
        %v573 = vld [vmem:[%s238] sm:$0xff]
        %v574 = vld [vmem:[%s238 + $0x8] sm:$0xff]
        %v575 = vld [vmem:[%s238 + $0x10] sm:$0xff]
        %v576 = vld [vmem:[%s238 + $0x18] sm:$0xff]
        %v577 = vld [vmem:[%s238 + $0x20] sm:$0xff]
        %v578 = vld [vmem:[%s238 + $0x28] sm:$0xff]
        %v579 = vld [vmem:[%s238 + $0x30] sm:$0xff]
        %v580 = vld [vmem:[%s238 + $0x38] sm:$0xff]
        %v581 = vld [vmem:[%s238 + $0x40] sm:$0xff]
        %v582 = vld [vmem:[%s238 + $0x48] sm:$0xff]
        %v583 = vld [vmem:[%s238 + $0x50] sm:$0xff]
        %v584 = vld [vmem:[%s238 + $0x58] sm:$0xff]
        %v585 = vld [vmem:[%s238 + $0x60] sm:$0xff]
        %v586 = vld [vmem:[%s238 + $0x68] sm:$0xff]
        %v587 = vld [vmem:[%s238 + $0x70] sm:$0xff]
        %v588 = vld [vmem:[%s238 + $0x78] sm:$0xff]
        %v589 = vld [vmem:[%s238 + $0x80] sm:$0xff]
        %v590 = vld [vmem:[%s238 + $0x88] sm:$0xff]
        %v591 = vld [vmem:[%s238 + $0x90] sm:$0xff]
        %v592 = vld [vmem:[%s238 + $0x98] sm:$0xff]
        %v593 = vld [vmem:[%s238 + $0xa0] sm:$0xff]
        %v594 = vld [vmem:[%s238 + $0xa8] sm:$0xff]
        %v595 = vld [vmem:[%s238 + $0xb0] sm:$0xff]
        %v596 = vld [vmem:[%s238 + $0xb8] sm:$0xff]
        %v597 = vld [vmem:[%s238 + $0xc0] sm:$0xff]
        %v598 = vld [vmem:[%s238 + $0xc8] sm:$0xff]
        %v599 = vld [vmem:[%s238 + $0xd0] sm:$0xff]
        %v600 = vld [vmem:[%s238 + $0xd8] sm:$0xff]
        %v601 = vld [vmem:[%s238 + $0xe0] sm:$0xff]
        %v602 = vld [vmem:[%s238 + $0xe8] sm:$0xff]
        %v603 = vld [vmem:[%s238 + $0xf0] sm:$0xff]
        %v604 = vld [vmem:[%s238 + $0xf8] sm:$0xff]
        %v605 = vld [vmem:[%s238 + $0x100] sm:$0xff]
        %v606 = vld [vmem:[%s238 + $0x108] sm:$0xff]
        %v607 = vld [vmem:[%s238 + $0x110] sm:$0xff]
        %v608 = vld [vmem:[%s238 + $0x118] sm:$0xff]
        %v609 = vld [vmem:[%s238 + $0x120] sm:$0xff]
        %v610 = vld [vmem:[%s238 + $0x128] sm:$0xff]
        %v611 = vld [vmem:[%s238 + $0x130] sm:$0xff]
        %v612 = vld [vmem:[%s238 + $0x138] sm:$0xff]
        %v613 = vld [vmem:[%s238 + $0x140] sm:$0xff]
        %v614 = vld [vmem:[%s238 + $0x148] sm:$0xff]
        %v615 = vld [vmem:[%s238 + $0x150] sm:$0xff]
        %v616 = vld [vmem:[%s238 + $0x158] sm:$0xff]
        %v617 = vld [vmem:[%s238 + $0x160] sm:$0xff]
        %v618 = vld [vmem:[%s238 + $0x168] sm:$0xff]
        %v619 = vld [vmem:[%s238 + $0x170] sm:$0xff]
        %v620 = vld [vmem:[%s238 + $0x178] sm:$0xff]
        %v621 = vld [vmem:[%s238 + $0x180] sm:$0xff]
        %v622 = vld [vmem:[%s238 + $0x188] sm:$0xff]
        %v623 = vld [vmem:[%s238 + $0x190] sm:$0xff]
        %v624 = vld [vmem:[%s238 + $0x198] sm:$0xff]
        %v625 = vld [vmem:[%s238 + $0x1a0] sm:$0xff]
        %v626 = vld [vmem:[%s238 + $0x1a8] sm:$0xff]
        %v627 = vld [vmem:[%s238 + $0x1b0] sm:$0xff]
        %v628 = vld [vmem:[%s238 + $0x1b8] sm:$0xff]
        %v629 = vld [vmem:[%s238 + $0x1c0] sm:$0xff]
        %v630 = vld [vmem:[%s238 + $0x1c8] sm:$0xff]
        %v631 = vld [vmem:[%s238 + $0x1d0] sm:$0xff]
        %v632 = vld [vmem:[%s238 + $0x1d8] sm:$0xff]
        %v633 = vld [vmem:[%s238 + $0x1e0] sm:$0xff]
        %v634 = vld [vmem:[%s238 + $0x1e8] sm:$0xff]
        %v635 = vld [vmem:[%s238 + $0x1f0] sm:$0xff]
        %v636 = vld [vmem:[%s238 + $0x1f8] sm:$0xff]
        %v637 = vld [vmem:[%s238 + $0x200] sm:$0xff]
        %v638 = vld [vmem:[%s238 + $0x208] sm:$0xff]
        %v639 = vld [vmem:[%s238 + $0x210] sm:$0xff]
        %v640 = vld [vmem:[%s238 + $0x218] sm:$0xff]
        %v641 = vld [vmem:[%s238 + $0x220] sm:$0xff]
        %v642 = vld [vmem:[%s238 + $0x228] sm:$0xff]
        %v643 = vld [vmem:[%s238 + $0x230] sm:$0xff]
        %v644 = vld [vmem:[%s238 + $0x238] sm:$0xff]
        %v645 = vld [vmem:[%s238 + $0x240] sm:$0xff]
        %v646 = vld [vmem:[%s238 + $0x248] sm:$0xff]
        %v647 = vld [vmem:[%s238 + $0x250] sm:$0xff]
        %v648 = vld [vmem:[%s238 + $0x258] sm:$0xff]
        %v649 = vld [vmem:[%s238 + $0x260] sm:$0xff]
        %v650 = vld [vmem:[%s238 + $0x268] sm:$0xff]
        %v651 = vld [vmem:[%s238 + $0x270] sm:$0xff]
        %v652 = vld [vmem:[%s238 + $0x278] sm:$0xff]
        %v653 = vld [vmem:[%s238 + $0x280] sm:$0xff]
        %v654 = vld [vmem:[%s238 + $0x288] sm:$0xff]
        %v655 = vld [vmem:[%s238 + $0x290] sm:$0xff]
        %v656 = vld [vmem:[%s238 + $0x298] sm:$0xff]
        %v657 = vld [vmem:[%s238 + $0x2a0] sm:$0xff]
        %v658 = vld [vmem:[%s238 + $0x2a8] sm:$0xff]
        %v659 = vld [vmem:[%s238 + $0x2b0] sm:$0xff]
        %v660 = vld [vmem:[%s238 + $0x2b8] sm:$0xff]
        %v661 = vld [vmem:[%s238 + $0x2c0] sm:$0xff]
        %v662 = vld [vmem:[%s238 + $0x2c8] sm:$0xff]
        %v663 = vld [vmem:[%s238 + $0x2d0] sm:$0xff]
        %v664 = vld [vmem:[%s238 + $0x2d8] sm:$0xff]
        %v665 = vld [vmem:[%s238 + $0x2e0] sm:$0xff]
        %v666 = vld [vmem:[%s238 + $0x2e8] sm:$0xff]
        %v667 = vld [vmem:[%s238 + $0x2f0] sm:$0xff]
        %v668 = vld [vmem:[%s238 + $0x2f8] sm:$0xff]
        %v669 = vld [vmem:[%s238 + $0x300] sm:$0xff]
        %v670 = vld [vmem:[%s238 + $0x308] sm:$0xff]
        %v671 = vld [vmem:[%s238 + $0x310] sm:$0xff]
        %v672 = vld [vmem:[%s238 + $0x318] sm:$0xff]
        %v673 = vld [vmem:[%s238 + $0x320] sm:$0xff]
        %v674 = vld [vmem:[%s238 + $0x328] sm:$0xff]
        %v675 = vld [vmem:[%s238 + $0x330] sm:$0xff]
        %v676 = vld [vmem:[%s238 + $0x338] sm:$0xff]
        %v677 = vld [vmem:[%s238 + $0x340] sm:$0xff]
        %v678 = vld [vmem:[%s238 + $0x348] sm:$0xff]
        %v679 = vld [vmem:[%s238 + $0x350] sm:$0xff]
        %v680 = vld [vmem:[%s238 + $0x358] sm:$0xff]
        %v681 = vld [vmem:[%s238 + $0x360] sm:$0xff]
        %v682 = vld [vmem:[%s238 + $0x368] sm:$0xff]
        %v683 = vld [vmem:[%s238 + $0x370] sm:$0xff]
        %v684 = vld [vmem:[%s238 + $0x378] sm:$0xff]
        %v685 = vld [vmem:[%s238 + $0x380] sm:$0xff]
        %v686 = vld [vmem:[%s238 + $0x388] sm:$0xff]
        %v687 = vld [vmem:[%s238 + $0x390] sm:$0xff]
        %v688 = vld [vmem:[%s238 + $0x398] sm:$0xff]
        %v689 = vld [vmem:[%s238 + $0x3a0] sm:$0xff]
        %v690 = vld [vmem:[%s238 + $0x3a8] sm:$0xff]
        %v691 = vld [vmem:[%s238 + $0x3b0] sm:$0xff]
        %v692 = vld [vmem:[%s238 + $0x3b8] sm:$0xff]
        %v693 = vld [vmem:[%s238 + $0x3c0] sm:$0xff]
        %v694 = vld [vmem:[%s238 + $0x3c8] sm:$0xff]
        %v695 = vld [vmem:[%s238 + $0x3d0] sm:$0xff]
        %v696 = vld [vmem:[%s238 + $0x3d8] sm:$0xff]
        %v697 = vld [vmem:[%s238 + $0x3e0] sm:$0xff]
        %v698 = vld [vmem:[%s238 + $0x3e8] sm:$0xff]
        %v699 = vld [vmem:[%s238 + $0x3f0] sm:$0xff]
        %v700 = vld [vmem:[%s238 + $0x3f8] sm:$0xff]
        %v701 = vld [vmem:[%s238 + $0x400] sm:$0xff]
        %v702 = vld [vmem:[%s238 + $0x408] sm:$0xff]
        %v703 = vld [vmem:[%s238 + $0x410] sm:$0xff]
        %v704 = vld [vmem:[%s238 + $0x418] sm:$0xff]
        %v705 = vld [vmem:[%s238 + $0x420] sm:$0xff]
        %v706 = vld [vmem:[%s238 + $0x428] sm:$0xff]
        %v707 = vld [vmem:[%s238 + $0x430] sm:$0xff]
        %v708 = vld [vmem:[%s238 + $0x438] sm:$0xff]
        %v709 = vld [vmem:[%s238 + $0x440] sm:$0xff]
        %v710 = vld [vmem:[%s238 + $0x448] sm:$0xff]
        %v711 = vld [vmem:[%s238 + $0x450] sm:$0xff]
        %v712 = vld [vmem:[%s238 + $0x458] sm:$0xff]
        %v713 = vld [vmem:[%s238 + $0x460] sm:$0xff]
        %v714 = vld [vmem:[%s238 + $0x468] sm:$0xff]
        %v715 = vld [vmem:[%s238 + $0x470] sm:$0xff]
        %v716 = vld [vmem:[%s238 + $0x478] sm:$0xff]
        %v717 = vld [vmem:[%s238 + $0x480] sm:$0xff]
        %v718 = vld [vmem:[%s238 + $0x488] sm:$0xff]
        %v719 = vld [vmem:[%s238 + $0x490] sm:$0xff]
        %v720 = vld [vmem:[%s238 + $0x498] sm:$0xff]
        %v721 = vld [vmem:[%s238 + $0x4a0] sm:$0xff]
        %v722 = vld [vmem:[%s238 + $0x4a8] sm:$0xff]
        %v723 = vld [vmem:[%s238 + $0x4b0] sm:$0xff]
        %v724 = vld [vmem:[%s238 + $0x4b8] sm:$0xff]
        %v725 = vld [vmem:[%s238 + $0x4c0] sm:$0xff]
        %v726 = vld [vmem:[%s238 + $0x4c8] sm:$0xff]
        %v727 = vld [vmem:[%s238 + $0x4d0] sm:$0xff]
        %v728 = vld [vmem:[%s238 + $0x4d8] sm:$0xff]
        %v729 = vld [vmem:[%s238 + $0x4e0] sm:$0xff]
        %v730 = vld [vmem:[%s238 + $0x4e8] sm:$0xff]
        %v731 = vld [vmem:[%s238 + $0x4f0] sm:$0xff]
        %v732 = vld [vmem:[%s238 + $0x4f8] sm:$0xff]
        %v733 = vld [vmem:[%s238 + $0x500] sm:$0xff]
        %v734 = vld [vmem:[%s238 + $0x508] sm:$0xff]
        %v735 = vld [vmem:[%s238 + $0x510] sm:$0xff]
        %v736 = vld [vmem:[%s238 + $0x518] sm:$0xff]
        %v737 = vld [vmem:[%s238 + $0x520] sm:$0xff]
        %v738 = vld [vmem:[%s238 + $0x528] sm:$0xff]
        %v739 = vld [vmem:[%s238 + $0x530] sm:$0xff]
        %v740 = vld [vmem:[%s238 + $0x538] sm:$0xff]
        %v741 = vld [vmem:[%s238 + $0x540] sm:$0xff]
        %v742 = vld [vmem:[%s238 + $0x548] sm:$0xff]
        %v743 = vld [vmem:[%s238 + $0x550] sm:$0xff]
        %v744 = vld [vmem:[%s238 + $0x558] sm:$0xff]
        %v745 = vld [vmem:[%s238 + $0x560] sm:$0xff]
        %v746 = vld [vmem:[%s238 + $0x568] sm:$0xff]
        %v747 = vld [vmem:[%s238 + $0x570] sm:$0xff]
        %v748 = vld [vmem:[%s238 + $0x578] sm:$0xff]
        %v749 = vld [vmem:[%s238 + $0x580] sm:$0xff]
        %v750 = vld [vmem:[%s238 + $0x588] sm:$0xff]
        %v751 = vld [vmem:[%s238 + $0x590] sm:$0xff]
        %v752 = vld [vmem:[%s238 + $0x598] sm:$0xff]
        %v753 = vld [vmem:[%s238 + $0x5a0] sm:$0xff]
        %v754 = vld [vmem:[%s238 + $0x5a8] sm:$0xff]
        %v755 = vld [vmem:[%s238 + $0x5b0] sm:$0xff]
        %v756 = vld [vmem:[%s238 + $0x5b8] sm:$0xff]
        %v757 = vld [vmem:[%s238 + $0x5c0] sm:$0xff]
        %v758 = vld [vmem:[%s238 + $0x5c8] sm:$0xff]
        %v759 = vld [vmem:[%s238 + $0x5d0] sm:$0xff]
        %v760 = vld [vmem:[%s238 + $0x5d8] sm:$0xff]
        %v761 = vld [vmem:[%s238 + $0x5e0] sm:$0xff]
        %v762 = vld [vmem:[%s238 + $0x5e8] sm:$0xff]
        %v763 = vld [vmem:[%s238 + $0x5f0] sm:$0xff]
        %v764 = vld [vmem:[%s238 + $0x5f8] sm:$0xff]
        %v765 = vld [vmem:[%s238 + $0x600] sm:$0xff]
        %v766 = vld [vmem:[%s238 + $0x608] sm:$0xff]
        %v767 = vld [vmem:[%s238 + $0x610] sm:$0xff]
        %v768 = vld [vmem:[%s238 + $0x618] sm:$0xff]
        %v769 = vld [vmem:[%s238 + $0x620] sm:$0xff]
        %v770 = vld [vmem:[%s238 + $0x628] sm:$0xff]
        %v771 = vld [vmem:[%s238 + $0x630] sm:$0xff]
        %v772 = vld [vmem:[%s238 + $0x638] sm:$0xff]
        %v773 = vld [vmem:[%s238 + $0x640] sm:$0xff]
        %v774 = vld [vmem:[%s238 + $0x648] sm:$0xff]
        %v775 = vld [vmem:[%s238 + $0x650] sm:$0xff]
        %v776 = vld [vmem:[%s238 + $0x658] sm:$0xff]
        %v777 = vld [vmem:[%s238 + $0x660] sm:$0xff]
        %v778 = vld [vmem:[%s238 + $0x668] sm:$0xff]
        %v779 = vld [vmem:[%s238 + $0x670] sm:$0xff]
        %v780 = vld [vmem:[%s238 + $0x678] sm:$0xff]
        %v781 = vld [vmem:[%s238 + $0x680] sm:$0xff]
        %v782 = vld [vmem:[%s238 + $0x688] sm:$0xff]
        %v783 = vld [vmem:[%s238 + $0x690] sm:$0xff]
        %v784 = vld [vmem:[%s238 + $0x698] sm:$0xff]
        %v785 = vld [vmem:[%s238 + $0x6a0] sm:$0xff]
        %v786 = vld [vmem:[%s238 + $0x6a8] sm:$0xff]
        %v787 = vld [vmem:[%s238 + $0x6b0] sm:$0xff]
        %v788 = vld [vmem:[%s238 + $0x6b8] sm:$0xff]
        %v789 = vld [vmem:[%s238 + $0x6c0] sm:$0xff]
        %v790 = vld [vmem:[%s238 + $0x6c8] sm:$0xff]
        %v791 = vld [vmem:[%s238 + $0x6d0] sm:$0xff]
        %v792 = vld [vmem:[%s238 + $0x6d8] sm:$0xff]
        %v793 = vld [vmem:[%s238 + $0x6e0] sm:$0xff]
        %v794 = vld [vmem:[%s238 + $0x6e8] sm:$0xff]
        %v795 = vld [vmem:[%s238 + $0x6f0] sm:$0xff]
        %v796 = vld [vmem:[%s238 + $0x6f8] sm:$0xff]
        %v797 = vld [vmem:[%s238 + $0x700] sm:$0xff]
        %v798 = vld [vmem:[%s238 + $0x708] sm:$0xff]
        %v799 = vld [vmem:[%s238 + $0x710] sm:$0xff]
        %v800 = vld [vmem:[%s238 + $0x718] sm:$0xff]
        %v801 = vld [vmem:[%s238 + $0x720] sm:$0xff]
        %v802 = vld [vmem:[%s238 + $0x728] sm:$0xff]
        %v803 = vld [vmem:[%s238 + $0x730] sm:$0xff]
        %v804 = vld [vmem:[%s238 + $0x738] sm:$0xff]
        %v805 = vld [vmem:[%s238 + $0x740] sm:$0xff]
        %v806 = vld [vmem:[%s238 + $0x748] sm:$0xff]
        %v807 = vld [vmem:[%s238 + $0x750] sm:$0xff]
        %v808 = vld [vmem:[%s238 + $0x758] sm:$0xff]
        %v809 = vld [vmem:[%s238 + $0x760] sm:$0xff]
        %v810 = vld [vmem:[%s238 + $0x768] sm:$0xff]
        %v811 = vld [vmem:[%s238 + $0x770] sm:$0xff]
        %v812 = vld [vmem:[%s238 + $0x778] sm:$0xff]
        %v813 = vld [vmem:[%s238 + $0x780] sm:$0xff]
        %v814 = vld [vmem:[%s238 + $0x788] sm:$0xff]
        %v815 = vld [vmem:[%s238 + $0x790] sm:$0xff]
        %v816 = vld [vmem:[%s238 + $0x798] sm:$0xff]
        %v817 = vld [vmem:[%s238 + $0x7a0] sm:$0xff]
        %v818 = vld [vmem:[%s238 + $0x7a8] sm:$0xff]
        %v819 = vld [vmem:[%s238 + $0x7b0] sm:$0xff]
        %v820 = vld [vmem:[%s238 + $0x7b8] sm:$0xff]
        %v821 = vld [vmem:[%s238 + $0x7c0] sm:$0xff]
        %v822 = vld [vmem:[%s238 + $0x7c8] sm:$0xff]
        %v823 = vld [vmem:[%s238 + $0x7d0] sm:$0xff]
        %v824 = vld [vmem:[%s238 + $0x7d8] sm:$0xff]
        %v825 = vld [vmem:[%s238 + $0x7e0] sm:$0xff]
        %v826 = vld [vmem:[%s238 + $0x7e8] sm:$0xff]
        %v827 = vld [vmem:[%s238 + $0x7f0] sm:$0xff]
        %v828 = vld [vmem:[%s238 + $0x7f8] sm:$0xff]
        %v829 = vld [vmem:[%s238 + $0x800] sm:$0xff]
        %v830 = vld [vmem:[%s238 + $0x808] sm:$0xff]
        %v831 = vld [vmem:[%s238 + $0x810] sm:$0xff]
        %v832 = vld [vmem:[%s238 + $0x818] sm:$0xff]
        %v833 = vld [vmem:[%s238 + $0x820] sm:$0xff]
        %v834 = vld [vmem:[%s238 + $0x828] sm:$0xff]
        %v835 = vld [vmem:[%s238 + $0x830] sm:$0xff]
        %v836 = vld [vmem:[%s238 + $0x838] sm:$0xff]
        %v837 = vld [vmem:[%s238 + $0x840] sm:$0xff]
        %v838 = vld [vmem:[%s238 + $0x848] sm:$0xff]
        %v839 = vld [vmem:[%s238 + $0x850] sm:$0xff]
        %v840 = vld [vmem:[%s238 + $0x858] sm:$0xff]
        %v841 = vld [vmem:[%s238 + $0x860] sm:$0xff]
        %v842 = vld [vmem:[%s238 + $0x868] sm:$0xff]
        %v843 = vld [vmem:[%s238 + $0x870] sm:$0xff]
        %v844 = vld [vmem:[%s238 + $0x878] sm:$0xff]
        %v845 = vld [vmem:[%s238 + $0x880] sm:$0xff]
        %v846 = vld [vmem:[%s238 + $0x888] sm:$0xff]
        %v847 = vld [vmem:[%s238 + $0x890] sm:$0xff]
        %v848 = vld [vmem:[%s238 + $0x898] sm:$0xff]
        %v849 = vld [vmem:[%s238 + $0x8a0] sm:$0xff]
        %v850 = vld [vmem:[%s238 + $0x8a8] sm:$0xff]
        %v851 = vld [vmem:[%s238 + $0x8b0] sm:$0xff]
        %v852 = vld [vmem:[%s238 + $0x8b8] sm:$0xff]
        %v853 = vld [vmem:[%s238 + $0x8c0] sm:$0xff]
        %v854 = vld [vmem:[%s238 + $0x8c8] sm:$0xff]
        %v855 = vld [vmem:[%s238 + $0x8d0] sm:$0xff]
        %v856 = vld [vmem:[%s238 + $0x8d8] sm:$0xff]
        %v857 = vld [vmem:[%s238 + $0x8e0] sm:$0xff]
        %v858 = vld [vmem:[%s238 + $0x8e8] sm:$0xff]
        %v859 = vld [vmem:[%s238 + $0x8f0] sm:$0xff]
        %v860 = vld [vmem:[%s238 + $0x8f8] sm:$0xff]
        %v861 = vld [vmem:[%s247] sm:$0x3f]
        %v863 = vlaneseq
        %v864 = vshrl.u32 %v863, 7
        %v865 = vsub.s32 0, %v864
        %v866 = vrot.slane %v861, %v865
        %v867 = vlaneseq
        %v868 = vshrl.u32 %v867, 7
        %v869 = vsub.s32 1, %v868
        %v870 = vrot.slane %v861, %v869
        %v871 = vlaneseq
        %v872 = vshrl.u32 %v871, 7
        %v873 = vsub.s32 2, %v872
        %v874 = vrot.slane %v861, %v873
        %v875 = vlaneseq
        %v876 = vshrl.u32 %v875, 7
        %v877 = vsub.s32 3, %v876
        %v878 = vrot.slane %v861, %v877
        %v879 = vlaneseq
        %v880 = vshrl.u32 %v879, 7
        %v881 = vsub.s32 4, %v880
        %v882 = vrot.slane %v861, %v881
        %v883 = vlaneseq
        %v884 = vshrl.u32 %v883, 7
        %v885 = vsub.s32 5, %v884
        %v886 = vrot.slane %v861, %v885
        %v1181 = vunpack.c.l.b16 %v573
        %v1182 = vunpack.c.h.b16 %v573
        %v1183 = vunpack.c.l.b16 %v574
        %v1184 = vunpack.c.h.b16 %v574
        %v1185 = vunpack.c.l.b16 %v575
        %v1186 = vunpack.c.h.b16 %v575
        %v1187 = vunpack.c.l.b16 %v576
        %v1188 = vunpack.c.h.b16 %v576
        %v1189 = vunpack.c.l.b16 %v577
        %v1190 = vunpack.c.h.b16 %v577
        %v1191 = vunpack.c.l.b16 %v578
        %v1192 = vunpack.c.h.b16 %v578
        %v1193 = vunpack.c.l.b16 %v579
        %v1194 = vunpack.c.h.b16 %v579
        %v1195 = vunpack.c.l.b16 %v580
        %v1196 = vunpack.c.h.b16 %v580
        %v1197 = vunpack.c.l.b16 %v581
        %v1198 = vunpack.c.h.b16 %v581
        %v1199 = vunpack.c.l.b16 %v582
        %v1200 = vunpack.c.h.b16 %v582
        %v1201 = vunpack.c.l.b16 %v583
        %v1202 = vunpack.c.h.b16 %v583
        %v1203 = vunpack.c.l.b16 %v584
        %v1204 = vunpack.c.h.b16 %v584
        %v1205 = vunpack.c.l.b16 %v585
        %v1206 = vunpack.c.h.b16 %v585
        %v1207 = vunpack.c.l.b16 %v586
        %v1208 = vunpack.c.h.b16 %v586
        %v1209 = vunpack.c.l.b16 %v587
        %v1210 = vunpack.c.h.b16 %v587
        %v1211 = vunpack.c.l.b16 %v588
        %v1212 = vunpack.c.h.b16 %v588
        %v1213 = vunpack.c.l.b16 %v589
        %v1214 = vunpack.c.h.b16 %v589
        %v1215 = vunpack.c.l.b16 %v590
        %v1216 = vunpack.c.h.b16 %v590
        %v1217 = vunpack.c.l.b16 %v591
        %v1218 = vunpack.c.h.b16 %v591
        %v1219 = vunpack.c.l.b16 %v592
        %v1220 = vunpack.c.h.b16 %v592
        %v1221 = vunpack.c.l.b16 %v593
        %v1222 = vunpack.c.h.b16 %v593
        %v1223 = vunpack.c.l.b16 %v594
        %v1224 = vunpack.c.h.b16 %v594
        %v1225 = vunpack.c.l.b16 %v595
        %v1226 = vunpack.c.h.b16 %v595
        %v1227 = vunpack.c.l.b16 %v596
        %v1228 = vunpack.c.h.b16 %v596
        %v1229 = vunpack.c.l.b16 %v597
        %v1230 = vunpack.c.h.b16 %v597
        %v1231 = vunpack.c.l.b16 %v598
        %v1232 = vunpack.c.h.b16 %v598
        %v1233 = vunpack.c.l.b16 %v599
        %v1234 = vunpack.c.h.b16 %v599
        %v1235 = vunpack.c.l.b16 %v600
        %v1236 = vunpack.c.h.b16 %v600
        %v1237 = vunpack.c.l.b16 %v601
        %v1238 = vunpack.c.h.b16 %v601
        %v1239 = vunpack.c.l.b16 %v602
        %v1240 = vunpack.c.h.b16 %v602
        %v1241 = vunpack.c.l.b16 %v603
        %v1242 = vunpack.c.h.b16 %v603
        %v1243 = vunpack.c.l.b16 %v604
        %v1244 = vunpack.c.h.b16 %v604
        %v1245 = vunpack.c.l.b16 %v605
        %v1246 = vunpack.c.h.b16 %v605
        %v1247 = vunpack.c.l.b16 %v606
        %v1248 = vunpack.c.h.b16 %v606
        %v1249 = vunpack.c.l.b16 %v607
        %v1250 = vunpack.c.h.b16 %v607
        %v1251 = vunpack.c.l.b16 %v608
        %v1252 = vunpack.c.h.b16 %v608
        %v1253 = vunpack.c.l.b16 %v609
        %v1254 = vunpack.c.h.b16 %v609
        %v1255 = vunpack.c.l.b16 %v610
        %v1256 = vunpack.c.h.b16 %v610
        %v1257 = vunpack.c.l.b16 %v611
        %v1258 = vunpack.c.h.b16 %v611
        %v1259 = vunpack.c.l.b16 %v612
        %v1260 = vunpack.c.h.b16 %v612
        %v1261 = vunpack.c.l.b16 %v613
        %v1262 = vunpack.c.h.b16 %v613
        %v1263 = vunpack.c.l.b16 %v614
        %v1264 = vunpack.c.h.b16 %v614
        %v1265 = vunpack.c.l.b16 %v615
        %v1266 = vunpack.c.h.b16 %v615
        %v1267 = vunpack.c.l.b16 %v616
        %v1268 = vunpack.c.h.b16 %v616
        %v1269 = vunpack.c.l.b16 %v617
        %v1270 = vunpack.c.h.b16 %v617
        %v1271 = vunpack.c.l.b16 %v618
        %v1272 = vunpack.c.h.b16 %v618
        %v1273 = vunpack.c.l.b16 %v619
        %v1274 = vunpack.c.h.b16 %v619
        %v1275 = vunpack.c.l.b16 %v620
        %v1276 = vunpack.c.h.b16 %v620
        %v1277 = vunpack.c.l.b16 %v621
        %v1278 = vunpack.c.h.b16 %v621
        %v1279 = vunpack.c.l.b16 %v622
        %v1280 = vunpack.c.h.b16 %v622
        %v1281 = vunpack.c.l.b16 %v623
        %v1282 = vunpack.c.h.b16 %v623
        %v1283 = vunpack.c.l.b16 %v624
        %v1284 = vunpack.c.h.b16 %v624
        %v1285 = vunpack.c.l.b16 %v625
        %v1286 = vunpack.c.h.b16 %v625
        %v1287 = vunpack.c.l.b16 %v626
        %v1288 = vunpack.c.h.b16 %v626
        %v1289 = vunpack.c.l.b16 %v627
        %v1290 = vunpack.c.h.b16 %v627
        %v1291 = vunpack.c.l.b16 %v628
        %v1292 = vunpack.c.h.b16 %v628
        %v1293 = vunpack.c.l.b16 %v629
        %v1294 = vunpack.c.h.b16 %v629
        %v1295 = vunpack.c.l.b16 %v630
        %v1296 = vunpack.c.h.b16 %v630
        %v1297 = vunpack.c.l.b16 %v631
        %v1298 = vunpack.c.h.b16 %v631
        %v1299 = vunpack.c.l.b16 %v632
        %v1300 = vunpack.c.h.b16 %v632
        %v1301 = vunpack.c.l.b16 %v633
        %v1302 = vunpack.c.h.b16 %v633
        %v1303 = vunpack.c.l.b16 %v634
        %v1304 = vunpack.c.h.b16 %v634
        %v1305 = vunpack.c.l.b16 %v635
        %v1306 = vunpack.c.h.b16 %v635
        %v1307 = vunpack.c.l.b16 %v636
        %v1308 = vunpack.c.h.b16 %v636
        %v1309 = vunpack.c.l.b16 %v637
        %v1310 = vunpack.c.h.b16 %v637
        %v1311 = vunpack.c.l.b16 %v638
        %v1312 = vunpack.c.h.b16 %v638
        %v1313 = vunpack.c.l.b16 %v639
        %v1314 = vunpack.c.h.b16 %v639
        %v1315 = vunpack.c.l.b16 %v640
        %v1316 = vunpack.c.h.b16 %v640
        %v1317 = vunpack.c.l.b16 %v641
        %v1318 = vunpack.c.h.b16 %v641
        %v1319 = vunpack.c.l.b16 %v642
        %v1320 = vunpack.c.h.b16 %v642
        %v1321 = vunpack.c.l.b16 %v643
        %v1322 = vunpack.c.h.b16 %v643
        %v1323 = vunpack.c.l.b16 %v644
        %v1324 = vunpack.c.h.b16 %v644
        %v1325 = vunpack.c.l.b16 %v645
        %v1326 = vunpack.c.h.b16 %v645
        %v1327 = vunpack.c.l.b16 %v646
        %v1328 = vunpack.c.h.b16 %v646
        %v1329 = vunpack.c.l.b16 %v647
        %v1330 = vunpack.c.h.b16 %v647
        %v1331 = vunpack.c.l.b16 %v648
        %v1332 = vunpack.c.h.b16 %v648
        %v1333 = vunpack.c.l.b16 %v649
        %v1334 = vunpack.c.h.b16 %v649
        %v1335 = vunpack.c.l.b16 %v650
        %v1336 = vunpack.c.h.b16 %v650
        %v1337 = vunpack.c.l.b16 %v651
        %v1338 = vunpack.c.h.b16 %v651
        %v1339 = vunpack.c.l.b16 %v652
        %v1340 = vunpack.c.h.b16 %v652
        %v1341 = vunpack.c.l.b16 %v653
        %v1342 = vunpack.c.h.b16 %v653
        %v1343 = vunpack.c.l.b16 %v654
        %v1344 = vunpack.c.h.b16 %v654
        %v1345 = vunpack.c.l.b16 %v655
        %v1346 = vunpack.c.h.b16 %v655
        %v1347 = vunpack.c.l.b16 %v656
        %v1348 = vunpack.c.h.b16 %v656
        %v1349 = vunpack.c.l.b16 %v657
        %v1350 = vunpack.c.h.b16 %v657
        %v1351 = vunpack.c.l.b16 %v658
        %v1352 = vunpack.c.h.b16 %v658
        %v1353 = vunpack.c.l.b16 %v659
        %v1354 = vunpack.c.h.b16 %v659
        %v1355 = vunpack.c.l.b16 %v660
        %v1356 = vunpack.c.h.b16 %v660
        %v1357 = vunpack.c.l.b16 %v661
        %v1358 = vunpack.c.h.b16 %v661
        %v1359 = vunpack.c.l.b16 %v662
        %v1360 = vunpack.c.h.b16 %v662
        %v1361 = vunpack.c.l.b16 %v663
        %v1362 = vunpack.c.h.b16 %v663
        %v1363 = vunpack.c.l.b16 %v664
        %v1364 = vunpack.c.h.b16 %v664
        %v1365 = vunpack.c.l.b16 %v665
        %v1366 = vunpack.c.h.b16 %v665
        %v1367 = vunpack.c.l.b16 %v666
        %v1368 = vunpack.c.h.b16 %v666
        %v1369 = vunpack.c.l.b16 %v667
        %v1370 = vunpack.c.h.b16 %v667
        %v1371 = vunpack.c.l.b16 %v668
        %v1372 = vunpack.c.h.b16 %v668
        %v1373 = vunpack.c.l.b16 %v669
        %v1374 = vunpack.c.h.b16 %v669
        %v1375 = vunpack.c.l.b16 %v670
        %v1376 = vunpack.c.h.b16 %v670
        %v1377 = vunpack.c.l.b16 %v671
        %v1378 = vunpack.c.h.b16 %v671
        %v1379 = vunpack.c.l.b16 %v672
        %v1380 = vunpack.c.h.b16 %v672
        %v1381 = vunpack.c.l.b16 %v673
        %v1382 = vunpack.c.h.b16 %v673
        %v1383 = vunpack.c.l.b16 %v674
        %v1384 = vunpack.c.h.b16 %v674
        %v1385 = vunpack.c.l.b16 %v675
        %v1386 = vunpack.c.h.b16 %v675
        %v1387 = vunpack.c.l.b16 %v676
        %v1388 = vunpack.c.h.b16 %v676
        %v1389 = vunpack.c.l.b16 %v677
        %v1390 = vunpack.c.h.b16 %v677
        %v1391 = vunpack.c.l.b16 %v678
        %v1392 = vunpack.c.h.b16 %v678
        %v1393 = vunpack.c.l.b16 %v679
        %v1394 = vunpack.c.h.b16 %v679
        %v1395 = vunpack.c.l.b16 %v680
        %v1396 = vunpack.c.h.b16 %v680
        %v1397 = vunpack.c.l.b16 %v681
        %v1398 = vunpack.c.h.b16 %v681
        %v1399 = vunpack.c.l.b16 %v682
        %v1400 = vunpack.c.h.b16 %v682
        %v1401 = vunpack.c.l.b16 %v683
        %v1402 = vunpack.c.h.b16 %v683
        %v1403 = vunpack.c.l.b16 %v684
        %v1404 = vunpack.c.h.b16 %v684
        %v1405 = vunpack.c.l.b16 %v685
        %v1406 = vunpack.c.h.b16 %v685
        %v1407 = vunpack.c.l.b16 %v686
        %v1408 = vunpack.c.h.b16 %v686
        %v1409 = vunpack.c.l.b16 %v687
        %v1410 = vunpack.c.h.b16 %v687
        %v1411 = vunpack.c.l.b16 %v688
        %v1412 = vunpack.c.h.b16 %v688
        %v1413 = vunpack.c.l.b16 %v689
        %v1414 = vunpack.c.h.b16 %v689
        %v1415 = vunpack.c.l.b16 %v690
        %v1416 = vunpack.c.h.b16 %v690
        %v1417 = vunpack.c.l.b16 %v691
        %v1418 = vunpack.c.h.b16 %v691
        %v1419 = vunpack.c.l.b16 %v692
        %v1420 = vunpack.c.h.b16 %v692
        %v1421 = vunpack.c.l.b16 %v693
        %v1422 = vunpack.c.h.b16 %v693
        %v1423 = vunpack.c.l.b16 %v694
        %v1424 = vunpack.c.h.b16 %v694
        %v1425 = vunpack.c.l.b16 %v695
        %v1426 = vunpack.c.h.b16 %v695
        %v1427 = vunpack.c.l.b16 %v696
        %v1428 = vunpack.c.h.b16 %v696
        %v1429 = vunpack.c.l.b16 %v697
        %v1430 = vunpack.c.h.b16 %v697
        %v1431 = vunpack.c.l.b16 %v698
        %v1432 = vunpack.c.h.b16 %v698
        %v1433 = vunpack.c.l.b16 %v699
        %v1434 = vunpack.c.h.b16 %v699
        %v1435 = vunpack.c.l.b16 %v700
        %v1436 = vunpack.c.h.b16 %v700
        %v1437 = vunpack.c.l.b16 %v701
        %v1438 = vunpack.c.h.b16 %v701
        %v1439 = vunpack.c.l.b16 %v702
        %v1440 = vunpack.c.h.b16 %v702
        %v1441 = vunpack.c.l.b16 %v703
        %v1442 = vunpack.c.h.b16 %v703
        %v1443 = vunpack.c.l.b16 %v704
        %v1444 = vunpack.c.h.b16 %v704
        %v1445 = vunpack.c.l.b16 %v705
        %v1446 = vunpack.c.h.b16 %v705
        %v1447 = vunpack.c.l.b16 %v706
        %v1448 = vunpack.c.h.b16 %v706
        %v1449 = vunpack.c.l.b16 %v707
        %v1450 = vunpack.c.h.b16 %v707
        %v1451 = vunpack.c.l.b16 %v708
        %v1452 = vunpack.c.h.b16 %v708
        %v1453 = vunpack.c.l.b16 %v709
        %v1454 = vunpack.c.h.b16 %v709
        %v1455 = vunpack.c.l.b16 %v710
        %v1456 = vunpack.c.h.b16 %v710
        %v1457 = vunpack.c.l.b16 %v711
        %v1458 = vunpack.c.h.b16 %v711
        %v1459 = vunpack.c.l.b16 %v712
        %v1460 = vunpack.c.h.b16 %v712
        %v1461 = vunpack.c.l.b16 %v713
        %v1462 = vunpack.c.h.b16 %v713
        %v1463 = vunpack.c.l.b16 %v714
        %v1464 = vunpack.c.h.b16 %v714
        %v1465 = vunpack.c.l.b16 %v715
        %v1466 = vunpack.c.h.b16 %v715
        %v1467 = vunpack.c.l.b16 %v716
        %v1468 = vunpack.c.h.b16 %v716
        %v1469 = vunpack.c.l.b16 %v717
        %v1470 = vunpack.c.h.b16 %v717
        %v1471 = vunpack.c.l.b16 %v718
        %v1472 = vunpack.c.h.b16 %v718
        %v1473 = vunpack.c.l.b16 %v719
        %v1474 = vunpack.c.h.b16 %v719
        %v1475 = vunpack.c.l.b16 %v720
        %v1476 = vunpack.c.h.b16 %v720
        %v1477 = vunpack.c.l.b16 %v721
        %v1478 = vunpack.c.h.b16 %v721
        %v1479 = vunpack.c.l.b16 %v722
        %v1480 = vunpack.c.h.b16 %v722
        %v1481 = vunpack.c.l.b16 %v723
        %v1482 = vunpack.c.h.b16 %v723
        %v1483 = vunpack.c.l.b16 %v724
        %v1484 = vunpack.c.h.b16 %v724
        %v1485 = vunpack.c.l.b16 %v725
        %v1486 = vunpack.c.h.b16 %v725
        %v1487 = vunpack.c.l.b16 %v726
        %v1488 = vunpack.c.h.b16 %v726
        %v1489 = vunpack.c.l.b16 %v727
        %v1490 = vunpack.c.h.b16 %v727
        %v1491 = vunpack.c.l.b16 %v728
        %v1492 = vunpack.c.h.b16 %v728
        %v1493 = vunpack.c.l.b16 %v729
        %v1494 = vunpack.c.h.b16 %v729
        %v1495 = vunpack.c.l.b16 %v730
        %v1496 = vunpack.c.h.b16 %v730
        %v1497 = vunpack.c.l.b16 %v731
        %v1498 = vunpack.c.h.b16 %v731
        %v1499 = vunpack.c.l.b16 %v732
        %v1500 = vunpack.c.h.b16 %v732
        %v1501 = vunpack.c.l.b16 %v733
        %v1502 = vunpack.c.h.b16 %v733
        %v1503 = vunpack.c.l.b16 %v734
        %v1504 = vunpack.c.h.b16 %v734
        %v1505 = vunpack.c.l.b16 %v735
        %v1506 = vunpack.c.h.b16 %v735
        %v1507 = vunpack.c.l.b16 %v736
        %v1508 = vunpack.c.h.b16 %v736
        %v1509 = vunpack.c.l.b16 %v737
        %v1510 = vunpack.c.h.b16 %v737
        %v1511 = vunpack.c.l.b16 %v738
        %v1512 = vunpack.c.h.b16 %v738
        %v1513 = vunpack.c.l.b16 %v739
        %v1514 = vunpack.c.h.b16 %v739
        %v1515 = vunpack.c.l.b16 %v740
        %v1516 = vunpack.c.h.b16 %v740
        %v1517 = vunpack.c.l.b16 %v741
        %v1518 = vunpack.c.h.b16 %v741
        %v1519 = vunpack.c.l.b16 %v742
        %v1520 = vunpack.c.h.b16 %v742
        %v1521 = vunpack.c.l.b16 %v743
        %v1522 = vunpack.c.h.b16 %v743
        %v1523 = vunpack.c.l.b16 %v744
        %v1524 = vunpack.c.h.b16 %v744
        %v1525 = vunpack.c.l.b16 %v745
        %v1526 = vunpack.c.h.b16 %v745
        %v1527 = vunpack.c.l.b16 %v746
        %v1528 = vunpack.c.h.b16 %v746
        %v1529 = vunpack.c.l.b16 %v747
        %v1530 = vunpack.c.h.b16 %v747
        %v1531 = vunpack.c.l.b16 %v748
        %v1532 = vunpack.c.h.b16 %v748
        %v1533 = vunpack.c.l.b16 %v749
        %v1534 = vunpack.c.h.b16 %v749
        %v1535 = vunpack.c.l.b16 %v750
        %v1536 = vunpack.c.h.b16 %v750
        %v1537 = vunpack.c.l.b16 %v751
        %v1538 = vunpack.c.h.b16 %v751
        %v1539 = vunpack.c.l.b16 %v752
        %v1540 = vunpack.c.h.b16 %v752
        %v1541 = vunpack.c.l.b16 %v753
        %v1542 = vunpack.c.h.b16 %v753
        %v1543 = vunpack.c.l.b16 %v754
        %v1544 = vunpack.c.h.b16 %v754
        %v1545 = vunpack.c.l.b16 %v755
        %v1546 = vunpack.c.h.b16 %v755
        %v1547 = vunpack.c.l.b16 %v756
        %v1548 = vunpack.c.h.b16 %v756
        %v1549 = vunpack.c.l.b16 %v757
        %v1550 = vunpack.c.h.b16 %v757
        %v1551 = vunpack.c.l.b16 %v758
        %v1552 = vunpack.c.h.b16 %v758
        %v1553 = vunpack.c.l.b16 %v759
        %v1554 = vunpack.c.h.b16 %v759
        %v1555 = vunpack.c.l.b16 %v760
        %v1556 = vunpack.c.h.b16 %v760
        %v1557 = vunpack.c.l.b16 %v761
        %v1558 = vunpack.c.h.b16 %v761
        %v1559 = vunpack.c.l.b16 %v762
        %v1560 = vunpack.c.h.b16 %v762
        %v1561 = vunpack.c.l.b16 %v763
        %v1562 = vunpack.c.h.b16 %v763
        %v1563 = vunpack.c.l.b16 %v764
        %v1564 = vunpack.c.h.b16 %v764
        %v1565 = vunpack.c.l.b16 %v765
        %v1566 = vunpack.c.h.b16 %v765
        %v1567 = vunpack.c.l.b16 %v766
        %v1568 = vunpack.c.h.b16 %v766
        %v1569 = vunpack.c.l.b16 %v767
        %v1570 = vunpack.c.h.b16 %v767
        %v1571 = vunpack.c.l.b16 %v768
        %v1572 = vunpack.c.h.b16 %v768
        %v1573 = vunpack.c.l.b16 %v769
        %v1574 = vunpack.c.h.b16 %v769
        %v1575 = vunpack.c.l.b16 %v770
        %v1576 = vunpack.c.h.b16 %v770
        %v1577 = vunpack.c.l.b16 %v771
        %v1578 = vunpack.c.h.b16 %v771
        %v1579 = vunpack.c.l.b16 %v772
        %v1580 = vunpack.c.h.b16 %v772
        %v1581 = vunpack.c.l.b16 %v773
        %v1582 = vunpack.c.h.b16 %v773
        %v1583 = vunpack.c.l.b16 %v774
        %v1584 = vunpack.c.h.b16 %v774
        %v1585 = vunpack.c.l.b16 %v775
        %v1586 = vunpack.c.h.b16 %v775
        %v1587 = vunpack.c.l.b16 %v776
        %v1588 = vunpack.c.h.b16 %v776
        %v1589 = vunpack.c.l.b16 %v777
        %v1590 = vunpack.c.h.b16 %v777
        %v1591 = vunpack.c.l.b16 %v778
        %v1592 = vunpack.c.h.b16 %v778
        %v1593 = vunpack.c.l.b16 %v779
        %v1594 = vunpack.c.h.b16 %v779
        %v1595 = vunpack.c.l.b16 %v780
        %v1596 = vunpack.c.h.b16 %v780
        %v1597 = vunpack.c.l.b16 %v781
        %v1598 = vunpack.c.h.b16 %v781
        %v1599 = vunpack.c.l.b16 %v782
        %v1600 = vunpack.c.h.b16 %v782
        %v1601 = vunpack.c.l.b16 %v783
        %v1602 = vunpack.c.h.b16 %v783
        %v1603 = vunpack.c.l.b16 %v784
        %v1604 = vunpack.c.h.b16 %v784
        %v1605 = vunpack.c.l.b16 %v785
        %v1606 = vunpack.c.h.b16 %v785
        %v1607 = vunpack.c.l.b16 %v786
        %v1608 = vunpack.c.h.b16 %v786
        %v1609 = vunpack.c.l.b16 %v787
        %v1610 = vunpack.c.h.b16 %v787
        %v1611 = vunpack.c.l.b16 %v788
        %v1612 = vunpack.c.h.b16 %v788
        %v1613 = vunpack.c.l.b16 %v789
        %v1614 = vunpack.c.h.b16 %v789
        %v1615 = vunpack.c.l.b16 %v790
        %v1616 = vunpack.c.h.b16 %v790
        %v1617 = vunpack.c.l.b16 %v791
        %v1618 = vunpack.c.h.b16 %v791
        %v1619 = vunpack.c.l.b16 %v792
        %v1620 = vunpack.c.h.b16 %v792
        %v1621 = vunpack.c.l.b16 %v793
        %v1622 = vunpack.c.h.b16 %v793
        %v1623 = vunpack.c.l.b16 %v794
        %v1624 = vunpack.c.h.b16 %v794
        %v1625 = vunpack.c.l.b16 %v795
        %v1626 = vunpack.c.h.b16 %v795
        %v1627 = vunpack.c.l.b16 %v796
        %v1628 = vunpack.c.h.b16 %v796
        %v1629 = vunpack.c.l.b16 %v797
        %v1630 = vunpack.c.h.b16 %v797
        %v1631 = vunpack.c.l.b16 %v798
        %v1632 = vunpack.c.h.b16 %v798
        %v1633 = vunpack.c.l.b16 %v799
        %v1634 = vunpack.c.h.b16 %v799
        %v1635 = vunpack.c.l.b16 %v800
        %v1636 = vunpack.c.h.b16 %v800
        %v1637 = vunpack.c.l.b16 %v801
        %v1638 = vunpack.c.h.b16 %v801
        %v1639 = vunpack.c.l.b16 %v802
        %v1640 = vunpack.c.h.b16 %v802
        %v1641 = vunpack.c.l.b16 %v803
        %v1642 = vunpack.c.h.b16 %v803
        %v1643 = vunpack.c.l.b16 %v804
        %v1644 = vunpack.c.h.b16 %v804
        %v1645 = vunpack.c.l.b16 %v805
        %v1646 = vunpack.c.h.b16 %v805
        %v1647 = vunpack.c.l.b16 %v806
        %v1648 = vunpack.c.h.b16 %v806
        %v1649 = vunpack.c.l.b16 %v807
        %v1650 = vunpack.c.h.b16 %v807
        %v1651 = vunpack.c.l.b16 %v808
        %v1652 = vunpack.c.h.b16 %v808
        %v1653 = vunpack.c.l.b16 %v809
        %v1654 = vunpack.c.h.b16 %v809
        %v1655 = vunpack.c.l.b16 %v810
        %v1656 = vunpack.c.h.b16 %v810
        %v1657 = vunpack.c.l.b16 %v811
        %v1658 = vunpack.c.h.b16 %v811
        %v1659 = vunpack.c.l.b16 %v812
        %v1660 = vunpack.c.h.b16 %v812
        %v1661 = vunpack.c.l.b16 %v813
        %v1662 = vunpack.c.h.b16 %v813
        %v1663 = vunpack.c.l.b16 %v814
        %v1664 = vunpack.c.h.b16 %v814
        %v1665 = vunpack.c.l.b16 %v815
        %v1666 = vunpack.c.h.b16 %v815
        %v1667 = vunpack.c.l.b16 %v816
        %v1668 = vunpack.c.h.b16 %v816
        %v1669 = vunpack.c.l.b16 %v817
        %v1670 = vunpack.c.h.b16 %v817
        %v1671 = vunpack.c.l.b16 %v818
        %v1672 = vunpack.c.h.b16 %v818
        %v1673 = vunpack.c.l.b16 %v819
        %v1674 = vunpack.c.h.b16 %v819
        %v1675 = vunpack.c.l.b16 %v820
        %v1676 = vunpack.c.h.b16 %v820
        %v1677 = vunpack.c.l.b16 %v821
        %v1678 = vunpack.c.h.b16 %v821
        %v1679 = vunpack.c.l.b16 %v822
        %v1680 = vunpack.c.h.b16 %v822
        %v1681 = vunpack.c.l.b16 %v823
        %v1682 = vunpack.c.h.b16 %v823
        %v1683 = vunpack.c.l.b16 %v824
        %v1684 = vunpack.c.h.b16 %v824
        %v1685 = vunpack.c.l.b16 %v825
        %v1686 = vunpack.c.h.b16 %v825
        %v1687 = vunpack.c.l.b16 %v826
        %v1688 = vunpack.c.h.b16 %v826
        %v1689 = vunpack.c.l.b16 %v827
        %v1690 = vunpack.c.h.b16 %v827
        %v1691 = vunpack.c.l.b16 %v828
        %v1692 = vunpack.c.h.b16 %v828
        %v1693 = vunpack.c.l.b16 %v829
        %v1694 = vunpack.c.h.b16 %v829
        %v1695 = vunpack.c.l.b16 %v830
        %v1696 = vunpack.c.h.b16 %v830
        %v1697 = vunpack.c.l.b16 %v831
        %v1698 = vunpack.c.h.b16 %v831
        %v1699 = vunpack.c.l.b16 %v832
        %v1700 = vunpack.c.h.b16 %v832
        %v1701 = vunpack.c.l.b16 %v833
        %v1702 = vunpack.c.h.b16 %v833
        %v1703 = vunpack.c.l.b16 %v834
        %v1704 = vunpack.c.h.b16 %v834
        %v1705 = vunpack.c.l.b16 %v835
        %v1706 = vunpack.c.h.b16 %v835
        %v1707 = vunpack.c.l.b16 %v836
        %v1708 = vunpack.c.h.b16 %v836
        %v1709 = vunpack.c.l.b16 %v837
        %v1710 = vunpack.c.h.b16 %v837
        %v1711 = vunpack.c.l.b16 %v838
        %v1712 = vunpack.c.h.b16 %v838
        %v1713 = vunpack.c.l.b16 %v839
        %v1714 = vunpack.c.h.b16 %v839
        %v1715 = vunpack.c.l.b16 %v840
        %v1716 = vunpack.c.h.b16 %v840
        %v1717 = vunpack.c.l.b16 %v841
        %v1718 = vunpack.c.h.b16 %v841
        %v1719 = vunpack.c.l.b16 %v842
        %v1720 = vunpack.c.h.b16 %v842
        %v1721 = vunpack.c.l.b16 %v843
        %v1722 = vunpack.c.h.b16 %v843
        %v1723 = vunpack.c.l.b16 %v844
        %v1724 = vunpack.c.h.b16 %v844
        %v1725 = vunpack.c.l.b16 %v845
        %v1726 = vunpack.c.h.b16 %v845
        %v1727 = vunpack.c.l.b16 %v846
        %v1728 = vunpack.c.h.b16 %v846
        %v1729 = vunpack.c.l.b16 %v847
        %v1730 = vunpack.c.h.b16 %v847
        %v1731 = vunpack.c.l.b16 %v848
        %v1732 = vunpack.c.h.b16 %v848
        %v1733 = vunpack.c.l.b16 %v849
        %v1734 = vunpack.c.h.b16 %v849
        %v1735 = vunpack.c.l.b16 %v850
        %v1736 = vunpack.c.h.b16 %v850
        %v1737 = vunpack.c.l.b16 %v851
        %v1738 = vunpack.c.h.b16 %v851
        %v1739 = vunpack.c.l.b16 %v852
        %v1740 = vunpack.c.h.b16 %v852
        %v1741 = vunpack.c.l.b16 %v853
        %v1742 = vunpack.c.h.b16 %v853
        %v1743 = vunpack.c.l.b16 %v854
        %v1744 = vunpack.c.h.b16 %v854
        %v1745 = vunpack.c.l.b16 %v855
        %v1746 = vunpack.c.h.b16 %v855
        %v1747 = vunpack.c.l.b16 %v856
        %v1748 = vunpack.c.h.b16 %v856
        %v1749 = vunpack.c.l.b16 %v857
        %v1750 = vunpack.c.h.b16 %v857
        %v1751 = vunpack.c.l.b16 %v858
        %v1752 = vunpack.c.h.b16 %v858
        %v1753 = vunpack.c.l.b16 %v859
        %v1754 = vunpack.c.h.b16 %v859
        %v1755 = vunpack.c.l.b16 %v860
        %v1756 = vunpack.c.h.b16 %v860
        %v1757 = vpack.c.b16 %v1187, %v1181
        %v1758 = vpack.c.b16 %v1188, %v1182
        %v1759 = vpack.c.b16 %v1189, %v1183
        %v1760 = vpack.c.b16 %v1190, %v1184
        %v1761 = vpack.c.b16 %v1191, %v1185
        %v1762 = vpack.c.b16 %v1192, %v1186
        %v1763 = vpack.c.b16 %v1199, %v1193
        %v1764 = vpack.c.b16 %v1200, %v1194
        %v1765 = vpack.c.b16 %v1201, %v1195
        %v1766 = vpack.c.b16 %v1202, %v1196
        %v1767 = vpack.c.b16 %v1203, %v1197
        %v1768 = vpack.c.b16 %v1204, %v1198
        %v1769 = vpack.c.b16 %v1211, %v1205
        %v1770 = vpack.c.b16 %v1212, %v1206
        %v1771 = vpack.c.b16 %v1213, %v1207
        %v1772 = vpack.c.b16 %v1214, %v1208
        %v1773 = vpack.c.b16 %v1215, %v1209
        %v1774 = vpack.c.b16 %v1216, %v1210
        %v1775 = vpack.c.b16 %v1223, %v1217
        %v1776 = vpack.c.b16 %v1224, %v1218
        %v1777 = vpack.c.b16 %v1225, %v1219
        %v1778 = vpack.c.b16 %v1226, %v1220
        %v1779 = vpack.c.b16 %v1227, %v1221
        %v1780 = vpack.c.b16 %v1228, %v1222
        %v1781 = vpack.c.b16 %v1235, %v1229
        %v1782 = vpack.c.b16 %v1236, %v1230
        %v1783 = vpack.c.b16 %v1237, %v1231
        %v1784 = vpack.c.b16 %v1238, %v1232
        %v1785 = vpack.c.b16 %v1239, %v1233
        %v1786 = vpack.c.b16 %v1240, %v1234
        %v1787 = vpack.c.b16 %v1247, %v1241
        %v1788 = vpack.c.b16 %v1248, %v1242
        %v1789 = vpack.c.b16 %v1249, %v1243
        %v1790 = vpack.c.b16 %v1250, %v1244
        %v1791 = vpack.c.b16 %v1251, %v1245
        %v1792 = vpack.c.b16 %v1252, %v1246
        %v1793 = vpack.c.b16 %v1259, %v1253
        %v1794 = vpack.c.b16 %v1260, %v1254
        %v1795 = vpack.c.b16 %v1261, %v1255
        %v1796 = vpack.c.b16 %v1262, %v1256
        %v1797 = vpack.c.b16 %v1263, %v1257
        %v1798 = vpack.c.b16 %v1264, %v1258
        %v1799 = vpack.c.b16 %v1271, %v1265
        %v1800 = vpack.c.b16 %v1272, %v1266
        %v1801 = vpack.c.b16 %v1273, %v1267
        %v1802 = vpack.c.b16 %v1274, %v1268
        %v1803 = vpack.c.b16 %v1275, %v1269
        %v1804 = vpack.c.b16 %v1276, %v1270
        %v1805 = vpack.c.b16 %v1283, %v1277
        %v1806 = vpack.c.b16 %v1284, %v1278
        %v1807 = vpack.c.b16 %v1285, %v1279
        %v1808 = vpack.c.b16 %v1286, %v1280
        %v1809 = vpack.c.b16 %v1287, %v1281
        %v1810 = vpack.c.b16 %v1288, %v1282
        %v1811 = vpack.c.b16 %v1295, %v1289
        %v1812 = vpack.c.b16 %v1296, %v1290
        %v1813 = vpack.c.b16 %v1297, %v1291
        %v1814 = vpack.c.b16 %v1298, %v1292
        %v1815 = vpack.c.b16 %v1299, %v1293
        %v1816 = vpack.c.b16 %v1300, %v1294
        %v1817 = vpack.c.b16 %v1307, %v1301
        %v1818 = vpack.c.b16 %v1308, %v1302
        %v1819 = vpack.c.b16 %v1309, %v1303
        %v1820 = vpack.c.b16 %v1310, %v1304
        %v1821 = vpack.c.b16 %v1311, %v1305
        %v1822 = vpack.c.b16 %v1312, %v1306
        %v1823 = vpack.c.b16 %v1319, %v1313
        %v1824 = vpack.c.b16 %v1320, %v1314
        %v1825 = vpack.c.b16 %v1321, %v1315
        %v1826 = vpack.c.b16 %v1322, %v1316
        %v1827 = vpack.c.b16 %v1323, %v1317
        %v1828 = vpack.c.b16 %v1324, %v1318
        %v1829 = vpack.c.b16 %v1331, %v1325
        %v1830 = vpack.c.b16 %v1332, %v1326
        %v1831 = vpack.c.b16 %v1333, %v1327
        %v1832 = vpack.c.b16 %v1334, %v1328
        %v1833 = vpack.c.b16 %v1335, %v1329
        %v1834 = vpack.c.b16 %v1336, %v1330
        %v1835 = vpack.c.b16 %v1343, %v1337
        %v1836 = vpack.c.b16 %v1344, %v1338
        %v1837 = vpack.c.b16 %v1345, %v1339
        %v1838 = vpack.c.b16 %v1346, %v1340
        %v1839 = vpack.c.b16 %v1347, %v1341
        %v1840 = vpack.c.b16 %v1348, %v1342
        %v1841 = vpack.c.b16 %v1355, %v1349
        %v1842 = vpack.c.b16 %v1356, %v1350
        %v1843 = vpack.c.b16 %v1357, %v1351
        %v1844 = vpack.c.b16 %v1358, %v1352
        %v1845 = vpack.c.b16 %v1359, %v1353
        %v1846 = vpack.c.b16 %v1360, %v1354
        %v1847 = vpack.c.b16 %v1367, %v1361
        %v1848 = vpack.c.b16 %v1368, %v1362
        %v1849 = vpack.c.b16 %v1369, %v1363
        %v1850 = vpack.c.b16 %v1370, %v1364
        %v1851 = vpack.c.b16 %v1371, %v1365
        %v1852 = vpack.c.b16 %v1372, %v1366
        %v1853 = vpack.c.b16 %v1379, %v1373
        %v1854 = vpack.c.b16 %v1380, %v1374
        %v1855 = vpack.c.b16 %v1381, %v1375
        %v1856 = vpack.c.b16 %v1382, %v1376
        %v1857 = vpack.c.b16 %v1383, %v1377
        %v1858 = vpack.c.b16 %v1384, %v1378
        %v1859 = vpack.c.b16 %v1391, %v1385
        %v1860 = vpack.c.b16 %v1392, %v1386
        %v1861 = vpack.c.b16 %v1393, %v1387
        %v1862 = vpack.c.b16 %v1394, %v1388
        %v1863 = vpack.c.b16 %v1395, %v1389
        %v1864 = vpack.c.b16 %v1396, %v1390
        %v1865 = vpack.c.b16 %v1403, %v1397
        %v1866 = vpack.c.b16 %v1404, %v1398
        %v1867 = vpack.c.b16 %v1405, %v1399
        %v1868 = vpack.c.b16 %v1406, %v1400
        %v1869 = vpack.c.b16 %v1407, %v1401
        %v1870 = vpack.c.b16 %v1408, %v1402
        %v1871 = vpack.c.b16 %v1415, %v1409
        %v1872 = vpack.c.b16 %v1416, %v1410
        %v1873 = vpack.c.b16 %v1417, %v1411
        %v1874 = vpack.c.b16 %v1418, %v1412
        %v1875 = vpack.c.b16 %v1419, %v1413
        %v1876 = vpack.c.b16 %v1420, %v1414
        %v1877 = vpack.c.b16 %v1427, %v1421
        %v1878 = vpack.c.b16 %v1428, %v1422
        %v1879 = vpack.c.b16 %v1429, %v1423
        %v1880 = vpack.c.b16 %v1430, %v1424
        %v1881 = vpack.c.b16 %v1431, %v1425
        %v1882 = vpack.c.b16 %v1432, %v1426
        %v1883 = vpack.c.b16 %v1439, %v1433
        %v1884 = vpack.c.b16 %v1440, %v1434
        %v1885 = vpack.c.b16 %v1441, %v1435
        %v1886 = vpack.c.b16 %v1442, %v1436
        %v1887 = vpack.c.b16 %v1443, %v1437
        %v1888 = vpack.c.b16 %v1444, %v1438
        %v1889 = vpack.c.b16 %v1451, %v1445
        %v1890 = vpack.c.b16 %v1452, %v1446
        %v1891 = vpack.c.b16 %v1453, %v1447
        %v1892 = vpack.c.b16 %v1454, %v1448
        %v1893 = vpack.c.b16 %v1455, %v1449
        %v1894 = vpack.c.b16 %v1456, %v1450
        %v1895 = vpack.c.b16 %v1463, %v1457
        %v1896 = vpack.c.b16 %v1464, %v1458
        %v1897 = vpack.c.b16 %v1465, %v1459
        %v1898 = vpack.c.b16 %v1466, %v1460
        %v1899 = vpack.c.b16 %v1467, %v1461
        %v1900 = vpack.c.b16 %v1468, %v1462
        %v1901 = vpack.c.b16 %v1475, %v1469
        %v1902 = vpack.c.b16 %v1476, %v1470
        %v1903 = vpack.c.b16 %v1477, %v1471
        %v1904 = vpack.c.b16 %v1478, %v1472
        %v1905 = vpack.c.b16 %v1479, %v1473
        %v1906 = vpack.c.b16 %v1480, %v1474
        %v1907 = vpack.c.b16 %v1487, %v1481
        %v1908 = vpack.c.b16 %v1488, %v1482
        %v1909 = vpack.c.b16 %v1489, %v1483
        %v1910 = vpack.c.b16 %v1490, %v1484
        %v1911 = vpack.c.b16 %v1491, %v1485
        %v1912 = vpack.c.b16 %v1492, %v1486
        %v1913 = vpack.c.b16 %v1499, %v1493
        %v1914 = vpack.c.b16 %v1500, %v1494
        %v1915 = vpack.c.b16 %v1501, %v1495
        %v1916 = vpack.c.b16 %v1502, %v1496
        %v1917 = vpack.c.b16 %v1503, %v1497
        %v1918 = vpack.c.b16 %v1504, %v1498
        %v1919 = vpack.c.b16 %v1511, %v1505
        %v1920 = vpack.c.b16 %v1512, %v1506
        %v1921 = vpack.c.b16 %v1513, %v1507
        %v1922 = vpack.c.b16 %v1514, %v1508
        %v1923 = vpack.c.b16 %v1515, %v1509
        %v1924 = vpack.c.b16 %v1516, %v1510
        %v1925 = vpack.c.b16 %v1523, %v1517
        %v1926 = vpack.c.b16 %v1524, %v1518
        %v1927 = vpack.c.b16 %v1525, %v1519
        %v1928 = vpack.c.b16 %v1526, %v1520
        %v1929 = vpack.c.b16 %v1527, %v1521
        %v1930 = vpack.c.b16 %v1528, %v1522
        %v1931 = vpack.c.b16 %v1535, %v1529
        %v1932 = vpack.c.b16 %v1536, %v1530
        %v1933 = vpack.c.b16 %v1537, %v1531
        %v1934 = vpack.c.b16 %v1538, %v1532
        %v1935 = vpack.c.b16 %v1539, %v1533
        %v1936 = vpack.c.b16 %v1540, %v1534
        %v1937 = vpack.c.b16 %v1547, %v1541
        %v1938 = vpack.c.b16 %v1548, %v1542
        %v1939 = vpack.c.b16 %v1549, %v1543
        %v1940 = vpack.c.b16 %v1550, %v1544
        %v1941 = vpack.c.b16 %v1551, %v1545
        %v1942 = vpack.c.b16 %v1552, %v1546
        %v1943 = vpack.c.b16 %v1559, %v1553
        %v1944 = vpack.c.b16 %v1560, %v1554
        %v1945 = vpack.c.b16 %v1561, %v1555
        %v1946 = vpack.c.b16 %v1562, %v1556
        %v1947 = vpack.c.b16 %v1563, %v1557
        %v1948 = vpack.c.b16 %v1564, %v1558
        %v1949 = vpack.c.b16 %v1571, %v1565
        %v1950 = vpack.c.b16 %v1572, %v1566
        %v1951 = vpack.c.b16 %v1573, %v1567
        %v1952 = vpack.c.b16 %v1574, %v1568
        %v1953 = vpack.c.b16 %v1575, %v1569
        %v1954 = vpack.c.b16 %v1576, %v1570
        %v1955 = vpack.c.b16 %v1583, %v1577
        %v1956 = vpack.c.b16 %v1584, %v1578
        %v1957 = vpack.c.b16 %v1585, %v1579
        %v1958 = vpack.c.b16 %v1586, %v1580
        %v1959 = vpack.c.b16 %v1587, %v1581
        %v1960 = vpack.c.b16 %v1588, %v1582
        %v1961 = vpack.c.b16 %v1595, %v1589
        %v1962 = vpack.c.b16 %v1596, %v1590
        %v1963 = vpack.c.b16 %v1597, %v1591
        %v1964 = vpack.c.b16 %v1598, %v1592
        %v1965 = vpack.c.b16 %v1599, %v1593
        %v1966 = vpack.c.b16 %v1600, %v1594
        %v1967 = vpack.c.b16 %v1607, %v1601
        %v1968 = vpack.c.b16 %v1608, %v1602
        %v1969 = vpack.c.b16 %v1609, %v1603
        %v1970 = vpack.c.b16 %v1610, %v1604
        %v1971 = vpack.c.b16 %v1611, %v1605
        %v1972 = vpack.c.b16 %v1612, %v1606
        %v1973 = vpack.c.b16 %v1619, %v1613
        %v1974 = vpack.c.b16 %v1620, %v1614
        %v1975 = vpack.c.b16 %v1621, %v1615
        %v1976 = vpack.c.b16 %v1622, %v1616
        %v1977 = vpack.c.b16 %v1623, %v1617
        %v1978 = vpack.c.b16 %v1624, %v1618
        %v1979 = vpack.c.b16 %v1631, %v1625
        %v1980 = vpack.c.b16 %v1632, %v1626
        %v1981 = vpack.c.b16 %v1633, %v1627
        %v1982 = vpack.c.b16 %v1634, %v1628
        %v1983 = vpack.c.b16 %v1635, %v1629
        %v1984 = vpack.c.b16 %v1636, %v1630
        %v1985 = vpack.c.b16 %v1643, %v1637
        %v1986 = vpack.c.b16 %v1644, %v1638
        %v1987 = vpack.c.b16 %v1645, %v1639
        %v1988 = vpack.c.b16 %v1646, %v1640
        %v1989 = vpack.c.b16 %v1647, %v1641
        %v1990 = vpack.c.b16 %v1648, %v1642
        %v1991 = vpack.c.b16 %v1655, %v1649
        %v1992 = vpack.c.b16 %v1656, %v1650
        %v1993 = vpack.c.b16 %v1657, %v1651
        %v1994 = vpack.c.b16 %v1658, %v1652
        %v1995 = vpack.c.b16 %v1659, %v1653
        %v1996 = vpack.c.b16 %v1660, %v1654
        %v1997 = vpack.c.b16 %v1667, %v1661
        %v1998 = vpack.c.b16 %v1668, %v1662
        %v1999 = vpack.c.b16 %v1669, %v1663
        %v2000 = vpack.c.b16 %v1670, %v1664
        %v2001 = vpack.c.b16 %v1671, %v1665
        %v2002 = vpack.c.b16 %v1672, %v1666
        %v2003 = vpack.c.b16 %v1679, %v1673
        %v2004 = vpack.c.b16 %v1680, %v1674
        %v2005 = vpack.c.b16 %v1681, %v1675
        %v2006 = vpack.c.b16 %v1682, %v1676
        %v2007 = vpack.c.b16 %v1683, %v1677
        %v2008 = vpack.c.b16 %v1684, %v1678
        %v2009 = vpack.c.b16 %v1691, %v1685
        %v2010 = vpack.c.b16 %v1692, %v1686
        %v2011 = vpack.c.b16 %v1693, %v1687
        %v2012 = vpack.c.b16 %v1694, %v1688
        %v2013 = vpack.c.b16 %v1695, %v1689
        %v2014 = vpack.c.b16 %v1696, %v1690
        %v2015 = vpack.c.b16 %v1703, %v1697
        %v2016 = vpack.c.b16 %v1704, %v1698
        %v2017 = vpack.c.b16 %v1705, %v1699
        %v2018 = vpack.c.b16 %v1706, %v1700
        %v2019 = vpack.c.b16 %v1707, %v1701
        %v2020 = vpack.c.b16 %v1708, %v1702
        %v2021 = vpack.c.b16 %v1715, %v1709
        %v2022 = vpack.c.b16 %v1716, %v1710
        %v2023 = vpack.c.b16 %v1717, %v1711
        %v2024 = vpack.c.b16 %v1718, %v1712
        %v2025 = vpack.c.b16 %v1719, %v1713
        %v2026 = vpack.c.b16 %v1720, %v1714
        %v2027 = vpack.c.b16 %v1727, %v1721
        %v2028 = vpack.c.b16 %v1728, %v1722
        %v2029 = vpack.c.b16 %v1729, %v1723
        %v2030 = vpack.c.b16 %v1730, %v1724
        %v2031 = vpack.c.b16 %v1731, %v1725
        %v2032 = vpack.c.b16 %v1732, %v1726
        %v2033 = vpack.c.b16 %v1739, %v1733
        %v2034 = vpack.c.b16 %v1740, %v1734
        %v2035 = vpack.c.b16 %v1741, %v1735
        %v2036 = vpack.c.b16 %v1742, %v1736
        %v2037 = vpack.c.b16 %v1743, %v1737
        %v2038 = vpack.c.b16 %v1744, %v1738
        %v2039 = vpack.c.b16 %v1751, %v1745
        %v2040 = vpack.c.b16 %v1752, %v1746
        %v2041 = vpack.c.b16 %v1753, %v1747
        %v2042 = vpack.c.b16 %v1754, %v1748
        %v2043 = vpack.c.b16 %v1755, %v1749
        %v2044 = vpack.c.b16 %v1756, %v1750
        %2333 = vmatprep.subr.bf16.mxu0 %v1758
        %2334 = vmatpush1.bf16.xpose.msra.mxu0 %v1757
        %2335 = vmatprep.subr.bf16.mxu0 %v1764
        %2336 = vmatpush1.bf16.xpose.msra.mxu0 %v1763
        %2337 = vmatprep.subr.bf16.mxu0 %v1770
        %2338 = vmatpush1.bf16.xpose.msra.mxu0 %v1769
        %2339 = vmatprep.subr.bf16.mxu0 %v1776
        %2340 = vmatpush1.bf16.xpose.msra.mxu0 %v1775
        %2341 = vmatprep.subr.bf16.mxu0 %v1782
        %2342 = vmatpush1.bf16.xpose.msra.mxu0 %v1781
        %2343 = vmatprep.subr.bf16.mxu0 %v1788
        %2344 = vmatpush1.bf16.xpose.msra.mxu0 %v1787
        %2345 = vmatprep.subr.bf16.mxu0 %v1794
        %2346 = vmatpush1.bf16.xpose.msra.mxu0 %v1793
        %2347 = vmatprep.subr.bf16.mxu0 %v1800
        %2348 = vmatpush1.bf16.xpose.msra.mxu0 %v1799
        %2349 = vmatprep.subr.bf16.mxu0 %v1806
        %2350 = vmatpush1.bf16.xpose.msra.mxu0 %v1805
        %2351 = vmatprep.subr.bf16.mxu0 %v1812
        %2352 = vmatpush1.bf16.xpose.msra.mxu0 %v1811
        %2353 = vmatprep.subr.bf16.mxu0 %v1818
        %2354 = vmatpush1.bf16.xpose.msra.mxu0 %v1817
        %2355 = vmatprep.subr.bf16.mxu0 %v1824
        %2356 = vmatpush1.bf16.xpose.msra.mxu0 %v1823
        %2357 = vmatprep.subr.bf16.mxu0 %v1830
        %2358 = vmatpush1.bf16.xpose.msra.mxu0 %v1829
        %2359 = vmatprep.subr.bf16.mxu0 %v1836
        %2360 = vmatpush1.bf16.xpose.msra.mxu0 %v1835
        %2361 = vmatprep.subr.bf16.mxu0 %v1842
        %2362 = vmatpush1.bf16.xpose.msra.mxu0 %v1841
        %2363 = vmatprep.subr.bf16.mxu0 %v1848
        %2364 = vmatpush1.bf16.xpose.msra.mxu0 %v1847
        %2365 = vmatprep.mubr.bf16.mxu0 %v478
        %2366 = vmatmul.mubr.bf16.gmra.mrb[0].mxu0 %v477
        %v2367 = vpop.f32.mrb[0].mxu0
        %v2368 = vadd.f32 %v866, %v2367
        %v2369 = vpop.f32.mrb[0].mxu0
        %v2370 = vadd.f32 %v870, %v2369
        %v2371 = vpop.f32.mrb[0].mxu0
        %v2372 = vadd.f32 %v866, %v2371
        %v2373 = vpop.f32.mrb[0].mxu0
        %v2374 = vadd.f32 %v870, %v2373
        %2375 = vmatprep.mubr.bf16.mxu0 %v484
        %2376 = vmatmul.mubr.bf16.gmra.mrb[0].mxu0 %v483
        %v2377 = vpop.f32.mrb[0].mxu0
        %v2378 = vadd.f32 %v866, %v2377
        %v2379 = vpop.f32.mrb[0].mxu0
        %v2380 = vadd.f32 %v870, %v2379
        %v2381 = vpop.f32.mrb[0].mxu0
        %v2382 = vadd.f32 %v866, %v2381
        %v2383 = vpop.f32.mrb[0].mxu0
        %v2384 = vadd.f32 %v870, %v2383
        %2385 = vmatprep.mubr.bf16.mxu0 %v490
        %2386 = vmatmul.mubr.bf16.gmra.mrb[0].mxu0 %v489
        %v2387 = vpop.f32.mrb[0].mxu0
        %v2388 = vadd.f32 %v866, %v2387
        %v2389 = vpop.f32.mrb[0].mxu0
        %v2390 = vadd.f32 %v870, %v2389
        %v2391 = vpop.f32.mrb[0].mxu0
        %v2392 = vadd.f32 %v866, %v2391
        %v2393 = vpop.f32.mrb[0].mxu0
        %v2394 = vadd.f32 %v870, %v2393
        %2395 = vmatprep.mubr.bf16.mxu0 %v496
        %2396 = vmatmul.mubr.bf16.gmra.mrb[0].mxu0 %v495
        %v2397 = vpop.f32.mrb[0].mxu0
        %v2398 = vadd.f32 %v866, %v2397
        %v2399 = vpop.f32.mrb[0].mxu0
        %v2400 = vadd.f32 %v870, %v2399
        %v2401 = vpop.f32.mrb[0].mxu0
        %v2402 = vadd.f32 %v866, %v2401
        %v2403 = vpop.f32.mrb[0].mxu0
        %v2404 = vadd.f32 %v870, %v2403
        %2405 = vmatprep.mubr.bf16.mxu0 %v502
        %2406 = vmatmul.mubr.bf16.gmra.mrb[0].mxu0 %v501
        %v2407 = vpop.f32.mrb[0].mxu0
        %v2408 = vadd.f32 %v866, %v2407
        %v2409 = vpop.f32.mrb[0].mxu0
        %v2410 = vadd.f32 %v870, %v2409
        %v2411 = vpop.f32.mrb[0].mxu0
        %v2412 = vadd.f32 %v866, %v2411
        %v2413 = vpop.f32.mrb[0].mxu0
        %v2414 = vadd.f32 %v870, %v2413
        %2415 = vmatprep.mubr.bf16.mxu0 %v508
        %2416 = vmatmul.mubr.bf16.gmra.mrb[0].mxu0 %v507
        %v2417 = vpop.f32.mrb[0].mxu0
        %v2418 = vadd.f32 %v866, %v2417
        %v2419 = vpop.f32.mrb[0].mxu0
        %v2420 = vadd.f32 %v870, %v2419
        %v2421 = vpop.f32.mrb[0].mxu0
        %v2422 = vadd.f32 %v866, %v2421
        %v2423 = vpop.f32.mrb[0].mxu0
        %v2424 = vadd.f32 %v870, %v2423
        %2425 = vmatprep.mubr.bf16.mxu0 %v514
        %2426 = vmatmul.mubr.bf16.gmra.mrb[0].mxu0 %v513
        %v2427 = vpop.f32.mrb[0].mxu0
        %v2428 = vadd.f32 %v866, %v2427
        %v2429 = vpop.f32.mrb[0].mxu0
        %v2430 = vadd.f32 %v870, %v2429
        %v2431 = vpop.f32.mrb[0].mxu0
        %v2432 = vadd.f32 %v866, %v2431
        %v2433 = vpop.f32.mrb[0].mxu0
        %v2434 = vadd.f32 %v870, %v2433
        %2435 = vmatprep.mubr.bf16.mxu0 %v520
        %2436 = vmatmul.mubr.bf16.gmra.mrb[0].mxu0 %v519
        %v2437 = vpop.f32.mrb[0].mxu0
        %v2438 = vadd.f32 %v866, %v2437
        %v2439 = vpop.f32.mrb[0].mxu0
        %v2440 = vadd.f32 %v870, %v2439
        %v2441 = vpop.f32.mrb[0].mxu0
        %v2442 = vadd.f32 %v866, %v2441
        %v2443 = vpop.f32.mrb[0].mxu0
        %v2444 = vadd.f32 %v870, %v2443
        %2445 = vmatprep.mubr.bf16.mxu0 %v526
        %2446 = vmatmul.mubr.bf16.gmra.mrb[0].mxu0 %v525
        %v2447 = vpop.f32.mrb[0].mxu0
        %v2448 = vadd.f32 %v866, %v2447
        %v2449 = vpop.f32.mrb[0].mxu0
        %v2450 = vadd.f32 %v870, %v2449
        %v2451 = vpop.f32.mrb[0].mxu0
        %v2452 = vadd.f32 %v866, %v2451
        %v2453 = vpop.f32.mrb[0].mxu0
        %v2454 = vadd.f32 %v870, %v2453
        %2455 = vmatprep.mubr.bf16.mxu0 %v532
        %2456 = vmatmul.mubr.bf16.gmra.mrb[0].mxu0 %v531
        %v2457 = vpop.f32.mrb[0].mxu0
        %v2458 = vadd.f32 %v866, %v2457
        %v2459 = vpop.f32.mrb[0].mxu0
        %v2460 = vadd.f32 %v870, %v2459
        %v2461 = vpop.f32.mrb[0].mxu0
        %v2462 = vadd.f32 %v866, %v2461
        %v2463 = vpop.f32.mrb[0].mxu0
        %v2464 = vadd.f32 %v870, %v2463
        %2465 = vmatprep.mubr.bf16.mxu0 %v538
        %2466 = vmatmul.mubr.bf16.gmra.mrb[0].mxu0 %v537
        %v2467 = vpop.f32.mrb[0].mxu0
        %v2468 = vadd.f32 %v866, %v2467
        %v2469 = vpop.f32.mrb[0].mxu0
        %v2470 = vadd.f32 %v870, %v2469
        %v2471 = vpop.f32.mrb[0].mxu0
        %v2472 = vadd.f32 %v866, %v2471
        %v2473 = vpop.f32.mrb[0].mxu0
        %v2474 = vadd.f32 %v870, %v2473
        %2475 = vmatprep.mubr.bf16.mxu0 %v544
        %2476 = vmatmul.mubr.bf16.gmra.mrb[0].mxu0 %v543
        %v2477 = vpop.f32.mrb[0].mxu0
        %v2478 = vadd.f32 %v866, %v2477
        %v2479 = vpop.f32.mrb[0].mxu0
        %v2480 = vadd.f32 %v870, %v2479
        %v2481 = vpop.f32.mrb[0].mxu0
        %v2482 = vadd.f32 %v866, %v2481
        %v2483 = vpop.f32.mrb[0].mxu0
        %v2484 = vadd.f32 %v870, %v2483
        %2485 = vmatprep.mubr.bf16.mxu0 %v550
        %2486 = vmatmul.mubr.bf16.gmra.mrb[0].mxu0 %v549
        %v2487 = vpop.f32.mrb[0].mxu0
        %v2488 = vadd.f32 %v866, %v2487
        %v2489 = vpop.f32.mrb[0].mxu0
        %v2490 = vadd.f32 %v870, %v2489
        %v2491 = vpop.f32.mrb[0].mxu0
        %v2492 = vadd.f32 %v866, %v2491
        %v2493 = vpop.f32.mrb[0].mxu0
        %v2494 = vadd.f32 %v870, %v2493
        %2495 = vmatprep.mubr.bf16.mxu0 %v556
        %2496 = vmatmul.mubr.bf16.gmra.mrb[0].mxu0 %v555
        %v2497 = vpop.f32.mrb[0].mxu0
        %v2498 = vadd.f32 %v866, %v2497
        %v2499 = vpop.f32.mrb[0].mxu0
        %v2500 = vadd.f32 %v870, %v2499
        %v2501 = vpop.f32.mrb[0].mxu0
        %v2502 = vadd.f32 %v866, %v2501
        %v2503 = vpop.f32.mrb[0].mxu0
        %v2504 = vadd.f32 %v870, %v2503
        %2505 = vmatprep.mubr.bf16.mxu0 %v562
        %2506 = vmatmul.mubr.bf16.gmra.mrb[0].mxu0 %v561
        %v2507 = vpop.f32.mrb[0].mxu0
        %v2508 = vadd.f32 %v866, %v2507
        %v2509 = vpop.f32.mrb[0].mxu0
        %v2510 = vadd.f32 %v870, %v2509
        %v2511 = vpop.f32.mrb[0].mxu0
        %v2512 = vadd.f32 %v866, %v2511
        %v2513 = vpop.f32.mrb[0].mxu0
        %v2514 = vadd.f32 %v870, %v2513
        %2515 = vmatprep.mubr.bf16.mxu0 %v568
        %2516 = vmatmul.mubr.bf16.gmra.mrb[0].mxu0 %v567
        %v2517 = vpop.f32.mrb[0].mxu0
        %v2518 = vadd.f32 %v866, %v2517
        %v2519 = vpop.f32.mrb[0].mxu0
        %v2520 = vadd.f32 %v870, %v2519
        %v2521 = vpop.f32.mrb[0].mxu0
        %v2522 = vadd.f32 %v866, %v2521
        %v2523 = vpop.f32.mrb[0].mxu0
        %v2524 = vadd.f32 %v870, %v2523
        %2525 = vdwg.mxu0
        %2526 = vmatprep.subr.bf16.mxu0 %v1760
        %2527 = vmatpush1.bf16.xpose.msra.mxu0 %v1759
        %2528 = vmatprep.subr.bf16.mxu0 %v1766
        %2529 = vmatpush1.bf16.xpose.msra.mxu0 %v1765
        %2530 = vmatprep.subr.bf16.mxu0 %v1772
        %2531 = vmatpush1.bf16.xpose.msra.mxu0 %v1771
        %2532 = vmatprep.subr.bf16.mxu0 %v1778
        %2533 = vmatpush1.bf16.xpose.msra.mxu0 %v1777
        %2534 = vmatprep.subr.bf16.mxu0 %v1784
        %2535 = vmatpush1.bf16.xpose.msra.mxu0 %v1783
        %2536 = vmatprep.subr.bf16.mxu0 %v1790
        %2537 = vmatpush1.bf16.xpose.msra.mxu0 %v1789
        %2538 = vmatprep.subr.bf16.mxu0 %v1796
        %2539 = vmatpush1.bf16.xpose.msra.mxu0 %v1795
        %2540 = vmatprep.subr.bf16.mxu0 %v1802
        %2541 = vmatpush1.bf16.xpose.msra.mxu0 %v1801
        %2542 = vmatprep.subr.bf16.mxu0 %v1808
        %2543 = vmatpush1.bf16.xpose.msra.mxu0 %v1807
        %2544 = vmatprep.subr.bf16.mxu0 %v1814
        %2545 = vmatpush1.bf16.xpose.msra.mxu0 %v1813
        %2546 = vmatprep.subr.bf16.mxu0 %v1820
        %2547 = vmatpush1.bf16.xpose.msra.mxu0 %v1819
        %2548 = vmatprep.subr.bf16.mxu0 %v1826
        %2549 = vmatpush1.bf16.xpose.msra.mxu0 %v1825
        %2550 = vmatprep.subr.bf16.mxu0 %v1832
        %2551 = vmatpush1.bf16.xpose.msra.mxu0 %v1831
        %2552 = vmatprep.subr.bf16.mxu0 %v1838
        %2553 = vmatpush1.bf16.xpose.msra.mxu0 %v1837
        %2554 = vmatprep.subr.bf16.mxu0 %v1844
        %2555 = vmatpush1.bf16.xpose.msra.mxu0 %v1843
        %2556 = vmatprep.subr.bf16.mxu0 %v1850
        %2557 = vmatpush1.bf16.xpose.msra.mxu0 %v1849
        %2558 = vmatprep.mubr.bf16.mxu0 %v480
        %2559 = vmatmul.mubr.bf16.gmra.mrb[0].mxu0 %v479
        %v2560 = vpop.f32.mrb[0].mxu0
        %v2561 = vadd.f32 %v2368, %v2560
        %v2562 = vpop.f32.mrb[0].mxu0
        %v2563 = vadd.f32 %v2370, %v2562
        %v2564 = vpop.f32.mrb[0].mxu0
        %v2565 = vadd.f32 %v2372, %v2564
        %v2566 = vpop.f32.mrb[0].mxu0
        %v2567 = vadd.f32 %v2374, %v2566
        %2568 = vmatprep.mubr.bf16.mxu0 %v486
        %2569 = vmatmul.mubr.bf16.gmra.mrb[0].mxu0 %v485
        %v2570 = vpop.f32.mrb[0].mxu0
        %v2571 = vadd.f32 %v2378, %v2570
        %v2572 = vpop.f32.mrb[0].mxu0
        %v2573 = vadd.f32 %v2380, %v2572
        %v2574 = vpop.f32.mrb[0].mxu0
        %v2575 = vadd.f32 %v2382, %v2574
        %v2576 = vpop.f32.mrb[0].mxu0
        %v2577 = vadd.f32 %v2384, %v2576
        %2578 = vmatprep.mubr.bf16.mxu0 %v492
        %2579 = vmatmul.mubr.bf16.gmra.mrb[0].mxu0 %v491
        %v2580 = vpop.f32.mrb[0].mxu0
        %v2581 = vadd.f32 %v2388, %v2580
        %v2582 = vpop.f32.mrb[0].mxu0
        %v2583 = vadd.f32 %v2390, %v2582
        %v2584 = vpop.f32.mrb[0].mxu0
        %v2585 = vadd.f32 %v2392, %v2584
        %v2586 = vpop.f32.mrb[0].mxu0
        %v2587 = vadd.f32 %v2394, %v2586
        %2588 = vmatprep.mubr.bf16.mxu0 %v498
        %2589 = vmatmul.mubr.bf16.gmra.mrb[0].mxu0 %v497
        %v2590 = vpop.f32.mrb[0].mxu0
        %v2591 = vadd.f32 %v2398, %v2590
        %v2592 = vpop.f32.mrb[0].mxu0
        %v2593 = vadd.f32 %v2400, %v2592
        %v2594 = vpop.f32.mrb[0].mxu0
        %v2595 = vadd.f32 %v2402, %v2594
        %v2596 = vpop.f32.mrb[0].mxu0
        %v2597 = vadd.f32 %v2404, %v2596
        %2598 = vmatprep.mubr.bf16.mxu0 %v504
        %2599 = vmatmul.mubr.bf16.gmra.mrb[0].mxu0 %v503
        %v2600 = vpop.f32.mrb[0].mxu0
        %v2601 = vadd.f32 %v2408, %v2600
        %v2602 = vpop.f32.mrb[0].mxu0
        %v2603 = vadd.f32 %v2410, %v2602
        %v2604 = vpop.f32.mrb[0].mxu0
        %v2605 = vadd.f32 %v2412, %v2604
        %v2606 = vpop.f32.mrb[0].mxu0
        %v2607 = vadd.f32 %v2414, %v2606
        %2608 = vmatprep.mubr.bf16.mxu0 %v510
        %2609 = vmatmul.mubr.bf16.gmra.mrb[0].mxu0 %v509
        %v2610 = vpop.f32.mrb[0].mxu0
        %v2611 = vadd.f32 %v2418, %v2610
        %v2612 = vpop.f32.mrb[0].mxu0
        %v2613 = vadd.f32 %v2420, %v2612
        %v2614 = vpop.f32.mrb[0].mxu0
        %v2615 = vadd.f32 %v2422, %v2614
        %v2616 = vpop.f32.mrb[0].mxu0
        %v2617 = vadd.f32 %v2424, %v2616
        %2618 = vmatprep.mubr.bf16.mxu0 %v516
        %2619 = vmatmul.mubr.bf16.gmra.mrb[0].mxu0 %v515
        %v2620 = vpop.f32.mrb[0].mxu0
        %v2621 = vadd.f32 %v2428, %v2620
        %v2622 = vpop.f32.mrb[0].mxu0
        %v2623 = vadd.f32 %v2430, %v2622
        %v2624 = vpop.f32.mrb[0].mxu0
        %v2625 = vadd.f32 %v2432, %v2624
        %v2626 = vpop.f32.mrb[0].mxu0
        %v2627 = vadd.f32 %v2434, %v2626
        %2628 = vmatprep.mubr.bf16.mxu0 %v522
        %2629 = vmatmul.mubr.bf16.gmra.mrb[0].mxu0 %v521
        %v2630 = vpop.f32.mrb[0].mxu0
        %v2631 = vadd.f32 %v2438, %v2630
        %v2632 = vpop.f32.mrb[0].mxu0
        %v2633 = vadd.f32 %v2440, %v2632
        %v2634 = vpop.f32.mrb[0].mxu0
        %v2635 = vadd.f32 %v2442, %v2634
        %v2636 = vpop.f32.mrb[0].mxu0
        %v2637 = vadd.f32 %v2444, %v2636
        %2638 = vmatprep.mubr.bf16.mxu0 %v528
        %2639 = vmatmul.mubr.bf16.gmra.mrb[0].mxu0 %v527
        %v2640 = vpop.f32.mrb[0].mxu0
        %v2641 = vadd.f32 %v2448, %v2640
        %v2642 = vpop.f32.mrb[0].mxu0
        %v2643 = vadd.f32 %v2450, %v2642
        %v2644 = vpop.f32.mrb[0].mxu0
        %v2645 = vadd.f32 %v2452, %v2644
        %v2646 = vpop.f32.mrb[0].mxu0
        %v2647 = vadd.f32 %v2454, %v2646
        %2648 = vmatprep.mubr.bf16.mxu0 %v534
        %2649 = vmatmul.mubr.bf16.gmra.mrb[0].mxu0 %v533
        %v2650 = vpop.f32.mrb[0].mxu0
        %v2651 = vadd.f32 %v2458, %v2650
        %v2652 = vpop.f32.mrb[0].mxu0
        %v2653 = vadd.f32 %v2460, %v2652
        %v2654 = vpop.f32.mrb[0].mxu0
        %v2655 = vadd.f32 %v2462, %v2654
        %v2656 = vpop.f32.mrb[0].mxu0
        %v2657 = vadd.f32 %v2464, %v2656
        %2658 = vmatprep.mubr.bf16.mxu0 %v540
        %2659 = vmatmul.mubr.bf16.gmra.mrb[0].mxu0 %v539
        %v2660 = vpop.f32.mrb[0].mxu0
        %v2661 = vadd.f32 %v2468, %v2660
        %v2662 = vpop.f32.mrb[0].mxu0
        %v2663 = vadd.f32 %v2470, %v2662
        %v2664 = vpop.f32.mrb[0].mxu0
        %v2665 = vadd.f32 %v2472, %v2664
        %v2666 = vpop.f32.mrb[0].mxu0
        %v2667 = vadd.f32 %v2474, %v2666
        %2668 = vmatprep.mubr.bf16.mxu0 %v546
        %2669 = vmatmul.mubr.bf16.gmra.mrb[0].mxu0 %v545
        %v2670 = vpop.f32.mrb[0].mxu0
        %v2671 = vadd.f32 %v2478, %v2670
        %v2672 = vpop.f32.mrb[0].mxu0
        %v2673 = vadd.f32 %v2480, %v2672
        %v2674 = vpop.f32.mrb[0].mxu0
        %v2675 = vadd.f32 %v2482, %v2674
        %v2676 = vpop.f32.mrb[0].mxu0
        %v2677 = vadd.f32 %v2484, %v2676
        %2678 = vmatprep.mubr.bf16.mxu0 %v552
        %2679 = vmatmul.mubr.bf16.gmra.mrb[0].mxu0 %v551
        %v2680 = vpop.f32.mrb[0].mxu0
        %v2681 = vadd.f32 %v2488, %v2680
        %v2682 = vpop.f32.mrb[0].mxu0
        %v2683 = vadd.f32 %v2490, %v2682
        %v2684 = vpop.f32.mrb[0].mxu0
        %v2685 = vadd.f32 %v2492, %v2684
        %v2686 = vpop.f32.mrb[0].mxu0
        %v2687 = vadd.f32 %v2494, %v2686
        %2688 = vmatprep.mubr.bf16.mxu0 %v558
        %2689 = vmatmul.mubr.bf16.gmra.mrb[0].mxu0 %v557
        %v2690 = vpop.f32.mrb[0].mxu0
        %v2691 = vadd.f32 %v2498, %v2690
        %v2692 = vpop.f32.mrb[0].mxu0
        %v2693 = vadd.f32 %v2500, %v2692
        %v2694 = vpop.f32.mrb[0].mxu0
        %v2695 = vadd.f32 %v2502, %v2694
        %v2696 = vpop.f32.mrb[0].mxu0
        %v2697 = vadd.f32 %v2504, %v2696
        %2698 = vmatprep.mubr.bf16.mxu0 %v564
        %2699 = vmatmul.mubr.bf16.gmra.mrb[0].mxu0 %v563
        %v2700 = vpop.f32.mrb[0].mxu0
        %v2701 = vadd.f32 %v2508, %v2700
        %v2702 = vpop.f32.mrb[0].mxu0
        %v2703 = vadd.f32 %v2510, %v2702
        %v2704 = vpop.f32.mrb[0].mxu0
        %v2705 = vadd.f32 %v2512, %v2704
        %v2706 = vpop.f32.mrb[0].mxu0
        %v2707 = vadd.f32 %v2514, %v2706
        %2708 = vmatprep.mubr.bf16.mxu0 %v570
        %2709 = vmatmul.mubr.bf16.gmra.mrb[0].mxu0 %v569
        %v2710 = vpop.f32.mrb[0].mxu0
        %v2711 = vadd.f32 %v2518, %v2710
        %v2712 = vpop.f32.mrb[0].mxu0
        %v2713 = vadd.f32 %v2520, %v2712
        %v2714 = vpop.f32.mrb[0].mxu0
        %v2715 = vadd.f32 %v2522, %v2714
        %v2716 = vpop.f32.mrb[0].mxu0
        %v2717 = vadd.f32 %v2524, %v2716
        %2718 = vdwg.mxu0
        %2719 = vmatprep.subr.bf16.mxu0 %v1762
        %2720 = vmatpush1.bf16.xpose.msra.mxu0 %v1761
        %2721 = vmatprep.subr.bf16.mxu0 %v1768
        %2722 = vmatpush1.bf16.xpose.msra.mxu0 %v1767
        %2723 = vmatprep.subr.bf16.mxu0 %v1774
        %2724 = vmatpush1.bf16.xpose.msra.mxu0 %v1773
        %2725 = vmatprep.subr.bf16.mxu0 %v1780
        %2726 = vmatpush1.bf16.xpose.msra.mxu0 %v1779
        %2727 = vmatprep.subr.bf16.mxu0 %v1786
        %2728 = vmatpush1.bf16.xpose.msra.mxu0 %v1785
        %2729 = vmatprep.subr.bf16.mxu0 %v1792
        %2730 = vmatpush1.bf16.xpose.msra.mxu0 %v1791
        %2731 = vmatprep.subr.bf16.mxu0 %v1798
        %2732 = vmatpush1.bf16.xpose.msra.mxu0 %v1797
        %2733 = vmatprep.subr.bf16.mxu0 %v1804
        %2734 = vmatpush1.bf16.xpose.msra.mxu0 %v1803
        %2735 = vmatprep.subr.bf16.mxu0 %v1810
        %2736 = vmatpush1.bf16.xpose.msra.mxu0 %v1809
        %2737 = vmatprep.subr.bf16.mxu0 %v1816
        %2738 = vmatpush1.bf16.xpose.msra.mxu0 %v1815
        %2739 = vmatprep.subr.bf16.mxu0 %v1822
        %2740 = vmatpush1.bf16.xpose.msra.mxu0 %v1821
        %2741 = vmatprep.subr.bf16.mxu0 %v1828
        %2742 = vmatpush1.bf16.xpose.msra.mxu0 %v1827
        %2743 = vmatprep.subr.bf16.mxu0 %v1834
        %2744 = vmatpush1.bf16.xpose.msra.mxu0 %v1833
        %2745 = vmatprep.subr.bf16.mxu0 %v1840
        %2746 = vmatpush1.bf16.xpose.msra.mxu0 %v1839
        %2747 = vmatprep.subr.bf16.mxu0 %v1846
        %2748 = vmatpush1.bf16.xpose.msra.mxu0 %v1845
        %2749 = vmatprep.subr.bf16.mxu0 %v1852
        %2750 = vmatpush1.bf16.xpose.msra.mxu0 %v1851
        %2751 = vmatprep.mubr.bf16.mxu0 %v482
        %2752 = vmatmul.mubr.bf16.gmra.mrb[0].mxu0 %v481
        %v2753 = vpop.f32.mrb[0].mxu0
        %v2754 = vadd.f32 %v2561, %v2753
        %v2755 = vpop.f32.mrb[0].mxu0
        %v2756 = vadd.f32 %v2563, %v2755
        %v2757 = vpop.f32.mrb[0].mxu0
        %v2758 = vadd.f32 %v2565, %v2757
        %v2759 = vpop.f32.mrb[0].mxu0
        %v2760 = vadd.f32 %v2567, %v2759
        %2761 = vmatprep.mubr.bf16.mxu0 %v488
        %2762 = vmatmul.mubr.bf16.gmra.mrb[0].mxu0 %v487
        %v2763 = vpop.f32.mrb[0].mxu0
        %v2764 = vadd.f32 %v2571, %v2763
        %v2765 = vpop.f32.mrb[0].mxu0
        %v2766 = vadd.f32 %v2573, %v2765
        %v2767 = vpop.f32.mrb[0].mxu0
        %v2768 = vadd.f32 %v2575, %v2767
        %v2769 = vpop.f32.mrb[0].mxu0
        %v2770 = vadd.f32 %v2577, %v2769
        %2771 = vmatprep.mubr.bf16.mxu0 %v494
        %2772 = vmatmul.mubr.bf16.gmra.mrb[0].mxu0 %v493
        %v2773 = vpop.f32.mrb[0].mxu0
        %v2774 = vadd.f32 %v2581, %v2773
        %v2775 = vpop.f32.mrb[0].mxu0
        %v2776 = vadd.f32 %v2583, %v2775
        %v2777 = vpop.f32.mrb[0].mxu0
        %v2778 = vadd.f32 %v2585, %v2777
        %v2779 = vpop.f32.mrb[0].mxu0
        %v2780 = vadd.f32 %v2587, %v2779
        %2781 = vmatprep.mubr.bf16.mxu0 %v500
        %2782 = vmatmul.mubr.bf16.gmra.mrb[0].mxu0 %v499
        %v2783 = vpop.f32.mrb[0].mxu0
        %v2784 = vadd.f32 %v2591, %v2783
        %v2785 = vpop.f32.mrb[0].mxu0
        %v2786 = vadd.f32 %v2593, %v2785
        %v2787 = vpop.f32.mrb[0].mxu0
        %v2788 = vadd.f32 %v2595, %v2787
        %v2789 = vpop.f32.mrb[0].mxu0
        %v2790 = vadd.f32 %v2597, %v2789
        %2791 = vmatprep.mubr.bf16.mxu0 %v506
        %2792 = vmatmul.mubr.bf16.gmra.mrb[0].mxu0 %v505
        %v2793 = vpop.f32.mrb[0].mxu0
        %v2794 = vadd.f32 %v2601, %v2793
        %v2795 = vpop.f32.mrb[0].mxu0
        %v2796 = vadd.f32 %v2603, %v2795
        %v2797 = vpop.f32.mrb[0].mxu0
        %v2798 = vadd.f32 %v2605, %v2797
        %v2799 = vpop.f32.mrb[0].mxu0
        %v2800 = vadd.f32 %v2607, %v2799
        %2801 = vmatprep.mubr.bf16.mxu0 %v512
        %2802 = vmatmul.mubr.bf16.gmra.mrb[0].mxu0 %v511
        %v2803 = vpop.f32.mrb[0].mxu0
        %v2804 = vadd.f32 %v2611, %v2803
        %v2805 = vpop.f32.mrb[0].mxu0
        %v2806 = vadd.f32 %v2613, %v2805
        %v2807 = vpop.f32.mrb[0].mxu0
        %v2808 = vadd.f32 %v2615, %v2807
        %v2809 = vpop.f32.mrb[0].mxu0
        %v2810 = vadd.f32 %v2617, %v2809
        %2811 = vmatprep.mubr.bf16.mxu0 %v518
        %2812 = vmatmul.mubr.bf16.gmra.mrb[0].mxu0 %v517
        %v2813 = vpop.f32.mrb[0].mxu0
        %v2814 = vadd.f32 %v2621, %v2813
        %v2815 = vpop.f32.mrb[0].mxu0
        %v2816 = vadd.f32 %v2623, %v2815
        %v2817 = vpop.f32.mrb[0].mxu0
        %v2818 = vadd.f32 %v2625, %v2817
        %v2819 = vpop.f32.mrb[0].mxu0
        %v2820 = vadd.f32 %v2627, %v2819
        %2821 = vmatprep.mubr.bf16.mxu0 %v524
        %2822 = vmatmul.mubr.bf16.gmra.mrb[0].mxu0 %v523
        %v2823 = vpop.f32.mrb[0].mxu0
        %v2824 = vadd.f32 %v2631, %v2823
        %v2825 = vpop.f32.mrb[0].mxu0
        %v2826 = vadd.f32 %v2633, %v2825
        %v2827 = vpop.f32.mrb[0].mxu0
        %v2828 = vadd.f32 %v2635, %v2827
        %v2829 = vpop.f32.mrb[0].mxu0
        %v2830 = vadd.f32 %v2637, %v2829
        %2831 = vmatprep.mubr.bf16.mxu0 %v530
        %2832 = vmatmul.mubr.bf16.gmra.mrb[0].mxu0 %v529
        %v2833 = vpop.f32.mrb[0].mxu0
        %v2834 = vadd.f32 %v2641, %v2833
        %v2835 = vpop.f32.mrb[0].mxu0
        %v2836 = vadd.f32 %v2643, %v2835
        %v2837 = vpop.f32.mrb[0].mxu0
        %v2838 = vadd.f32 %v2645, %v2837
        %v2839 = vpop.f32.mrb[0].mxu0
        %v2840 = vadd.f32 %v2647, %v2839
        %2841 = vmatprep.mubr.bf16.mxu0 %v536
        %2842 = vmatmul.mubr.bf16.gmra.mrb[0].mxu0 %v535
        %v2843 = vpop.f32.mrb[0].mxu0
        %v2844 = vadd.f32 %v2651, %v2843
        %v2845 = vpop.f32.mrb[0].mxu0
        %v2846 = vadd.f32 %v2653, %v2845
        %v2847 = vpop.f32.mrb[0].mxu0
        %v2848 = vadd.f32 %v2655, %v2847
        %v2849 = vpop.f32.mrb[0].mxu0
        %v2850 = vadd.f32 %v2657, %v2849
        %2851 = vmatprep.mubr.bf16.mxu0 %v542
        %2852 = vmatmul.mubr.bf16.gmra.mrb[0].mxu0 %v541
        %v2853 = vpop.f32.mrb[0].mxu0
        %v2854 = vadd.f32 %v2661, %v2853
        %v2855 = vpop.f32.mrb[0].mxu0
        %v2856 = vadd.f32 %v2663, %v2855
        %v2857 = vpop.f32.mrb[0].mxu0
        %v2858 = vadd.f32 %v2665, %v2857
        %v2859 = vpop.f32.mrb[0].mxu0
        %v2860 = vadd.f32 %v2667, %v2859
        %2861 = vmatprep.mubr.bf16.mxu0 %v548
        %2862 = vmatmul.mubr.bf16.gmra.mrb[0].mxu0 %v547
        %v2863 = vpop.f32.mrb[0].mxu0
        %v2864 = vadd.f32 %v2671, %v2863
        %v2865 = vpop.f32.mrb[0].mxu0
        %v2866 = vadd.f32 %v2673, %v2865
        %v2867 = vpop.f32.mrb[0].mxu0
        %v2868 = vadd.f32 %v2675, %v2867
        %v2869 = vpop.f32.mrb[0].mxu0
        %v2870 = vadd.f32 %v2677, %v2869
        %2871 = vmatprep.mubr.bf16.mxu0 %v554
        %2872 = vmatmul.mubr.bf16.gmra.mrb[0].mxu0 %v553
        %v2873 = vpop.f32.mrb[0].mxu0
        %v2874 = vadd.f32 %v2681, %v2873
        %v2875 = vpop.f32.mrb[0].mxu0
        %v2876 = vadd.f32 %v2683, %v2875
        %v2877 = vpop.f32.mrb[0].mxu0
        %v2878 = vadd.f32 %v2685, %v2877
        %v2879 = vpop.f32.mrb[0].mxu0
        %v2880 = vadd.f32 %v2687, %v2879
        %2881 = vmatprep.mubr.bf16.mxu0 %v560
        %2882 = vmatmul.mubr.bf16.gmra.mrb[0].mxu0 %v559
        %v2883 = vpop.f32.mrb[0].mxu0
        %v2884 = vadd.f32 %v2691, %v2883
        %v2885 = vpop.f32.mrb[0].mxu0
        %v2886 = vadd.f32 %v2693, %v2885
        %v2887 = vpop.f32.mrb[0].mxu0
        %v2888 = vadd.f32 %v2695, %v2887
        %v2889 = vpop.f32.mrb[0].mxu0
        %v2890 = vadd.f32 %v2697, %v2889
        %2891 = vmatprep.mubr.bf16.mxu0 %v566
        %2892 = vmatmul.mubr.bf16.gmra.mrb[0].mxu0 %v565
        %v2893 = vpop.f32.mrb[0].mxu0
        %v2894 = vadd.f32 %v2701, %v2893
        %v2895 = vpop.f32.mrb[0].mxu0
        %v2896 = vadd.f32 %v2703, %v2895
        %v2897 = vpop.f32.mrb[0].mxu0
        %v2898 = vadd.f32 %v2705, %v2897
        %v2899 = vpop.f32.mrb[0].mxu0
        %v2900 = vadd.f32 %v2707, %v2899
        %2901 = vmatprep.mubr.bf16.mxu0 %v572
        %2902 = vmatmul.mubr.bf16.gmra.mrb[0].mxu0 %v571
        %v2903 = vpop.f32.mrb[0].mxu0
        %v2904 = vadd.f32 %v2711, %v2903
        %v2905 = vpop.f32.mrb[0].mxu0
        %v2906 = vadd.f32 %v2713, %v2905
        %v2907 = vpop.f32.mrb[0].mxu0
        %v2908 = vadd.f32 %v2715, %v2907
        %v2909 = vpop.f32.mrb[0].mxu0
        %v2910 = vadd.f32 %v2717, %v2909
        %2911 = vdwg.mxu0
        %2912 = vmatprep.subr.bf16.mxu0 %v1854
        %2913 = vmatpush1.bf16.xpose.msra.mxu0 %v1853
        %2914 = vmatprep.subr.bf16.mxu0 %v1860
        %2915 = vmatpush1.bf16.xpose.msra.mxu0 %v1859
        %2916 = vmatprep.subr.bf16.mxu0 %v1866
        %2917 = vmatpush1.bf16.xpose.msra.mxu0 %v1865
        %2918 = vmatprep.subr.bf16.mxu0 %v1872
        %2919 = vmatpush1.bf16.xpose.msra.mxu0 %v1871
        %2920 = vmatprep.subr.bf16.mxu0 %v1878
        %2921 = vmatpush1.bf16.xpose.msra.mxu0 %v1877
        %2922 = vmatprep.subr.bf16.mxu0 %v1884
        %2923 = vmatpush1.bf16.xpose.msra.mxu0 %v1883
        %2924 = vmatprep.subr.bf16.mxu0 %v1890
        %2925 = vmatpush1.bf16.xpose.msra.mxu0 %v1889
        %2926 = vmatprep.subr.bf16.mxu0 %v1896
        %2927 = vmatpush1.bf16.xpose.msra.mxu0 %v1895
        %2928 = vmatprep.subr.bf16.mxu0 %v1902
        %2929 = vmatpush1.bf16.xpose.msra.mxu0 %v1901
        %2930 = vmatprep.subr.bf16.mxu0 %v1908
        %2931 = vmatpush1.bf16.xpose.msra.mxu0 %v1907
        %2932 = vmatprep.subr.bf16.mxu0 %v1914
        %2933 = vmatpush1.bf16.xpose.msra.mxu0 %v1913
        %2934 = vmatprep.subr.bf16.mxu0 %v1920
        %2935 = vmatpush1.bf16.xpose.msra.mxu0 %v1919
        %2936 = vmatprep.subr.bf16.mxu0 %v1926
        %2937 = vmatpush1.bf16.xpose.msra.mxu0 %v1925
        %2938 = vmatprep.subr.bf16.mxu0 %v1932
        %2939 = vmatpush1.bf16.xpose.msra.mxu0 %v1931
        %2940 = vmatprep.subr.bf16.mxu0 %v1938
        %2941 = vmatpush1.bf16.xpose.msra.mxu0 %v1937
        %2942 = vmatprep.subr.bf16.mxu0 %v1944
        %2943 = vmatpush1.bf16.xpose.msra.mxu0 %v1943
        %2944 = vmatprep.mubr.bf16.mxu0 %v478
        %2945 = vmatmul.mubr.bf16.gmra.mrb[0].mxu0 %v477
        %v2946 = vpop.f32.mrb[0].mxu0
        %v2947 = vadd.f32 %v874, %v2946
        %v2948 = vpop.f32.mrb[0].mxu0
        %v2949 = vadd.f32 %v878, %v2948
        %v2950 = vpop.f32.mrb[0].mxu0
        %v2951 = vadd.f32 %v874, %v2950
        %v2952 = vpop.f32.mrb[0].mxu0
        %v2953 = vadd.f32 %v878, %v2952
        %2954 = vmatprep.mubr.bf16.mxu0 %v484
        %2955 = vmatmul.mubr.bf16.gmra.mrb[0].mxu0 %v483
        %v2956 = vpop.f32.mrb[0].mxu0
        %v2957 = vadd.f32 %v874, %v2956
        %v2958 = vpop.f32.mrb[0].mxu0
        %v2959 = vadd.f32 %v878, %v2958
        %v2960 = vpop.f32.mrb[0].mxu0
        %v2961 = vadd.f32 %v874, %v2960
        %v2962 = vpop.f32.mrb[0].mxu0
        %v2963 = vadd.f32 %v878, %v2962
        %2964 = vmatprep.mubr.bf16.mxu0 %v490
        %2965 = vmatmul.mubr.bf16.gmra.mrb[0].mxu0 %v489
        %v2966 = vpop.f32.mrb[0].mxu0
        %v2967 = vadd.f32 %v874, %v2966
        %v2968 = vpop.f32.mrb[0].mxu0
        %v2969 = vadd.f32 %v878, %v2968
        %v2970 = vpop.f32.mrb[0].mxu0
        %v2971 = vadd.f32 %v874, %v2970
        %v2972 = vpop.f32.mrb[0].mxu0
        %v2973 = vadd.f32 %v878, %v2972
        %2974 = vmatprep.mubr.bf16.mxu0 %v496
        %2975 = vmatmul.mubr.bf16.gmra.mrb[0].mxu0 %v495
        %v2976 = vpop.f32.mrb[0].mxu0
        %v2977 = vadd.f32 %v874, %v2976
        %v2978 = vpop.f32.mrb[0].mxu0
        %v2979 = vadd.f32 %v878, %v2978
        %v2980 = vpop.f32.mrb[0].mxu0
        %v2981 = vadd.f32 %v874, %v2980
        %v2982 = vpop.f32.mrb[0].mxu0
        %v2983 = vadd.f32 %v878, %v2982
        %2984 = vmatprep.mubr.bf16.mxu0 %v502
        %2985 = vmatmul.mubr.bf16.gmra.mrb[0].mxu0 %v501
        %v2986 = vpop.f32.mrb[0].mxu0
        %v2987 = vadd.f32 %v874, %v2986
        %v2988 = vpop.f32.mrb[0].mxu0
        %v2989 = vadd.f32 %v878, %v2988
        %v2990 = vpop.f32.mrb[0].mxu0
        %v2991 = vadd.f32 %v874, %v2990
        %v2992 = vpop.f32.mrb[0].mxu0
        %v2993 = vadd.f32 %v878, %v2992
        %2994 = vmatprep.mubr.bf16.mxu0 %v508
        %2995 = vmatmul.mubr.bf16.gmra.mrb[0].mxu0 %v507
        %v2996 = vpop.f32.mrb[0].mxu0
        %v2997 = vadd.f32 %v874, %v2996
        %v2998 = vpop.f32.mrb[0].mxu0
        %v2999 = vadd.f32 %v878, %v2998
        %v3000 = vpop.f32.mrb[0].mxu0
        %v3001 = vadd.f32 %v874, %v3000
        %v3002 = vpop.f32.mrb[0].mxu0
        %v3003 = vadd.f32 %v878, %v3002
        %3004 = vmatprep.mubr.bf16.mxu0 %v514
        %3005 = vmatmul.mubr.bf16.gmra.mrb[0].mxu0 %v513
        %v3006 = vpop.f32.mrb[0].mxu0
        %v3007 = vadd.f32 %v874, %v3006
        %v3008 = vpop.f32.mrb[0].mxu0
        %v3009 = vadd.f32 %v878, %v3008
        %v3010 = vpop.f32.mrb[0].mxu0
        %v3011 = vadd.f32 %v874, %v3010
        %v3012 = vpop.f32.mrb[0].mxu0
        %v3013 = vadd.f32 %v878, %v3012
        %3014 = vmatprep.mubr.bf16.mxu0 %v520
        %3015 = vmatmul.mubr.bf16.gmra.mrb[0].mxu0 %v519
        %v3016 = vpop.f32.mrb[0].mxu0
        %v3017 = vadd.f32 %v874, %v3016
        %v3018 = vpop.f32.mrb[0].mxu0
        %v3019 = vadd.f32 %v878, %v3018
        %v3020 = vpop.f32.mrb[0].mxu0
        %v3021 = vadd.f32 %v874, %v3020
        %v3022 = vpop.f32.mrb[0].mxu0
        %v3023 = vadd.f32 %v878, %v3022
        %3024 = vmatprep.mubr.bf16.mxu0 %v526
        %3025 = vmatmul.mubr.bf16.gmra.mrb[0].mxu0 %v525
        %v3026 = vpop.f32.mrb[0].mxu0
        %v3027 = vadd.f32 %v874, %v3026
        %v3028 = vpop.f32.mrb[0].mxu0
        %v3029 = vadd.f32 %v878, %v3028
        %v3030 = vpop.f32.mrb[0].mxu0
        %v3031 = vadd.f32 %v874, %v3030
        %v3032 = vpop.f32.mrb[0].mxu0
        %v3033 = vadd.f32 %v878, %v3032
        %3034 = vmatprep.mubr.bf16.mxu0 %v532
        %3035 = vmatmul.mubr.bf16.gmra.mrb[0].mxu0 %v531
        %v3036 = vpop.f32.mrb[0].mxu0
        %v3037 = vadd.f32 %v874, %v3036
        %v3038 = vpop.f32.mrb[0].mxu0
        %v3039 = vadd.f32 %v878, %v3038
        %v3040 = vpop.f32.mrb[0].mxu0
        %v3041 = vadd.f32 %v874, %v3040
        %v3042 = vpop.f32.mrb[0].mxu0
        %v3043 = vadd.f32 %v878, %v3042
        %3044 = vmatprep.mubr.bf16.mxu0 %v538
        %3045 = vmatmul.mubr.bf16.gmra.mrb[0].mxu0 %v537
        %v3046 = vpop.f32.mrb[0].mxu0
        %v3047 = vadd.f32 %v874, %v3046
        %v3048 = vpop.f32.mrb[0].mxu0
        %v3049 = vadd.f32 %v878, %v3048
        %v3050 = vpop.f32.mrb[0].mxu0
        %v3051 = vadd.f32 %v874, %v3050
        %v3052 = vpop.f32.mrb[0].mxu0
        %v3053 = vadd.f32 %v878, %v3052
        %3054 = vmatprep.mubr.bf16.mxu0 %v544
        %3055 = vmatmul.mubr.bf16.gmra.mrb[0].mxu0 %v543
        %v3056 = vpop.f32.mrb[0].mxu0
        %v3057 = vadd.f32 %v874, %v3056
        %v3058 = vpop.f32.mrb[0].mxu0
        %v3059 = vadd.f32 %v878, %v3058
        %v3060 = vpop.f32.mrb[0].mxu0
        %v3061 = vadd.f32 %v874, %v3060
        %v3062 = vpop.f32.mrb[0].mxu0
        %v3063 = vadd.f32 %v878, %v3062
        %3064 = vmatprep.mubr.bf16.mxu0 %v550
        %3065 = vmatmul.mubr.bf16.gmra.mrb[0].mxu0 %v549
        %v3066 = vpop.f32.mrb[0].mxu0
        %v3067 = vadd.f32 %v874, %v3066
        %v3068 = vpop.f32.mrb[0].mxu0
        %v3069 = vadd.f32 %v878, %v3068
        %v3070 = vpop.f32.mrb[0].mxu0
        %v3071 = vadd.f32 %v874, %v3070
        %v3072 = vpop.f32.mrb[0].mxu0
        %v3073 = vadd.f32 %v878, %v3072
        %3074 = vmatprep.mubr.bf16.mxu0 %v556
        %3075 = vmatmul.mubr.bf16.gmra.mrb[0].mxu0 %v555
        %v3076 = vpop.f32.mrb[0].mxu0
        %v3077 = vadd.f32 %v874, %v3076
        %v3078 = vpop.f32.mrb[0].mxu0
        %v3079 = vadd.f32 %v878, %v3078
        %v3080 = vpop.f32.mrb[0].mxu0
        %v3081 = vadd.f32 %v874, %v3080
        %v3082 = vpop.f32.mrb[0].mxu0
        %v3083 = vadd.f32 %v878, %v3082
        %3084 = vmatprep.mubr.bf16.mxu0 %v562
        %3085 = vmatmul.mubr.bf16.gmra.mrb[0].mxu0 %v561
        %v3086 = vpop.f32.mrb[0].mxu0
        %v3087 = vadd.f32 %v874, %v3086
        %v3088 = vpop.f32.mrb[0].mxu0
        %v3089 = vadd.f32 %v878, %v3088
        %v3090 = vpop.f32.mrb[0].mxu0
        %v3091 = vadd.f32 %v874, %v3090
        %v3092 = vpop.f32.mrb[0].mxu0
        %v3093 = vadd.f32 %v878, %v3092
        %3094 = vmatprep.mubr.bf16.mxu0 %v568
        %3095 = vmatmul.mubr.bf16.gmra.mrb[0].mxu0 %v567
        %v3096 = vpop.f32.mrb[0].mxu0
        %v3097 = vadd.f32 %v874, %v3096
        %v3098 = vpop.f32.mrb[0].mxu0
        %v3099 = vadd.f32 %v878, %v3098
        %v3100 = vpop.f32.mrb[0].mxu0
        %v3101 = vadd.f32 %v874, %v3100
        %v3102 = vpop.f32.mrb[0].mxu0
        %v3103 = vadd.f32 %v878, %v3102
        %3104 = vdwg.mxu0
        %3105 = vmatprep.subr.bf16.mxu0 %v1856
        %3106 = vmatpush1.bf16.xpose.msra.mxu0 %v1855
        %3107 = vmatprep.subr.bf16.mxu0 %v1862
        %3108 = vmatpush1.bf16.xpose.msra.mxu0 %v1861
        %3109 = vmatprep.subr.bf16.mxu0 %v1868
        %3110 = vmatpush1.bf16.xpose.msra.mxu0 %v1867
        %3111 = vmatprep.subr.bf16.mxu0 %v1874
        %3112 = vmatpush1.bf16.xpose.msra.mxu0 %v1873
        %3113 = vmatprep.subr.bf16.mxu0 %v1880
        %3114 = vmatpush1.bf16.xpose.msra.mxu0 %v1879
        %3115 = vmatprep.subr.bf16.mxu0 %v1886
        %3116 = vmatpush1.bf16.xpose.msra.mxu0 %v1885
        %3117 = vmatprep.subr.bf16.mxu0 %v1892
        %3118 = vmatpush1.bf16.xpose.msra.mxu0 %v1891
        %3119 = vmatprep.subr.bf16.mxu0 %v1898
        %3120 = vmatpush1.bf16.xpose.msra.mxu0 %v1897
        %3121 = vmatprep.subr.bf16.mxu0 %v1904
        %3122 = vmatpush1.bf16.xpose.msra.mxu0 %v1903
        %3123 = vmatprep.subr.bf16.mxu0 %v1910
        %3124 = vmatpush1.bf16.xpose.msra.mxu0 %v1909
        %3125 = vmatprep.subr.bf16.mxu0 %v1916
        %3126 = vmatpush1.bf16.xpose.msra.mxu0 %v1915
        %3127 = vmatprep.subr.bf16.mxu0 %v1922
        %3128 = vmatpush1.bf16.xpose.msra.mxu0 %v1921
        %3129 = vmatprep.subr.bf16.mxu0 %v1928
        %3130 = vmatpush1.bf16.xpose.msra.mxu0 %v1927
        %3131 = vmatprep.subr.bf16.mxu0 %v1934
        %3132 = vmatpush1.bf16.xpose.msra.mxu0 %v1933
        %3133 = vmatprep.subr.bf16.mxu0 %v1940
        %3134 = vmatpush1.bf16.xpose.msra.mxu0 %v1939
        %3135 = vmatprep.subr.bf16.mxu0 %v1946
        %3136 = vmatpush1.bf16.xpose.msra.mxu0 %v1945
        %3137 = vmatprep.mubr.bf16.mxu0 %v480
        %3138 = vmatmul.mubr.bf16.gmra.mrb[0].mxu0 %v479
        %v3139 = vpop.f32.mrb[0].mxu0
        %v3140 = vadd.f32 %v2947, %v3139
        %v3141 = vpop.f32.mrb[0].mxu0
        %v3142 = vadd.f32 %v2949, %v3141
        %v3143 = vpop.f32.mrb[0].mxu0
        %v3144 = vadd.f32 %v2951, %v3143
        %v3145 = vpop.f32.mrb[0].mxu0
        %v3146 = vadd.f32 %v2953, %v3145
        %3147 = vmatprep.mubr.bf16.mxu0 %v486
        %3148 = vmatmul.mubr.bf16.gmra.mrb[0].mxu0 %v485
        %v3149 = vpop.f32.mrb[0].mxu0
        %v3150 = vadd.f32 %v2957, %v3149
        %v3151 = vpop.f32.mrb[0].mxu0
        %v3152 = vadd.f32 %v2959, %v3151
        %v3153 = vpop.f32.mrb[0].mxu0
        %v3154 = vadd.f32 %v2961, %v3153
        %v3155 = vpop.f32.mrb[0].mxu0
        %v3156 = vadd.f32 %v2963, %v3155
        %3157 = vmatprep.mubr.bf16.mxu0 %v492
        %3158 = vmatmul.mubr.bf16.gmra.mrb[0].mxu0 %v491
        %v3159 = vpop.f32.mrb[0].mxu0
        %v3160 = vadd.f32 %v2967, %v3159
        %v3161 = vpop.f32.mrb[0].mxu0
        %v3162 = vadd.f32 %v2969, %v3161
        %v3163 = vpop.f32.mrb[0].mxu0
        %v3164 = vadd.f32 %v2971, %v3163
        %v3165 = vpop.f32.mrb[0].mxu0
        %v3166 = vadd.f32 %v2973, %v3165
        %3167 = vmatprep.mubr.bf16.mxu0 %v498
        %3168 = vmatmul.mubr.bf16.gmra.mrb[0].mxu0 %v497
        %v3169 = vpop.f32.mrb[0].mxu0
        %v3170 = vadd.f32 %v2977, %v3169
        %v3171 = vpop.f32.mrb[0].mxu0
        %v3172 = vadd.f32 %v2979, %v3171
        %v3173 = vpop.f32.mrb[0].mxu0
        %v3174 = vadd.f32 %v2981, %v3173
        %v3175 = vpop.f32.mrb[0].mxu0
        %v3176 = vadd.f32 %v2983, %v3175
        %3177 = vmatprep.mubr.bf16.mxu0 %v504
        %3178 = vmatmul.mubr.bf16.gmra.mrb[0].mxu0 %v503
        %v3179 = vpop.f32.mrb[0].mxu0
        %v3180 = vadd.f32 %v2987, %v3179
        %v3181 = vpop.f32.mrb[0].mxu0
        %v3182 = vadd.f32 %v2989, %v3181
        %v3183 = vpop.f32.mrb[0].mxu0
        %v3184 = vadd.f32 %v2991, %v3183
        %v3185 = vpop.f32.mrb[0].mxu0
        %v3186 = vadd.f32 %v2993, %v3185
        %3187 = vmatprep.mubr.bf16.mxu0 %v510
        %3188 = vmatmul.mubr.bf16.gmra.mrb[0].mxu0 %v509
        %v3189 = vpop.f32.mrb[0].mxu0
        %v3190 = vadd.f32 %v2997, %v3189
        %v3191 = vpop.f32.mrb[0].mxu0
        %v3192 = vadd.f32 %v2999, %v3191
        %v3193 = vpop.f32.mrb[0].mxu0
        %v3194 = vadd.f32 %v3001, %v3193
        %v3195 = vpop.f32.mrb[0].mxu0
        %v3196 = vadd.f32 %v3003, %v3195
        %3197 = vmatprep.mubr.bf16.mxu0 %v516
        %3198 = vmatmul.mubr.bf16.gmra.mrb[0].mxu0 %v515
        %v3199 = vpop.f32.mrb[0].mxu0
        %v3200 = vadd.f32 %v3007, %v3199
        %v3201 = vpop.f32.mrb[0].mxu0
        %v3202 = vadd.f32 %v3009, %v3201
        %v3203 = vpop.f32.mrb[0].mxu0
        %v3204 = vadd.f32 %v3011, %v3203
        %v3205 = vpop.f32.mrb[0].mxu0
        %v3206 = vadd.f32 %v3013, %v3205
        %3207 = vmatprep.mubr.bf16.mxu0 %v522
        %3208 = vmatmul.mubr.bf16.gmra.mrb[0].mxu0 %v521
        %v3209 = vpop.f32.mrb[0].mxu0
        %v3210 = vadd.f32 %v3017, %v3209
        %v3211 = vpop.f32.mrb[0].mxu0
        %v3212 = vadd.f32 %v3019, %v3211
        %v3213 = vpop.f32.mrb[0].mxu0
        %v3214 = vadd.f32 %v3021, %v3213
        %v3215 = vpop.f32.mrb[0].mxu0
        %v3216 = vadd.f32 %v3023, %v3215
        %3217 = vmatprep.mubr.bf16.mxu0 %v528
        %3218 = vmatmul.mubr.bf16.gmra.mrb[0].mxu0 %v527
        %v3219 = vpop.f32.mrb[0].mxu0
        %v3220 = vadd.f32 %v3027, %v3219
        %v3221 = vpop.f32.mrb[0].mxu0
        %v3222 = vadd.f32 %v3029, %v3221
        %v3223 = vpop.f32.mrb[0].mxu0
        %v3224 = vadd.f32 %v3031, %v3223
        %v3225 = vpop.f32.mrb[0].mxu0
        %v3226 = vadd.f32 %v3033, %v3225
        %3227 = vmatprep.mubr.bf16.mxu0 %v534
        %3228 = vmatmul.mubr.bf16.gmra.mrb[0].mxu0 %v533
        %v3229 = vpop.f32.mrb[0].mxu0
        %v3230 = vadd.f32 %v3037, %v3229
        %v3231 = vpop.f32.mrb[0].mxu0
        %v3232 = vadd.f32 %v3039, %v3231
        %v3233 = vpop.f32.mrb[0].mxu0
        %v3234 = vadd.f32 %v3041, %v3233
        %v3235 = vpop.f32.mrb[0].mxu0
        %v3236 = vadd.f32 %v3043, %v3235
        %3237 = vmatprep.mubr.bf16.mxu0 %v540
        %3238 = vmatmul.mubr.bf16.gmra.mrb[0].mxu0 %v539
        %v3239 = vpop.f32.mrb[0].mxu0
        %v3240 = vadd.f32 %v3047, %v3239
        %v3241 = vpop.f32.mrb[0].mxu0
        %v3242 = vadd.f32 %v3049, %v3241
        %v3243 = vpop.f32.mrb[0].mxu0
        %v3244 = vadd.f32 %v3051, %v3243
        %v3245 = vpop.f32.mrb[0].mxu0
        %v3246 = vadd.f32 %v3053, %v3245
        %3247 = vmatprep.mubr.bf16.mxu0 %v546
        %3248 = vmatmul.mubr.bf16.gmra.mrb[0].mxu0 %v545
        %v3249 = vpop.f32.mrb[0].mxu0
        %v3250 = vadd.f32 %v3057, %v3249
        %v3251 = vpop.f32.mrb[0].mxu0
        %v3252 = vadd.f32 %v3059, %v3251
        %v3253 = vpop.f32.mrb[0].mxu0
        %v3254 = vadd.f32 %v3061, %v3253
        %v3255 = vpop.f32.mrb[0].mxu0
        %v3256 = vadd.f32 %v3063, %v3255
        %3257 = vmatprep.mubr.bf16.mxu0 %v552
        %3258 = vmatmul.mubr.bf16.gmra.mrb[0].mxu0 %v551
        %v3259 = vpop.f32.mrb[0].mxu0
        %v3260 = vadd.f32 %v3067, %v3259
        %v3261 = vpop.f32.mrb[0].mxu0
        %v3262 = vadd.f32 %v3069, %v3261
        %v3263 = vpop.f32.mrb[0].mxu0
        %v3264 = vadd.f32 %v3071, %v3263
        %v3265 = vpop.f32.mrb[0].mxu0
        %v3266 = vadd.f32 %v3073, %v3265
        %3267 = vmatprep.mubr.bf16.mxu0 %v558
        %3268 = vmatmul.mubr.bf16.gmra.mrb[0].mxu0 %v557
        %v3269 = vpop.f32.mrb[0].mxu0
        %v3270 = vadd.f32 %v3077, %v3269
        %v3271 = vpop.f32.mrb[0].mxu0
        %v3272 = vadd.f32 %v3079, %v3271
        %v3273 = vpop.f32.mrb[0].mxu0
        %v3274 = vadd.f32 %v3081, %v3273
        %v3275 = vpop.f32.mrb[0].mxu0
        %v3276 = vadd.f32 %v3083, %v3275
        %3277 = vmatprep.mubr.bf16.mxu0 %v564
        %3278 = vmatmul.mubr.bf16.gmra.mrb[0].mxu0 %v563
        %v3279 = vpop.f32.mrb[0].mxu0
        %v3280 = vadd.f32 %v3087, %v3279
        %v3281 = vpop.f32.mrb[0].mxu0
        %v3282 = vadd.f32 %v3089, %v3281
        %v3283 = vpop.f32.mrb[0].mxu0
        %v3284 = vadd.f32 %v3091, %v3283
        %v3285 = vpop.f32.mrb[0].mxu0
        %v3286 = vadd.f32 %v3093, %v3285
        %3287 = vmatprep.mubr.bf16.mxu0 %v570
        %3288 = vmatmul.mubr.bf16.gmra.mrb[0].mxu0 %v569
        %v3289 = vpop.f32.mrb[0].mxu0
        %v3290 = vadd.f32 %v3097, %v3289
        %v3291 = vpop.f32.mrb[0].mxu0
        %v3292 = vadd.f32 %v3099, %v3291
        %v3293 = vpop.f32.mrb[0].mxu0
        %v3294 = vadd.f32 %v3101, %v3293
        %v3295 = vpop.f32.mrb[0].mxu0
        %v3296 = vadd.f32 %v3103, %v3295
        %3297 = vdwg.mxu0
        %3298 = vmatprep.subr.bf16.mxu0 %v1858
        %3299 = vmatpush1.bf16.xpose.msra.mxu0 %v1857
        %3300 = vmatprep.subr.bf16.mxu0 %v1864
        %3301 = vmatpush1.bf16.xpose.msra.mxu0 %v1863
        %3302 = vmatprep.subr.bf16.mxu0 %v1870
        %3303 = vmatpush1.bf16.xpose.msra.mxu0 %v1869
        %3304 = vmatprep.subr.bf16.mxu0 %v1876
        %3305 = vmatpush1.bf16.xpose.msra.mxu0 %v1875
        %3306 = vmatprep.subr.bf16.mxu0 %v1882
        %3307 = vmatpush1.bf16.xpose.msra.mxu0 %v1881
        %3308 = vmatprep.subr.bf16.mxu0 %v1888
        %3309 = vmatpush1.bf16.xpose.msra.mxu0 %v1887
        %3310 = vmatprep.subr.bf16.mxu0 %v1894
        %3311 = vmatpush1.bf16.xpose.msra.mxu0 %v1893
        %3312 = vmatprep.subr.bf16.mxu0 %v1900
        %3313 = vmatpush1.bf16.xpose.msra.mxu0 %v1899
        %3314 = vmatprep.subr.bf16.mxu0 %v1906
        %3315 = vmatpush1.bf16.xpose.msra.mxu0 %v1905
        %3316 = vmatprep.subr.bf16.mxu0 %v1912
        %3317 = vmatpush1.bf16.xpose.msra.mxu0 %v1911
        %3318 = vmatprep.subr.bf16.mxu0 %v1918
        %3319 = vmatpush1.bf16.xpose.msra.mxu0 %v1917
        %3320 = vmatprep.subr.bf16.mxu0 %v1924
        %3321 = vmatpush1.bf16.xpose.msra.mxu0 %v1923
        %3322 = vmatprep.subr.bf16.mxu0 %v1930
        %3323 = vmatpush1.bf16.xpose.msra.mxu0 %v1929
        %3324 = vmatprep.subr.bf16.mxu0 %v1936
        %3325 = vmatpush1.bf16.xpose.msra.mxu0 %v1935
        %3326 = vmatprep.subr.bf16.mxu0 %v1942
        %3327 = vmatpush1.bf16.xpose.msra.mxu0 %v1941
        %3328 = vmatprep.subr.bf16.mxu0 %v1948
        %3329 = vmatpush1.bf16.xpose.msra.mxu0 %v1947
        %3330 = vmatprep.mubr.bf16.mxu0 %v482
        %3331 = vmatmul.mubr.bf16.gmra.mrb[0].mxu0 %v481
        %v3332 = vpop.f32.mrb[0].mxu0
        %v3333 = vadd.f32 %v3140, %v3332
        %v3334 = vpop.f32.mrb[0].mxu0
        %v3335 = vadd.f32 %v3142, %v3334
        %v3336 = vpop.f32.mrb[0].mxu0
        %v3337 = vadd.f32 %v3144, %v3336
        %v3338 = vpop.f32.mrb[0].mxu0
        %v3339 = vadd.f32 %v3146, %v3338
        %3340 = vmatprep.mubr.bf16.mxu0 %v488
        %3341 = vmatmul.mubr.bf16.gmra.mrb[0].mxu0 %v487
        %v3342 = vpop.f32.mrb[0].mxu0
        %v3343 = vadd.f32 %v3150, %v3342
        %v3344 = vpop.f32.mrb[0].mxu0
        %v3345 = vadd.f32 %v3152, %v3344
        %v3346 = vpop.f32.mrb[0].mxu0
        %v3347 = vadd.f32 %v3154, %v3346
        %v3348 = vpop.f32.mrb[0].mxu0
        %v3349 = vadd.f32 %v3156, %v3348
        %3350 = vmatprep.mubr.bf16.mxu0 %v494
        %3351 = vmatmul.mubr.bf16.gmra.mrb[0].mxu0 %v493
        %v3352 = vpop.f32.mrb[0].mxu0
        %v3353 = vadd.f32 %v3160, %v3352
        %v3354 = vpop.f32.mrb[0].mxu0
        %v3355 = vadd.f32 %v3162, %v3354
        %v3356 = vpop.f32.mrb[0].mxu0
        %v3357 = vadd.f32 %v3164, %v3356
        %v3358 = vpop.f32.mrb[0].mxu0
        %v3359 = vadd.f32 %v3166, %v3358
        %3360 = vmatprep.mubr.bf16.mxu0 %v500
        %3361 = vmatmul.mubr.bf16.gmra.mrb[0].mxu0 %v499
        %v3362 = vpop.f32.mrb[0].mxu0
        %v3363 = vadd.f32 %v3170, %v3362
        %v3364 = vpop.f32.mrb[0].mxu0
        %v3365 = vadd.f32 %v3172, %v3364
        %v3366 = vpop.f32.mrb[0].mxu0
        %v3367 = vadd.f32 %v3174, %v3366
        %v3368 = vpop.f32.mrb[0].mxu0
        %v3369 = vadd.f32 %v3176, %v3368
        %3370 = vmatprep.mubr.bf16.mxu0 %v506
        %3371 = vmatmul.mubr.bf16.gmra.mrb[0].mxu0 %v505
        %v3372 = vpop.f32.mrb[0].mxu0
        %v3373 = vadd.f32 %v3180, %v3372
        %v3374 = vpop.f32.mrb[0].mxu0
        %v3375 = vadd.f32 %v3182, %v3374
        %v3376 = vpop.f32.mrb[0].mxu0
        %v3377 = vadd.f32 %v3184, %v3376
        %v3378 = vpop.f32.mrb[0].mxu0
        %v3379 = vadd.f32 %v3186, %v3378
        %3380 = vmatprep.mubr.bf16.mxu0 %v512
        %3381 = vmatmul.mubr.bf16.gmra.mrb[0].mxu0 %v511
        %v3382 = vpop.f32.mrb[0].mxu0
        %v3383 = vadd.f32 %v3190, %v3382
        %v3384 = vpop.f32.mrb[0].mxu0
        %v3385 = vadd.f32 %v3192, %v3384
        %v3386 = vpop.f32.mrb[0].mxu0
        %v3387 = vadd.f32 %v3194, %v3386
        %v3388 = vpop.f32.mrb[0].mxu0
        %v3389 = vadd.f32 %v3196, %v3388
        %3390 = vmatprep.mubr.bf16.mxu0 %v518
        %3391 = vmatmul.mubr.bf16.gmra.mrb[0].mxu0 %v517
        %v3392 = vpop.f32.mrb[0].mxu0
        %v3393 = vadd.f32 %v3200, %v3392
        %v3394 = vpop.f32.mrb[0].mxu0
        %v3395 = vadd.f32 %v3202, %v3394
        %v3396 = vpop.f32.mrb[0].mxu0
        %v3397 = vadd.f32 %v3204, %v3396
        %v3398 = vpop.f32.mrb[0].mxu0
        %v3399 = vadd.f32 %v3206, %v3398
        %3400 = vmatprep.mubr.bf16.mxu0 %v524
        %3401 = vmatmul.mubr.bf16.gmra.mrb[0].mxu0 %v523
        %v3402 = vpop.f32.mrb[0].mxu0
        %v3403 = vadd.f32 %v3210, %v3402
        %v3404 = vpop.f32.mrb[0].mxu0
        %v3405 = vadd.f32 %v3212, %v3404
        %v3406 = vpop.f32.mrb[0].mxu0
        %v3407 = vadd.f32 %v3214, %v3406
        %v3408 = vpop.f32.mrb[0].mxu0
        %v3409 = vadd.f32 %v3216, %v3408
        %3410 = vmatprep.mubr.bf16.mxu0 %v530
        %3411 = vmatmul.mubr.bf16.gmra.mrb[0].mxu0 %v529
        %v3412 = vpop.f32.mrb[0].mxu0
        %v3413 = vadd.f32 %v3220, %v3412
        %v3414 = vpop.f32.mrb[0].mxu0
        %v3415 = vadd.f32 %v3222, %v3414
        %v3416 = vpop.f32.mrb[0].mxu0
        %v3417 = vadd.f32 %v3224, %v3416
        %v3418 = vpop.f32.mrb[0].mxu0
        %v3419 = vadd.f32 %v3226, %v3418
        %3420 = vmatprep.mubr.bf16.mxu0 %v536
        %3421 = vmatmul.mubr.bf16.gmra.mrb[0].mxu0 %v535
        %v3422 = vpop.f32.mrb[0].mxu0
        %v3423 = vadd.f32 %v3230, %v3422
        %v3424 = vpop.f32.mrb[0].mxu0
        %v3425 = vadd.f32 %v3232, %v3424
        %v3426 = vpop.f32.mrb[0].mxu0
        %v3427 = vadd.f32 %v3234, %v3426
        %v3428 = vpop.f32.mrb[0].mxu0
        %v3429 = vadd.f32 %v3236, %v3428
        %3430 = vmatprep.mubr.bf16.mxu0 %v542
        %3431 = vmatmul.mubr.bf16.gmra.mrb[0].mxu0 %v541
        %v3432 = vpop.f32.mrb[0].mxu0
        %v3433 = vadd.f32 %v3240, %v3432
        %v3434 = vpop.f32.mrb[0].mxu0
        %v3435 = vadd.f32 %v3242, %v3434
        %v3436 = vpop.f32.mrb[0].mxu0
        %v3437 = vadd.f32 %v3244, %v3436
        %v3438 = vpop.f32.mrb[0].mxu0
        %v3439 = vadd.f32 %v3246, %v3438
        %3440 = vmatprep.mubr.bf16.mxu0 %v548
        %3441 = vmatmul.mubr.bf16.gmra.mrb[0].mxu0 %v547
        %v3442 = vpop.f32.mrb[0].mxu0
        %v3443 = vadd.f32 %v3250, %v3442
        %v3444 = vpop.f32.mrb[0].mxu0
        %v3445 = vadd.f32 %v3252, %v3444
        %v3446 = vpop.f32.mrb[0].mxu0
        %v3447 = vadd.f32 %v3254, %v3446
        %v3448 = vpop.f32.mrb[0].mxu0
        %v3449 = vadd.f32 %v3256, %v3448
        %3450 = vmatprep.mubr.bf16.mxu0 %v554
        %3451 = vmatmul.mubr.bf16.gmra.mrb[0].mxu0 %v553
        %v3452 = vpop.f32.mrb[0].mxu0
        %v3453 = vadd.f32 %v3260, %v3452
        %v3454 = vpop.f32.mrb[0].mxu0
        %v3455 = vadd.f32 %v3262, %v3454
        %v3456 = vpop.f32.mrb[0].mxu0
        %v3457 = vadd.f32 %v3264, %v3456
        %v3458 = vpop.f32.mrb[0].mxu0
        %v3459 = vadd.f32 %v3266, %v3458
        %3460 = vmatprep.mubr.bf16.mxu0 %v560
        %3461 = vmatmul.mubr.bf16.gmra.mrb[0].mxu0 %v559
        %v3462 = vpop.f32.mrb[0].mxu0
        %v3463 = vadd.f32 %v3270, %v3462
        %v3464 = vpop.f32.mrb[0].mxu0
        %v3465 = vadd.f32 %v3272, %v3464
        %v3466 = vpop.f32.mrb[0].mxu0
        %v3467 = vadd.f32 %v3274, %v3466
        %v3468 = vpop.f32.mrb[0].mxu0
        %v3469 = vadd.f32 %v3276, %v3468
        %3470 = vmatprep.mubr.bf16.mxu0 %v566
        %3471 = vmatmul.mubr.bf16.gmra.mrb[0].mxu0 %v565
        %v3472 = vpop.f32.mrb[0].mxu0
        %v3473 = vadd.f32 %v3280, %v3472
        %v3474 = vpop.f32.mrb[0].mxu0
        %v3475 = vadd.f32 %v3282, %v3474
        %v3476 = vpop.f32.mrb[0].mxu0
        %v3477 = vadd.f32 %v3284, %v3476
        %v3478 = vpop.f32.mrb[0].mxu0
        %v3479 = vadd.f32 %v3286, %v3478
        %3480 = vmatprep.mubr.bf16.mxu0 %v572
        %3481 = vmatmul.mubr.bf16.gmra.mrb[0].mxu0 %v571
        %v3482 = vpop.f32.mrb[0].mxu0
        %v3483 = vadd.f32 %v3290, %v3482
        %v3484 = vpop.f32.mrb[0].mxu0
        %v3485 = vadd.f32 %v3292, %v3484
        %v3486 = vpop.f32.mrb[0].mxu0
        %v3487 = vadd.f32 %v3294, %v3486
        %v3488 = vpop.f32.mrb[0].mxu0
        %v3489 = vadd.f32 %v3296, %v3488
        %3490 = vdwg.mxu0
        %3491 = vmatprep.subr.bf16.mxu0 %v1950
        %3492 = vmatpush1.bf16.xpose.msra.mxu0 %v1949
        %3493 = vmatprep.subr.bf16.mxu0 %v1956
        %3494 = vmatpush1.bf16.xpose.msra.mxu0 %v1955
        %3495 = vmatprep.subr.bf16.mxu0 %v1962
        %3496 = vmatpush1.bf16.xpose.msra.mxu0 %v1961
        %3497 = vmatprep.subr.bf16.mxu0 %v1968
        %3498 = vmatpush1.bf16.xpose.msra.mxu0 %v1967
        %3499 = vmatprep.subr.bf16.mxu0 %v1974
        %3500 = vmatpush1.bf16.xpose.msra.mxu0 %v1973
        %3501 = vmatprep.subr.bf16.mxu0 %v1980
        %3502 = vmatpush1.bf16.xpose.msra.mxu0 %v1979
        %3503 = vmatprep.subr.bf16.mxu0 %v1986
        %3504 = vmatpush1.bf16.xpose.msra.mxu0 %v1985
        %3505 = vmatprep.subr.bf16.mxu0 %v1992
        %3506 = vmatpush1.bf16.xpose.msra.mxu0 %v1991
        %3507 = vmatprep.subr.bf16.mxu0 %v1998
        %3508 = vmatpush1.bf16.xpose.msra.mxu0 %v1997
        %3509 = vmatprep.subr.bf16.mxu0 %v2004
        %3510 = vmatpush1.bf16.xpose.msra.mxu0 %v2003
        %3511 = vmatprep.subr.bf16.mxu0 %v2010
        %3512 = vmatpush1.bf16.xpose.msra.mxu0 %v2009
        %3513 = vmatprep.subr.bf16.mxu0 %v2016
        %3514 = vmatpush1.bf16.xpose.msra.mxu0 %v2015
        %3515 = vmatprep.subr.bf16.mxu0 %v2022
        %3516 = vmatpush1.bf16.xpose.msra.mxu0 %v2021
        %3517 = vmatprep.subr.bf16.mxu0 %v2028
        %3518 = vmatpush1.bf16.xpose.msra.mxu0 %v2027
        %3519 = vmatprep.subr.bf16.mxu0 %v2034
        %3520 = vmatpush1.bf16.xpose.msra.mxu0 %v2033
        %3521 = vmatprep.subr.bf16.mxu0 %v2040
        %3522 = vmatpush1.bf16.xpose.msra.mxu0 %v2039
        %3523 = vmatprep.mubr.bf16.mxu0 %v478
        %3524 = vmatmul.mubr.bf16.gmra.mrb[0].mxu0 %v477
        %v3525 = vpop.f32.mrb[0].mxu0
        %v3526 = vadd.f32 %v882, %v3525
        %v3527 = vpop.f32.mrb[0].mxu0
        %v3528 = vadd.f32 %v886, %v3527
        %v3529 = vpop.f32.mrb[0].mxu0
        %v3530 = vadd.f32 %v882, %v3529
        %v3531 = vpop.f32.mrb[0].mxu0
        %v3532 = vadd.f32 %v886, %v3531
        %3533 = vmatprep.mubr.bf16.mxu0 %v484
        %3534 = vmatmul.mubr.bf16.gmra.mrb[0].mxu0 %v483
        %v3535 = vpop.f32.mrb[0].mxu0
        %v3536 = vadd.f32 %v882, %v3535
        %v3537 = vpop.f32.mrb[0].mxu0
        %v3538 = vadd.f32 %v886, %v3537
        %v3539 = vpop.f32.mrb[0].mxu0
        %v3540 = vadd.f32 %v882, %v3539
        %v3541 = vpop.f32.mrb[0].mxu0
        %v3542 = vadd.f32 %v886, %v3541
        %3543 = vmatprep.mubr.bf16.mxu0 %v490
        %3544 = vmatmul.mubr.bf16.gmra.mrb[0].mxu0 %v489
        %v3545 = vpop.f32.mrb[0].mxu0
        %v3546 = vadd.f32 %v882, %v3545
        %v3547 = vpop.f32.mrb[0].mxu0
        %v3548 = vadd.f32 %v886, %v3547
        %v3549 = vpop.f32.mrb[0].mxu0
        %v3550 = vadd.f32 %v882, %v3549
        %v3551 = vpop.f32.mrb[0].mxu0
        %v3552 = vadd.f32 %v886, %v3551
        %3553 = vmatprep.mubr.bf16.mxu0 %v496
        %3554 = vmatmul.mubr.bf16.gmra.mrb[0].mxu0 %v495
        %v3555 = vpop.f32.mrb[0].mxu0
        %v3556 = vadd.f32 %v882, %v3555
        %v3557 = vpop.f32.mrb[0].mxu0
        %v3558 = vadd.f32 %v886, %v3557
        %v3559 = vpop.f32.mrb[0].mxu0
        %v3560 = vadd.f32 %v882, %v3559
        %v3561 = vpop.f32.mrb[0].mxu0
        %v3562 = vadd.f32 %v886, %v3561
        %3563 = vmatprep.mubr.bf16.mxu0 %v502
        %3564 = vmatmul.mubr.bf16.gmra.mrb[0].mxu0 %v501
        %v3565 = vpop.f32.mrb[0].mxu0
        %v3566 = vadd.f32 %v882, %v3565
        %v3567 = vpop.f32.mrb[0].mxu0
        %v3568 = vadd.f32 %v886, %v3567
        %v3569 = vpop.f32.mrb[0].mxu0
        %v3570 = vadd.f32 %v882, %v3569
        %v3571 = vpop.f32.mrb[0].mxu0
        %v3572 = vadd.f32 %v886, %v3571
        %3573 = vmatprep.mubr.bf16.mxu0 %v508
        %3574 = vmatmul.mubr.bf16.gmra.mrb[0].mxu0 %v507
        %v3575 = vpop.f32.mrb[0].mxu0
        %v3576 = vadd.f32 %v882, %v3575
        %v3577 = vpop.f32.mrb[0].mxu0
        %v3578 = vadd.f32 %v886, %v3577
        %v3579 = vpop.f32.mrb[0].mxu0
        %v3580 = vadd.f32 %v882, %v3579
        %v3581 = vpop.f32.mrb[0].mxu0
        %v3582 = vadd.f32 %v886, %v3581
        %3583 = vmatprep.mubr.bf16.mxu0 %v514
        %3584 = vmatmul.mubr.bf16.gmra.mrb[0].mxu0 %v513
        %v3585 = vpop.f32.mrb[0].mxu0
        %v3586 = vadd.f32 %v882, %v3585
        %v3587 = vpop.f32.mrb[0].mxu0
        %v3588 = vadd.f32 %v886, %v3587
        %v3589 = vpop.f32.mrb[0].mxu0
        %v3590 = vadd.f32 %v882, %v3589
        %v3591 = vpop.f32.mrb[0].mxu0
        %v3592 = vadd.f32 %v886, %v3591
        %3593 = vmatprep.mubr.bf16.mxu0 %v520
        %3594 = vmatmul.mubr.bf16.gmra.mrb[0].mxu0 %v519
        %v3595 = vpop.f32.mrb[0].mxu0
        %v3596 = vadd.f32 %v882, %v3595
        %v3597 = vpop.f32.mrb[0].mxu0
        %v3598 = vadd.f32 %v886, %v3597
        %v3599 = vpop.f32.mrb[0].mxu0
        %v3600 = vadd.f32 %v882, %v3599
        %v3601 = vpop.f32.mrb[0].mxu0
        %v3602 = vadd.f32 %v886, %v3601
        %3603 = vmatprep.mubr.bf16.mxu0 %v526
        %3604 = vmatmul.mubr.bf16.gmra.mrb[0].mxu0 %v525
        %v3605 = vpop.f32.mrb[0].mxu0
        %v3606 = vadd.f32 %v882, %v3605
        %v3607 = vpop.f32.mrb[0].mxu0
        %v3608 = vadd.f32 %v886, %v3607
        %v3609 = vpop.f32.mrb[0].mxu0
        %v3610 = vadd.f32 %v882, %v3609
        %v3611 = vpop.f32.mrb[0].mxu0
        %v3612 = vadd.f32 %v886, %v3611
        %3613 = vmatprep.mubr.bf16.mxu0 %v532
        %3614 = vmatmul.mubr.bf16.gmra.mrb[0].mxu0 %v531
        %v3615 = vpop.f32.mrb[0].mxu0
        %v3616 = vadd.f32 %v882, %v3615
        %v3617 = vpop.f32.mrb[0].mxu0
        %v3618 = vadd.f32 %v886, %v3617
        %v3619 = vpop.f32.mrb[0].mxu0
        %v3620 = vadd.f32 %v882, %v3619
        %v3621 = vpop.f32.mrb[0].mxu0
        %v3622 = vadd.f32 %v886, %v3621
        %3623 = vmatprep.mubr.bf16.mxu0 %v538
        %3624 = vmatmul.mubr.bf16.gmra.mrb[0].mxu0 %v537
        %v3625 = vpop.f32.mrb[0].mxu0
        %v3626 = vadd.f32 %v882, %v3625
        %v3627 = vpop.f32.mrb[0].mxu0
        %v3628 = vadd.f32 %v886, %v3627
        %v3629 = vpop.f32.mrb[0].mxu0
        %v3630 = vadd.f32 %v882, %v3629
        %v3631 = vpop.f32.mrb[0].mxu0
        %v3632 = vadd.f32 %v886, %v3631
        %3633 = vmatprep.mubr.bf16.mxu0 %v544
        %3634 = vmatmul.mubr.bf16.gmra.mrb[0].mxu0 %v543
        %v3635 = vpop.f32.mrb[0].mxu0
        %v3636 = vadd.f32 %v882, %v3635
        %v3637 = vpop.f32.mrb[0].mxu0
        %v3638 = vadd.f32 %v886, %v3637
        %v3639 = vpop.f32.mrb[0].mxu0
        %v3640 = vadd.f32 %v882, %v3639
        %v3641 = vpop.f32.mrb[0].mxu0
        %v3642 = vadd.f32 %v886, %v3641
        %3643 = vmatprep.mubr.bf16.mxu0 %v550
        %3644 = vmatmul.mubr.bf16.gmra.mrb[0].mxu0 %v549
        %v3645 = vpop.f32.mrb[0].mxu0
        %v3646 = vadd.f32 %v882, %v3645
        %v3647 = vpop.f32.mrb[0].mxu0
        %v3648 = vadd.f32 %v886, %v3647
        %v3649 = vpop.f32.mrb[0].mxu0
        %v3650 = vadd.f32 %v882, %v3649
        %v3651 = vpop.f32.mrb[0].mxu0
        %v3652 = vadd.f32 %v886, %v3651
        %3653 = vmatprep.mubr.bf16.mxu0 %v556
        %3654 = vmatmul.mubr.bf16.gmra.mrb[0].mxu0 %v555
        %v3655 = vpop.f32.mrb[0].mxu0
        %v3656 = vadd.f32 %v882, %v3655
        %v3657 = vpop.f32.mrb[0].mxu0
        %v3658 = vadd.f32 %v886, %v3657
        %v3659 = vpop.f32.mrb[0].mxu0
        %v3660 = vadd.f32 %v882, %v3659
        %v3661 = vpop.f32.mrb[0].mxu0
        %v3662 = vadd.f32 %v886, %v3661
        %3663 = vmatprep.mubr.bf16.mxu0 %v562
        %3664 = vmatmul.mubr.bf16.gmra.mrb[0].mxu0 %v561
        %v3665 = vpop.f32.mrb[0].mxu0
        %v3666 = vadd.f32 %v882, %v3665
        %v3667 = vpop.f32.mrb[0].mxu0
        %v3668 = vadd.f32 %v886, %v3667
        %v3669 = vpop.f32.mrb[0].mxu0
        %v3670 = vadd.f32 %v882, %v3669
        %v3671 = vpop.f32.mrb[0].mxu0
        %v3672 = vadd.f32 %v886, %v3671
        %3673 = vmatprep.mubr.bf16.mxu0 %v568
        %3674 = vmatmul.mubr.bf16.gmra.mrb[0].mxu0 %v567
        %v3675 = vpop.f32.mrb[0].mxu0
        %v3676 = vadd.f32 %v882, %v3675
        %v3677 = vpop.f32.mrb[0].mxu0
        %v3678 = vadd.f32 %v886, %v3677
        %v3679 = vpop.f32.mrb[0].mxu0
        %v3680 = vadd.f32 %v882, %v3679
        %v3681 = vpop.f32.mrb[0].mxu0
        %v3682 = vadd.f32 %v886, %v3681
        %3683 = vdwg.mxu0
        %3684 = vmatprep.subr.bf16.mxu0 %v1952
        %3685 = vmatpush1.bf16.xpose.msra.mxu0 %v1951
        %3686 = vmatprep.subr.bf16.mxu0 %v1958
        %3687 = vmatpush1.bf16.xpose.msra.mxu0 %v1957
        %3688 = vmatprep.subr.bf16.mxu0 %v1964
        %3689 = vmatpush1.bf16.xpose.msra.mxu0 %v1963
        %3690 = vmatprep.subr.bf16.mxu0 %v1970
        %3691 = vmatpush1.bf16.xpose.msra.mxu0 %v1969
        %3692 = vmatprep.subr.bf16.mxu0 %v1976
        %3693 = vmatpush1.bf16.xpose.msra.mxu0 %v1975
        %3694 = vmatprep.subr.bf16.mxu0 %v1982
        %3695 = vmatpush1.bf16.xpose.msra.mxu0 %v1981
        %3696 = vmatprep.subr.bf16.mxu0 %v1988
        %3697 = vmatpush1.bf16.xpose.msra.mxu0 %v1987
        %3698 = vmatprep.subr.bf16.mxu0 %v1994
        %3699 = vmatpush1.bf16.xpose.msra.mxu0 %v1993
        %3700 = vmatprep.subr.bf16.mxu0 %v2000
        %3701 = vmatpush1.bf16.xpose.msra.mxu0 %v1999
        %3702 = vmatprep.subr.bf16.mxu0 %v2006
        %3703 = vmatpush1.bf16.xpose.msra.mxu0 %v2005
        %3704 = vmatprep.subr.bf16.mxu0 %v2012
        %3705 = vmatpush1.bf16.xpose.msra.mxu0 %v2011
        %3706 = vmatprep.subr.bf16.mxu0 %v2018
        %3707 = vmatpush1.bf16.xpose.msra.mxu0 %v2017
        %3708 = vmatprep.subr.bf16.mxu0 %v2024
        %3709 = vmatpush1.bf16.xpose.msra.mxu0 %v2023
        %3710 = vmatprep.subr.bf16.mxu0 %v2030
        %3711 = vmatpush1.bf16.xpose.msra.mxu0 %v2029
        %3712 = vmatprep.subr.bf16.mxu0 %v2036
        %3713 = vmatpush1.bf16.xpose.msra.mxu0 %v2035
        %3714 = vmatprep.subr.bf16.mxu0 %v2042
        %3715 = vmatpush1.bf16.xpose.msra.mxu0 %v2041
        %3716 = vmatprep.mubr.bf16.mxu0 %v480
        %3717 = vmatmul.mubr.bf16.gmra.mrb[0].mxu0 %v479
        %v3718 = vpop.f32.mrb[0].mxu0
        %v3719 = vadd.f32 %v3526, %v3718
        %v3720 = vpop.f32.mrb[0].mxu0
        %v3721 = vadd.f32 %v3528, %v3720
        %v3722 = vpop.f32.mrb[0].mxu0
        %v3723 = vadd.f32 %v3530, %v3722
        %v3724 = vpop.f32.mrb[0].mxu0
        %v3725 = vadd.f32 %v3532, %v3724
        %3726 = vmatprep.mubr.bf16.mxu0 %v486
        %3727 = vmatmul.mubr.bf16.gmra.mrb[0].mxu0 %v485
        %v3728 = vpop.f32.mrb[0].mxu0
        %v3729 = vadd.f32 %v3536, %v3728
        %v3730 = vpop.f32.mrb[0].mxu0
        %v3731 = vadd.f32 %v3538, %v3730
        %v3732 = vpop.f32.mrb[0].mxu0
        %v3733 = vadd.f32 %v3540, %v3732
        %v3734 = vpop.f32.mrb[0].mxu0
        %v3735 = vadd.f32 %v3542, %v3734
        %3736 = vmatprep.mubr.bf16.mxu0 %v492
        %3737 = vmatmul.mubr.bf16.gmra.mrb[0].mxu0 %v491
        %v3738 = vpop.f32.mrb[0].mxu0
        %v3739 = vadd.f32 %v3546, %v3738
        %v3740 = vpop.f32.mrb[0].mxu0
        %v3741 = vadd.f32 %v3548, %v3740
        %v3742 = vpop.f32.mrb[0].mxu0
        %v3743 = vadd.f32 %v3550, %v3742
        %v3744 = vpop.f32.mrb[0].mxu0
        %v3745 = vadd.f32 %v3552, %v3744
        %3746 = vmatprep.mubr.bf16.mxu0 %v498
        %3747 = vmatmul.mubr.bf16.gmra.mrb[0].mxu0 %v497
        %v3748 = vpop.f32.mrb[0].mxu0
        %v3749 = vadd.f32 %v3556, %v3748
        %v3750 = vpop.f32.mrb[0].mxu0
        %v3751 = vadd.f32 %v3558, %v3750
        %v3752 = vpop.f32.mrb[0].mxu0
        %v3753 = vadd.f32 %v3560, %v3752
        %v3754 = vpop.f32.mrb[0].mxu0
        %v3755 = vadd.f32 %v3562, %v3754
        %3756 = vmatprep.mubr.bf16.mxu0 %v504
        %3757 = vmatmul.mubr.bf16.gmra.mrb[0].mxu0 %v503
        %v3758 = vpop.f32.mrb[0].mxu0
        %v3759 = vadd.f32 %v3566, %v3758
        %v3760 = vpop.f32.mrb[0].mxu0
        %v3761 = vadd.f32 %v3568, %v3760
        %v3762 = vpop.f32.mrb[0].mxu0
        %v3763 = vadd.f32 %v3570, %v3762
        %v3764 = vpop.f32.mrb[0].mxu0
        %v3765 = vadd.f32 %v3572, %v3764
        %3766 = vmatprep.mubr.bf16.mxu0 %v510
        %3767 = vmatmul.mubr.bf16.gmra.mrb[0].mxu0 %v509
        %v3768 = vpop.f32.mrb[0].mxu0
        %v3769 = vadd.f32 %v3576, %v3768
        %v3770 = vpop.f32.mrb[0].mxu0
        %v3771 = vadd.f32 %v3578, %v3770
        %v3772 = vpop.f32.mrb[0].mxu0
        %v3773 = vadd.f32 %v3580, %v3772
        %v3774 = vpop.f32.mrb[0].mxu0
        %v3775 = vadd.f32 %v3582, %v3774
        %3776 = vmatprep.mubr.bf16.mxu0 %v516
        %3777 = vmatmul.mubr.bf16.gmra.mrb[0].mxu0 %v515
        %v3778 = vpop.f32.mrb[0].mxu0
        %v3779 = vadd.f32 %v3586, %v3778
        %v3780 = vpop.f32.mrb[0].mxu0
        %v3781 = vadd.f32 %v3588, %v3780
        %v3782 = vpop.f32.mrb[0].mxu0
        %v3783 = vadd.f32 %v3590, %v3782
        %v3784 = vpop.f32.mrb[0].mxu0
        %v3785 = vadd.f32 %v3592, %v3784
        %3786 = vmatprep.mubr.bf16.mxu0 %v522
        %3787 = vmatmul.mubr.bf16.gmra.mrb[0].mxu0 %v521
        %v3788 = vpop.f32.mrb[0].mxu0
        %v3789 = vadd.f32 %v3596, %v3788
        %v3790 = vpop.f32.mrb[0].mxu0
        %v3791 = vadd.f32 %v3598, %v3790
        %v3792 = vpop.f32.mrb[0].mxu0
        %v3793 = vadd.f32 %v3600, %v3792
        %v3794 = vpop.f32.mrb[0].mxu0
        %v3795 = vadd.f32 %v3602, %v3794
        %3796 = vmatprep.mubr.bf16.mxu0 %v528
        %3797 = vmatmul.mubr.bf16.gmra.mrb[0].mxu0 %v527
        %v3798 = vpop.f32.mrb[0].mxu0
        %v3799 = vadd.f32 %v3606, %v3798
        %v3800 = vpop.f32.mrb[0].mxu0
        %v3801 = vadd.f32 %v3608, %v3800
        %v3802 = vpop.f32.mrb[0].mxu0
        %v3803 = vadd.f32 %v3610, %v3802
        %v3804 = vpop.f32.mrb[0].mxu0
        %v3805 = vadd.f32 %v3612, %v3804
        %3806 = vmatprep.mubr.bf16.mxu0 %v534
        %3807 = vmatmul.mubr.bf16.gmra.mrb[0].mxu0 %v533
        %v3808 = vpop.f32.mrb[0].mxu0
        %v3809 = vadd.f32 %v3616, %v3808
        %v3810 = vpop.f32.mrb[0].mxu0
        %v3811 = vadd.f32 %v3618, %v3810
        %v3812 = vpop.f32.mrb[0].mxu0
        %v3813 = vadd.f32 %v3620, %v3812
        %v3814 = vpop.f32.mrb[0].mxu0
        %v3815 = vadd.f32 %v3622, %v3814
        %3816 = vmatprep.mubr.bf16.mxu0 %v540
        %3817 = vmatmul.mubr.bf16.gmra.mrb[0].mxu0 %v539
        %v3818 = vpop.f32.mrb[0].mxu0
        %v3819 = vadd.f32 %v3626, %v3818
        %v3820 = vpop.f32.mrb[0].mxu0
        %v3821 = vadd.f32 %v3628, %v3820
        %v3822 = vpop.f32.mrb[0].mxu0
        %v3823 = vadd.f32 %v3630, %v3822
        %v3824 = vpop.f32.mrb[0].mxu0
        %v3825 = vadd.f32 %v3632, %v3824
        %3826 = vmatprep.mubr.bf16.mxu0 %v546
        %3827 = vmatmul.mubr.bf16.gmra.mrb[0].mxu0 %v545
        %v3828 = vpop.f32.mrb[0].mxu0
        %v3829 = vadd.f32 %v3636, %v3828
        %v3830 = vpop.f32.mrb[0].mxu0
        %v3831 = vadd.f32 %v3638, %v3830
        %v3832 = vpop.f32.mrb[0].mxu0
        %v3833 = vadd.f32 %v3640, %v3832
        %v3834 = vpop.f32.mrb[0].mxu0
        %v3835 = vadd.f32 %v3642, %v3834
        %3836 = vmatprep.mubr.bf16.mxu0 %v552
        %3837 = vmatmul.mubr.bf16.gmra.mrb[0].mxu0 %v551
        %v3838 = vpop.f32.mrb[0].mxu0
        %v3839 = vadd.f32 %v3646, %v3838
        %v3840 = vpop.f32.mrb[0].mxu0
        %v3841 = vadd.f32 %v3648, %v3840
        %v3842 = vpop.f32.mrb[0].mxu0
        %v3843 = vadd.f32 %v3650, %v3842
        %v3844 = vpop.f32.mrb[0].mxu0
        %v3845 = vadd.f32 %v3652, %v3844
        %3846 = vmatprep.mubr.bf16.mxu0 %v558
        %3847 = vmatmul.mubr.bf16.gmra.mrb[0].mxu0 %v557
        %v3848 = vpop.f32.mrb[0].mxu0
        %v3849 = vadd.f32 %v3656, %v3848
        %v3850 = vpop.f32.mrb[0].mxu0
        %v3851 = vadd.f32 %v3658, %v3850
        %v3852 = vpop.f32.mrb[0].mxu0
        %v3853 = vadd.f32 %v3660, %v3852
        %v3854 = vpop.f32.mrb[0].mxu0
        %v3855 = vadd.f32 %v3662, %v3854
        %3856 = vmatprep.mubr.bf16.mxu0 %v564
        %3857 = vmatmul.mubr.bf16.gmra.mrb[0].mxu0 %v563
        %v3858 = vpop.f32.mrb[0].mxu0
        %v3859 = vadd.f32 %v3666, %v3858
        %v3860 = vpop.f32.mrb[0].mxu0
        %v3861 = vadd.f32 %v3668, %v3860
        %v3862 = vpop.f32.mrb[0].mxu0
        %v3863 = vadd.f32 %v3670, %v3862
        %v3864 = vpop.f32.mrb[0].mxu0
        %v3865 = vadd.f32 %v3672, %v3864
        %3866 = vmatprep.mubr.bf16.mxu0 %v570
        %3867 = vmatmul.mubr.bf16.gmra.mrb[0].mxu0 %v569
        %v3868 = vpop.f32.mrb[0].mxu0
        %v3869 = vadd.f32 %v3676, %v3868
        %v3870 = vpop.f32.mrb[0].mxu0
        %v3871 = vadd.f32 %v3678, %v3870
        %v3872 = vpop.f32.mrb[0].mxu0
        %v3873 = vadd.f32 %v3680, %v3872
        %v3874 = vpop.f32.mrb[0].mxu0
        %v3875 = vadd.f32 %v3682, %v3874
        %3876 = vdwg.mxu0
        %3877 = vmatprep.subr.bf16.mxu0 %v1954
        %3878 = vmatpush1.bf16.xpose.msra.mxu0 %v1953
        %3879 = vmatprep.subr.bf16.mxu0 %v1960
        %3880 = vmatpush1.bf16.xpose.msra.mxu0 %v1959
        %3881 = vmatprep.subr.bf16.mxu0 %v1966
        %3882 = vmatpush1.bf16.xpose.msra.mxu0 %v1965
        %3883 = vmatprep.subr.bf16.mxu0 %v1972
        %3884 = vmatpush1.bf16.xpose.msra.mxu0 %v1971
        %3885 = vmatprep.subr.bf16.mxu0 %v1978
        %3886 = vmatpush1.bf16.xpose.msra.mxu0 %v1977
        %3887 = vmatprep.subr.bf16.mxu0 %v1984
        %3888 = vmatpush1.bf16.xpose.msra.mxu0 %v1983
        %3889 = vmatprep.subr.bf16.mxu0 %v1990
        %3890 = vmatpush1.bf16.xpose.msra.mxu0 %v1989
        %3891 = vmatprep.subr.bf16.mxu0 %v1996
        %3892 = vmatpush1.bf16.xpose.msra.mxu0 %v1995
        %3893 = vmatprep.subr.bf16.mxu0 %v2002
        %3894 = vmatpush1.bf16.xpose.msra.mxu0 %v2001
        %3895 = vmatprep.subr.bf16.mxu0 %v2008
        %3896 = vmatpush1.bf16.xpose.msra.mxu0 %v2007
        %3897 = vmatprep.subr.bf16.mxu0 %v2014
        %3898 = vmatpush1.bf16.xpose.msra.mxu0 %v2013
        %3899 = vmatprep.subr.bf16.mxu0 %v2020
        %3900 = vmatpush1.bf16.xpose.msra.mxu0 %v2019
        %3901 = vmatprep.subr.bf16.mxu0 %v2026
        %3902 = vmatpush1.bf16.xpose.msra.mxu0 %v2025
        %3903 = vmatprep.subr.bf16.mxu0 %v2032
        %3904 = vmatpush1.bf16.xpose.msra.mxu0 %v2031
        %3905 = vmatprep.subr.bf16.mxu0 %v2038
        %3906 = vmatpush1.bf16.xpose.msra.mxu0 %v2037
        %3907 = vmatprep.subr.bf16.mxu0 %v2044
        %3908 = vmatpush1.bf16.xpose.msra.mxu0 %v2043
        %3909 = vmatprep.mubr.bf16.mxu0 %v482
        %3910 = vmatmul.mubr.bf16.gmra.mrb[0].mxu0 %v481
        %v3911 = vpop.f32.mrb[0].mxu0
        %v3912 = vadd.f32 %v3719, %v3911
        %v3913 = vpop.f32.mrb[0].mxu0
        %v3914 = vadd.f32 %v3721, %v3913
        %v3915 = vpop.f32.mrb[0].mxu0
        %v3916 = vadd.f32 %v3723, %v3915
        %v3917 = vpop.f32.mrb[0].mxu0
        %v3918 = vadd.f32 %v3725, %v3917
        %3919 = vmatprep.mubr.bf16.mxu0 %v488
        %3920 = vmatmul.mubr.bf16.gmra.mrb[0].mxu0 %v487
        %v3921 = vpop.f32.mrb[0].mxu0
        %v3922 = vadd.f32 %v3729, %v3921
        %v3923 = vpop.f32.mrb[0].mxu0
        %v3924 = vadd.f32 %v3731, %v3923
        %v3925 = vpop.f32.mrb[0].mxu0
        %v3926 = vadd.f32 %v3733, %v3925
        %v3927 = vpop.f32.mrb[0].mxu0
        %v3928 = vadd.f32 %v3735, %v3927
        %3929 = vmatprep.mubr.bf16.mxu0 %v494
        %3930 = vmatmul.mubr.bf16.gmra.mrb[0].mxu0 %v493
        %v3931 = vpop.f32.mrb[0].mxu0
        %v3932 = vadd.f32 %v3739, %v3931
        %v3933 = vpop.f32.mrb[0].mxu0
        %v3934 = vadd.f32 %v3741, %v3933
        %v3935 = vpop.f32.mrb[0].mxu0
        %v3936 = vadd.f32 %v3743, %v3935
        %v3937 = vpop.f32.mrb[0].mxu0
        %v3938 = vadd.f32 %v3745, %v3937
        %3939 = vmatprep.mubr.bf16.mxu0 %v500
        %3940 = vmatmul.mubr.bf16.gmra.mrb[0].mxu0 %v499
        %v3941 = vpop.f32.mrb[0].mxu0
        %v3942 = vadd.f32 %v3749, %v3941
        %v3943 = vpop.f32.mrb[0].mxu0
        %v3944 = vadd.f32 %v3751, %v3943
        %v3945 = vpop.f32.mrb[0].mxu0
        %v3946 = vadd.f32 %v3753, %v3945
        %v3947 = vpop.f32.mrb[0].mxu0
        %v3948 = vadd.f32 %v3755, %v3947
        %3949 = vmatprep.mubr.bf16.mxu0 %v506
        %3950 = vmatmul.mubr.bf16.gmra.mrb[0].mxu0 %v505
        %v3951 = vpop.f32.mrb[0].mxu0
        %v3952 = vadd.f32 %v3759, %v3951
        %v3953 = vpop.f32.mrb[0].mxu0
        %v3954 = vadd.f32 %v3761, %v3953
        %v3955 = vpop.f32.mrb[0].mxu0
        %v3956 = vadd.f32 %v3763, %v3955
        %v3957 = vpop.f32.mrb[0].mxu0
        %v3958 = vadd.f32 %v3765, %v3957
        %3959 = vmatprep.mubr.bf16.mxu0 %v512
        %3960 = vmatmul.mubr.bf16.gmra.mrb[0].mxu0 %v511
        %v3961 = vpop.f32.mrb[0].mxu0
        %v3962 = vadd.f32 %v3769, %v3961
        %v3963 = vpop.f32.mrb[0].mxu0
        %v3964 = vadd.f32 %v3771, %v3963
        %v3965 = vpop.f32.mrb[0].mxu0
        %v3966 = vadd.f32 %v3773, %v3965
        %v3967 = vpop.f32.mrb[0].mxu0
        %v3968 = vadd.f32 %v3775, %v3967
        %3969 = vmatprep.mubr.bf16.mxu0 %v518
        %3970 = vmatmul.mubr.bf16.gmra.mrb[0].mxu0 %v517
        %v3971 = vpop.f32.mrb[0].mxu0
        %v3972 = vadd.f32 %v3779, %v3971
        %v3973 = vpop.f32.mrb[0].mxu0
        %v3974 = vadd.f32 %v3781, %v3973
        %v3975 = vpop.f32.mrb[0].mxu0
        %v3976 = vadd.f32 %v3783, %v3975
        %v3977 = vpop.f32.mrb[0].mxu0
        %v3978 = vadd.f32 %v3785, %v3977
        %3979 = vmatprep.mubr.bf16.mxu0 %v524
        %3980 = vmatmul.mubr.bf16.gmra.mrb[0].mxu0 %v523
        %v3981 = vpop.f32.mrb[0].mxu0
        %v3982 = vadd.f32 %v3789, %v3981
        %v3983 = vpop.f32.mrb[0].mxu0
        %v3984 = vadd.f32 %v3791, %v3983
        %v3985 = vpop.f32.mrb[0].mxu0
        %v3986 = vadd.f32 %v3793, %v3985
        %v3987 = vpop.f32.mrb[0].mxu0
        %v3988 = vadd.f32 %v3795, %v3987
        %3989 = vmatprep.mubr.bf16.mxu0 %v530
        %3990 = vmatmul.mubr.bf16.gmra.mrb[0].mxu0 %v529
        %v3991 = vpop.f32.mrb[0].mxu0
        %v3992 = vadd.f32 %v3799, %v3991
        %v3993 = vpop.f32.mrb[0].mxu0
        %v3994 = vadd.f32 %v3801, %v3993
        %v3995 = vpop.f32.mrb[0].mxu0
        %v3996 = vadd.f32 %v3803, %v3995
        %v3997 = vpop.f32.mrb[0].mxu0
        %v3998 = vadd.f32 %v3805, %v3997
        %3999 = vmatprep.mubr.bf16.mxu0 %v536
        %4000 = vmatmul.mubr.bf16.gmra.mrb[0].mxu0 %v535
        %v4001 = vpop.f32.mrb[0].mxu0
        %v4002 = vadd.f32 %v3809, %v4001
        %v4003 = vpop.f32.mrb[0].mxu0
        %v4004 = vadd.f32 %v3811, %v4003
        %v4005 = vpop.f32.mrb[0].mxu0
        %v4006 = vadd.f32 %v3813, %v4005
        %v4007 = vpop.f32.mrb[0].mxu0
        %v4008 = vadd.f32 %v3815, %v4007
        %4009 = vmatprep.mubr.bf16.mxu0 %v542
        %4010 = vmatmul.mubr.bf16.gmra.mrb[0].mxu0 %v541
        %v4011 = vpop.f32.mrb[0].mxu0
        %v4012 = vadd.f32 %v3819, %v4011
        %v4013 = vpop.f32.mrb[0].mxu0
        %v4014 = vadd.f32 %v3821, %v4013
        %v4015 = vpop.f32.mrb[0].mxu0
        %v4016 = vadd.f32 %v3823, %v4015
        %v4017 = vpop.f32.mrb[0].mxu0
        %v4018 = vadd.f32 %v3825, %v4017
        %4019 = vmatprep.mubr.bf16.mxu0 %v548
        %4020 = vmatmul.mubr.bf16.gmra.mrb[0].mxu0 %v547
        %v4021 = vpop.f32.mrb[0].mxu0
        %v4022 = vadd.f32 %v3829, %v4021
        %v4023 = vpop.f32.mrb[0].mxu0
        %v4024 = vadd.f32 %v3831, %v4023
        %v4025 = vpop.f32.mrb[0].mxu0
        %v4026 = vadd.f32 %v3833, %v4025
        %v4027 = vpop.f32.mrb[0].mxu0
        %v4028 = vadd.f32 %v3835, %v4027
        %4029 = vmatprep.mubr.bf16.mxu0 %v554
        %4030 = vmatmul.mubr.bf16.gmra.mrb[0].mxu0 %v553
        %v4031 = vpop.f32.mrb[0].mxu0
        %v4032 = vadd.f32 %v3839, %v4031
        %v4033 = vpop.f32.mrb[0].mxu0
        %v4034 = vadd.f32 %v3841, %v4033
        %v4035 = vpop.f32.mrb[0].mxu0
        %v4036 = vadd.f32 %v3843, %v4035
        %v4037 = vpop.f32.mrb[0].mxu0
        %v4038 = vadd.f32 %v3845, %v4037
        %4039 = vmatprep.mubr.bf16.mxu0 %v560
        %4040 = vmatmul.mubr.bf16.gmra.mrb[0].mxu0 %v559
        %v4041 = vpop.f32.mrb[0].mxu0
        %v4042 = vadd.f32 %v3849, %v4041
        %v4043 = vpop.f32.mrb[0].mxu0
        %v4044 = vadd.f32 %v3851, %v4043
        %v4045 = vpop.f32.mrb[0].mxu0
        %v4046 = vadd.f32 %v3853, %v4045
        %v4047 = vpop.f32.mrb[0].mxu0
        %v4048 = vadd.f32 %v3855, %v4047
        %4049 = vmatprep.mubr.bf16.mxu0 %v566
        %4050 = vmatmul.mubr.bf16.gmra.mrb[0].mxu0 %v565
        %v4051 = vpop.f32.mrb[0].mxu0
        %v4052 = vadd.f32 %v3859, %v4051
        %v4053 = vpop.f32.mrb[0].mxu0
        %v4054 = vadd.f32 %v3861, %v4053
        %v4055 = vpop.f32.mrb[0].mxu0
        %v4056 = vadd.f32 %v3863, %v4055
        %v4057 = vpop.f32.mrb[0].mxu0
        %v4058 = vadd.f32 %v3865, %v4057
        %4059 = vmatprep.mubr.bf16.mxu0 %v572
        %4060 = vmatmul.mubr.bf16.gmra.mrb[0].mxu0 %v571
        %v4061 = vpop.f32.mrb[0].mxu0
        %v4062 = vadd.f32 %v3869, %v4061
        %v4063 = vpop.f32.mrb[0].mxu0
        %v4064 = vadd.f32 %v3871, %v4063
        %v4065 = vpop.f32.mrb[0].mxu0
        %v4066 = vadd.f32 %v3873, %v4065
        %v4067 = vpop.f32.mrb[0].mxu0
        %v4068 = vadd.f32 %v3875, %v4067
        %4069 = vdwg.mxu0
        %4070 = vst [vmem:[%s279] sm:$0xff] %v2754
        %4071 = vst [vmem:[%s279 + $0x8] sm:$0xff] %v2756
        %4072 = vst [vmem:[%s279 + $0x10] sm:$0xff] %v3333
        %4073 = vst [vmem:[%s279 + $0x18] sm:$0xff] %v3335
        %4074 = vst [vmem:[%s279 + $0x20] sm:$0xff] %v3912
        %4075 = vst [vmem:[%s279 + $0x28] sm:$0xff] %v3914
        %4076 = vst [vmem:[%s279 + $0x30] sm:$0xff] %v2758
        %4077 = vst [vmem:[%s279 + $0x38] sm:$0xff] %v2760
        %4078 = vst [vmem:[%s279 + $0x40] sm:$0xff] %v3337
        %4079 = vst [vmem:[%s279 + $0x48] sm:$0xff] %v3339
        %4080 = vst [vmem:[%s279 + $0x50] sm:$0xff] %v3916
        %4081 = vst [vmem:[%s279 + $0x58] sm:$0xff] %v3918
        %4082 = vst [vmem:[%s279 + $0x60] sm:$0xff] %v2764
        %4083 = vst [vmem:[%s279 + $0x68] sm:$0xff] %v2766
        %4084 = vst [vmem:[%s279 + $0x70] sm:$0xff] %v3343
        %4085 = vst [vmem:[%s279 + $0x78] sm:$0xff] %v3345
        %4086 = vst [vmem:[%s279 + $0x80] sm:$0xff] %v3922
        %4087 = vst [vmem:[%s279 + $0x88] sm:$0xff] %v3924
        %4088 = vst [vmem:[%s279 + $0x90] sm:$0xff] %v2768
        %4089 = vst [vmem:[%s279 + $0x98] sm:$0xff] %v2770
        %4090 = vst [vmem:[%s279 + $0xa0] sm:$0xff] %v3347
        %4091 = vst [vmem:[%s279 + $0xa8] sm:$0xff] %v3349
        %4092 = vst [vmem:[%s279 + $0xb0] sm:$0xff] %v3926
        %4093 = vst [vmem:[%s279 + $0xb8] sm:$0xff] %v3928
        %4094 = vst [vmem:[%s279 + $0xc0] sm:$0xff] %v2774
        %4095 = vst [vmem:[%s279 + $0xc8] sm:$0xff] %v2776
        %4096 = vst [vmem:[%s279 + $0xd0] sm:$0xff] %v3353
        %4097 = vst [vmem:[%s279 + $0xd8] sm:$0xff] %v3355
        %4098 = vst [vmem:[%s279 + $0xe0] sm:$0xff] %v3932
        %4099 = vst [vmem:[%s279 + $0xe8] sm:$0xff] %v3934
        %4100 = vst [vmem:[%s279 + $0xf0] sm:$0xff] %v2778
        %4101 = vst [vmem:[%s279 + $0xf8] sm:$0xff] %v2780
        %4102 = vst [vmem:[%s279 + $0x100] sm:$0xff] %v3357
        %4103 = vst [vmem:[%s279 + $0x108] sm:$0xff] %v3359
        %4104 = vst [vmem:[%s279 + $0x110] sm:$0xff] %v3936
        %4105 = vst [vmem:[%s279 + $0x118] sm:$0xff] %v3938
        %4106 = vst [vmem:[%s279 + $0x120] sm:$0xff] %v2784
        %4107 = vst [vmem:[%s279 + $0x128] sm:$0xff] %v2786
        %4108 = vst [vmem:[%s279 + $0x130] sm:$0xff] %v3363
        %4109 = vst [vmem:[%s279 + $0x138] sm:$0xff] %v3365
        %4110 = vst [vmem:[%s279 + $0x140] sm:$0xff] %v3942
        %4111 = vst [vmem:[%s279 + $0x148] sm:$0xff] %v3944
        %4112 = vst [vmem:[%s279 + $0x150] sm:$0xff] %v2788
        %4113 = vst [vmem:[%s279 + $0x158] sm:$0xff] %v2790
        %4114 = vst [vmem:[%s279 + $0x160] sm:$0xff] %v3367
        %4115 = vst [vmem:[%s279 + $0x168] sm:$0xff] %v3369
        %4116 = vst [vmem:[%s279 + $0x170] sm:$0xff] %v3946
        %4117 = vst [vmem:[%s279 + $0x178] sm:$0xff] %v3948
        %4118 = vst [vmem:[%s279 + $0x180] sm:$0xff] %v2794
        %4119 = vst [vmem:[%s279 + $0x188] sm:$0xff] %v2796
        %4120 = vst [vmem:[%s279 + $0x190] sm:$0xff] %v3373
        %4121 = vst [vmem:[%s279 + $0x198] sm:$0xff] %v3375
        %4122 = vst [vmem:[%s279 + $0x1a0] sm:$0xff] %v3952
        %4123 = vst [vmem:[%s279 + $0x1a8] sm:$0xff] %v3954
        %4124 = vst [vmem:[%s279 + $0x1b0] sm:$0xff] %v2798
        %4125 = vst [vmem:[%s279 + $0x1b8] sm:$0xff] %v2800
        %4126 = vst [vmem:[%s279 + $0x1c0] sm:$0xff] %v3377
        %4127 = vst [vmem:[%s279 + $0x1c8] sm:$0xff] %v3379
        %4128 = vst [vmem:[%s279 + $0x1d0] sm:$0xff] %v3956
        %4129 = vst [vmem:[%s279 + $0x1d8] sm:$0xff] %v3958
        %4130 = vst [vmem:[%s279 + $0x1e0] sm:$0xff] %v2804
        %4131 = vst [vmem:[%s279 + $0x1e8] sm:$0xff] %v2806
        %4132 = vst [vmem:[%s279 + $0x1f0] sm:$0xff] %v3383
        %4133 = vst [vmem:[%s279 + $0x1f8] sm:$0xff] %v3385
        %4134 = vst [vmem:[%s279 + $0x200] sm:$0xff] %v3962
        %4135 = vst [vmem:[%s279 + $0x208] sm:$0xff] %v3964
        %4136 = vst [vmem:[%s279 + $0x210] sm:$0xff] %v2808
        %4137 = vst [vmem:[%s279 + $0x218] sm:$0xff] %v2810
        %4138 = vst [vmem:[%s279 + $0x220] sm:$0xff] %v3387
        %4139 = vst [vmem:[%s279 + $0x228] sm:$0xff] %v3389
        %4140 = vst [vmem:[%s279 + $0x230] sm:$0xff] %v3966
        %4141 = vst [vmem:[%s279 + $0x238] sm:$0xff] %v3968
        %4142 = vst [vmem:[%s279 + $0x240] sm:$0xff] %v2814
        %4143 = vst [vmem:[%s279 + $0x248] sm:$0xff] %v2816
        %4144 = vst [vmem:[%s279 + $0x250] sm:$0xff] %v3393
        %4145 = vst [vmem:[%s279 + $0x258] sm:$0xff] %v3395
        %4146 = vst [vmem:[%s279 + $0x260] sm:$0xff] %v3972
        %4147 = vst [vmem:[%s279 + $0x268] sm:$0xff] %v3974
        %4148 = vst [vmem:[%s279 + $0x270] sm:$0xff] %v2818
        %4149 = vst [vmem:[%s279 + $0x278] sm:$0xff] %v2820
        %4150 = vst [vmem:[%s279 + $0x280] sm:$0xff] %v3397
        %4151 = vst [vmem:[%s279 + $0x288] sm:$0xff] %v3399
        %4152 = vst [vmem:[%s279 + $0x290] sm:$0xff] %v3976
        %4153 = vst [vmem:[%s279 + $0x298] sm:$0xff] %v3978
        %4154 = vst [vmem:[%s279 + $0x2a0] sm:$0xff] %v2824
        %4155 = vst [vmem:[%s279 + $0x2a8] sm:$0xff] %v2826
        %4156 = vst [vmem:[%s279 + $0x2b0] sm:$0xff] %v3403
        %4157 = vst [vmem:[%s279 + $0x2b8] sm:$0xff] %v3405
        %4158 = vst [vmem:[%s279 + $0x2c0] sm:$0xff] %v3982
        %4159 = vst [vmem:[%s279 + $0x2c8] sm:$0xff] %v3984
        %4160 = vst [vmem:[%s279 + $0x2d0] sm:$0xff] %v2828
        %4161 = vst [vmem:[%s279 + $0x2d8] sm:$0xff] %v2830
        %4162 = vst [vmem:[%s279 + $0x2e0] sm:$0xff] %v3407
        %4163 = vst [vmem:[%s279 + $0x2e8] sm:$0xff] %v3409
        %4164 = vst [vmem:[%s279 + $0x2f0] sm:$0xff] %v3986
        %4165 = vst [vmem:[%s279 + $0x2f8] sm:$0xff] %v3988
        %4166 = vst [vmem:[%s279 + $0x300] sm:$0xff] %v2834
        %4167 = vst [vmem:[%s279 + $0x308] sm:$0xff] %v2836
        %4168 = vst [vmem:[%s279 + $0x310] sm:$0xff] %v3413
        %4169 = vst [vmem:[%s279 + $0x318] sm:$0xff] %v3415
        %4170 = vst [vmem:[%s279 + $0x320] sm:$0xff] %v3992
        %4171 = vst [vmem:[%s279 + $0x328] sm:$0xff] %v3994
        %4172 = vst [vmem:[%s279 + $0x330] sm:$0xff] %v2838
        %4173 = vst [vmem:[%s279 + $0x338] sm:$0xff] %v2840
        %4174 = vst [vmem:[%s279 + $0x340] sm:$0xff] %v3417
        %4175 = vst [vmem:[%s279 + $0x348] sm:$0xff] %v3419
        %4176 = vst [vmem:[%s279 + $0x350] sm:$0xff] %v3996
        %4177 = vst [vmem:[%s279 + $0x358] sm:$0xff] %v3998
        %4178 = vst [vmem:[%s279 + $0x360] sm:$0xff] %v2844
        %4179 = vst [vmem:[%s279 + $0x368] sm:$0xff] %v2846
        %4180 = vst [vmem:[%s279 + $0x370] sm:$0xff] %v3423
        %4181 = vst [vmem:[%s279 + $0x378] sm:$0xff] %v3425
        %4182 = vst [vmem:[%s279 + $0x380] sm:$0xff] %v4002
        %4183 = vst [vmem:[%s279 + $0x388] sm:$0xff] %v4004
        %4184 = vst [vmem:[%s279 + $0x390] sm:$0xff] %v2848
        %4185 = vst [vmem:[%s279 + $0x398] sm:$0xff] %v2850
        %4186 = vst [vmem:[%s279 + $0x3a0] sm:$0xff] %v3427
        %4187 = vst [vmem:[%s279 + $0x3a8] sm:$0xff] %v3429
        %4188 = vst [vmem:[%s279 + $0x3b0] sm:$0xff] %v4006
        %4189 = vst [vmem:[%s279 + $0x3b8] sm:$0xff] %v4008
        %4190 = vst [vmem:[%s279 + $0x3c0] sm:$0xff] %v2854
        %4191 = vst [vmem:[%s279 + $0x3c8] sm:$0xff] %v2856
        %4192 = vst [vmem:[%s279 + $0x3d0] sm:$0xff] %v3433
        %4193 = vst [vmem:[%s279 + $0x3d8] sm:$0xff] %v3435
        %4194 = vst [vmem:[%s279 + $0x3e0] sm:$0xff] %v4012
        %4195 = vst [vmem:[%s279 + $0x3e8] sm:$0xff] %v4014
        %4196 = vst [vmem:[%s279 + $0x3f0] sm:$0xff] %v2858
        %4197 = vst [vmem:[%s279 + $0x3f8] sm:$0xff] %v2860
        %4198 = vst [vmem:[%s279 + $0x400] sm:$0xff] %v3437
        %4199 = vst [vmem:[%s279 + $0x408] sm:$0xff] %v3439
        %4200 = vst [vmem:[%s279 + $0x410] sm:$0xff] %v4016
        %4201 = vst [vmem:[%s279 + $0x418] sm:$0xff] %v4018
        %4202 = vst [vmem:[%s279 + $0x420] sm:$0xff] %v2864
        %4203 = vst [vmem:[%s279 + $0x428] sm:$0xff] %v2866
        %4204 = vst [vmem:[%s279 + $0x430] sm:$0xff] %v3443
        %4205 = vst [vmem:[%s279 + $0x438] sm:$0xff] %v3445
        %4206 = vst [vmem:[%s279 + $0x440] sm:$0xff] %v4022
        %4207 = vst [vmem:[%s279 + $0x448] sm:$0xff] %v4024
        %4208 = vst [vmem:[%s279 + $0x450] sm:$0xff] %v2868
        %4209 = vst [vmem:[%s279 + $0x458] sm:$0xff] %v2870
        %4210 = vst [vmem:[%s279 + $0x460] sm:$0xff] %v3447
        %4211 = vst [vmem:[%s279 + $0x468] sm:$0xff] %v3449
        %4212 = vst [vmem:[%s279 + $0x470] sm:$0xff] %v4026
        %4213 = vst [vmem:[%s279 + $0x478] sm:$0xff] %v4028
        %4214 = vst [vmem:[%s279 + $0x480] sm:$0xff] %v2874
        %4215 = vst [vmem:[%s279 + $0x488] sm:$0xff] %v2876
        %4216 = vst [vmem:[%s279 + $0x490] sm:$0xff] %v3453
        %4217 = vst [vmem:[%s279 + $0x498] sm:$0xff] %v3455
        %4218 = vst [vmem:[%s279 + $0x4a0] sm:$0xff] %v4032
        %4219 = vst [vmem:[%s279 + $0x4a8] sm:$0xff] %v4034
        %4220 = vst [vmem:[%s279 + $0x4b0] sm:$0xff] %v2878
        %4221 = vst [vmem:[%s279 + $0x4b8] sm:$0xff] %v2880
        %4222 = vst [vmem:[%s279 + $0x4c0] sm:$0xff] %v3457
        %4223 = vst [vmem:[%s279 + $0x4c8] sm:$0xff] %v3459
        %4224 = vst [vmem:[%s279 + $0x4d0] sm:$0xff] %v4036
        %4225 = vst [vmem:[%s279 + $0x4d8] sm:$0xff] %v4038
        %4226 = vst [vmem:[%s279 + $0x4e0] sm:$0xff] %v2884
        %4227 = vst [vmem:[%s279 + $0x4e8] sm:$0xff] %v2886
        %4228 = vst [vmem:[%s279 + $0x4f0] sm:$0xff] %v3463
        %4229 = vst [vmem:[%s279 + $0x4f8] sm:$0xff] %v3465
        %4230 = vst [vmem:[%s279 + $0x500] sm:$0xff] %v4042
        %4231 = vst [vmem:[%s279 + $0x508] sm:$0xff] %v4044
        %4232 = vst [vmem:[%s279 + $0x510] sm:$0xff] %v2888
        %4233 = vst [vmem:[%s279 + $0x518] sm:$0xff] %v2890
        %4234 = vst [vmem:[%s279 + $0x520] sm:$0xff] %v3467
        %4235 = vst [vmem:[%s279 + $0x528] sm:$0xff] %v3469
        %4236 = vst [vmem:[%s279 + $0x530] sm:$0xff] %v4046
        %4237 = vst [vmem:[%s279 + $0x538] sm:$0xff] %v4048
        %4238 = vst [vmem:[%s279 + $0x540] sm:$0xff] %v2894
        %4239 = vst [vmem:[%s279 + $0x548] sm:$0xff] %v2896
        %4240 = vst [vmem:[%s279 + $0x550] sm:$0xff] %v3473
        %4241 = vst [vmem:[%s279 + $0x558] sm:$0xff] %v3475
        %4242 = vst [vmem:[%s279 + $0x560] sm:$0xff] %v4052
        %4243 = vst [vmem:[%s279 + $0x568] sm:$0xff] %v4054
        %4244 = vst [vmem:[%s279 + $0x570] sm:$0xff] %v2898
        %4245 = vst [vmem:[%s279 + $0x578] sm:$0xff] %v2900
        %4246 = vst [vmem:[%s279 + $0x580] sm:$0xff] %v3477
        %4247 = vst [vmem:[%s279 + $0x588] sm:$0xff] %v3479
        %4248 = vst [vmem:[%s279 + $0x590] sm:$0xff] %v4056
        %4249 = vst [vmem:[%s279 + $0x598] sm:$0xff] %v4058
        %4250 = vst [vmem:[%s279 + $0x5a0] sm:$0xff] %v2904
        %4251 = vst [vmem:[%s279 + $0x5a8] sm:$0xff] %v2906
        %4252 = vst [vmem:[%s279 + $0x5b0] sm:$0xff] %v3483
        %4253 = vst [vmem:[%s279 + $0x5b8] sm:$0xff] %v3485
        %4254 = vst [vmem:[%s279 + $0x5c0] sm:$0xff] %v4062
        %4255 = vst [vmem:[%s279 + $0x5c8] sm:$0xff] %v4064
        %4256 = vst [vmem:[%s279 + $0x5d0] sm:$0xff] %v2908
        %4257 = vst [vmem:[%s279 + $0x5d8] sm:$0xff] %v2910
        %4258 = vst [vmem:[%s279 + $0x5e0] sm:$0xff] %v3487
        %4259 = vst [vmem:[%s279 + $0x5e8] sm:$0xff] %v3489
        %4260 = vst [vmem:[%s279 + $0x5f0] sm:$0xff] %v4066
        %4261 = vst [vmem:[%s279 + $0x5f8] sm:$0xff] %v4068
        %s4262 = sand.u32 %s123, 1
        %s4263 = scalar_lea.sflag [#allocation4], %s4262
        %s4264 = sand.u32 %s123, 1
        %s4265 = smul.addr %s4264, 1536
        %s4266 = scalar_lea.vmem [#allocation8], %s4265
        // Predicated region
        $region45: #{tpu_custom_call.1} parent=31 // pred_check
          %p4267 = pneg %p133
        $region46: #{tpu_custom_call.1} parent=31 // pred_check_branch
          %4269 = sbr.rel (%p4267) target = $region48
        $region47: #{tpu_custom_call.1} parent=31 // pred_region
          %s4270 = smul.u32 32, %s27
          %s4271 = smul.u32 6, %s28
          %s4273 = ssub.s32 24576, 24576
          %4274 = vsyncadd %s4263, %s4273
          %s4275 = smul.addr %s4270, 12
          %s4276 = sadd.s32 %s4271, %s4275
          %s4277 = smul.addr %s4276, 128
          %s4278 = scalar_lea.hbm %s3, %s4277
          %s4279 = sshll.u32 %s4266, 4
          %s4280 = int_to_ptr.vmem [resolvable:$true] %s4279
          %4285 = dma.vmem_to_hbm [thread:$0]  %s4280, 24576, %s4278, %s4263, 768, 1536, 48
        $region48: #{tpu_custom_call.1} parent=31 // pred_fallthru
          _
      $region32: #{tpu_custom_call.1} parent=5 // pred_fallthru
        _
      %p4286 = scmp.le.s32.totalorder 2, %s18
      // Predicated region
      $region49: #{tpu_custom_call.1} parent=5 // pred_check
        %p4287 = pneg %p4286
      $region50: #{tpu_custom_call.1} parent=5 // pred_check_branch
        %4289 = sbr.rel (%p4287) target = $region52
      $region51: #{tpu_custom_call.1} parent=5 // pred_region
        %s4290 = ssub.s32 %s18, 2
        // Predicated region
        $region53: #{tpu_custom_call.1} parent=51 // pred_check
          %p4291 = pneg %p139
        $region54: #{tpu_custom_call.1} parent=51 // pred_check_branch
          %4293 = sbr.rel (%p4291) target = $region56
        $region55: #{tpu_custom_call.1} parent=51 // pred_region
          %s4294 = sand.u32 %s124, 1
          %s4295 = scalar_lea.sflag [#allocation4], %s4294
          %s4296 = sand.u32 %s124, 1
          %s4297 = smul.addr %s4296, 1536
          %s4298 = scalar_lea.vmem [#allocation8], %s4297
          %4299 = dma.done %s4295, 24576
        $region56: #{tpu_custom_call.1} parent=51 // pred_fallthru
          _
      $region52: #{tpu_custom_call.1} parent=5 // pred_fallthru
        _
    $region6: #{tpu_custom_call.1} parent=1 // loop_footer
      %s22 = sadd.s32 1, %s18
    $region7: #{tpu_custom_call.1} parent=1 // loop_footer_branch
      %17 = sbr.rel target = $region3
    $region8: #{tpu_custom_call.1} parent=1 // loop_exit
      _
    %4300 = vsyncpa [#allocation3], 1
    %s4301 = scalar_lea.sflag [#allocation3], 1
    %4302 = vsyncpa %s4301, 1
    %4303 = vsyncpa [#allocation6], 1
    %s4304 = scalar_lea.sflag [#allocation6], 1
    %4305 = vsyncpa %s4304, 1
    %4306 = vsyncpa [#allocation4], 1
    %s4307 = scalar_lea.sflag [#allocation4], 1
    %4308 = vsyncpa %s4307, 1

</llo_original>
